<compile_context>
chip_gen: v7x
topology: tpu7x:2x2x1
jax: 0.10.0
libtpu: 0.0.40
codegen_flags: <defaults>
</compile_context>

<pallas_src>
import jax
import jax.numpy as jnp
from jax.experimental import pallas as pl
from jax.experimental.pallas import tpu as pltpu

# ----- small synthetic BERT config (bert-base-uncased scaled down) -----
VOCAB = 128
MAX_POS = 32
TYPE_VOCAB = 2
HIDDEN = 32
N_LAYERS = 2
N_HEADS = 2
HEAD_DIM = HIDDEN // N_HEADS
INTERMEDIATE = 64
NUM_LABELS = 2
LN_EPS = 1e-12
_GELU_C = 0.7978845608028654            # sqrt(2/pi)
MATMUL_DTYPE = jnp.bfloat16             # MXU operand dtype (f32 accumulation)


# ---------------- small helpers ----------------

def _rep(shape):
    """BlockSpec for an operand replicated across the whole grid (weights/biases)."""
    return pl.BlockSpec(shape, lambda *_: (0,) * len(shape))


def _ln(y, g, b):
    """f32 layernorm over the last (lane) axis."""
    mu = jnp.mean(y, axis=-1, keepdims=True)
    var = jnp.mean((y - mu) * (y - mu), axis=-1, keepdims=True)
    inv = jax.lax.rsqrt(var + LN_EPS)
    return (y - mu) * inv * g + b


def _mm(a, b):
    """MXU matmul: bf16 operands (weights pre-cast at init), f32 accumulation."""
    return jnp.dot(a.astype(MATMUL_DTYPE), b, preferred_element_type=jnp.float32)


# ---------------- the single fused Pallas kernel ----------------

def _bert_fwd_kernel(x_ref, emb_g_ref, emb_b_ref,
                     wqkv_ref, bqkv_ref, wo_ref, bo_ref, ln1_g_ref, ln1_b_ref,
                     w1_ref, b1_ref, w2_ref, b2_ref, ln2_g_ref, ln2_b_ref,
                     wp_ref, bp_ref, wc_ref, bc_ref,
                     logits_ref):
    """One grid step = one batch element: full BERT encoder + pooler + classifier."""
    S = x_ref.shape[0]

    # embedding LayerNorm (folded in; no standalone launch)
    h = _ln(x_ref[...], emb_g_ref[...], emb_b_ref[...])                 # (S, H) f32

    for l in range(N_LAYERS):                                           # static unroll
        # ---------------- attention ----------------
        # One batched MXU pass computes every head's Q, K, V at once; per-head data
        # lives on the LEADING axis (no unaligned 16-lane slices of activations).
        hb = jnp.broadcast_to(h.astype(MATMUL_DTYPE)[None],
                              (3 * N_HEADS, S, HIDDEN))                 # (3*NH, S, H) bf16
        qkv = jnp.einsum("xsd,xde->xse", hb, wqkv_ref[l],
                         preferred_element_type=jnp.float32) + bqkv_ref[l]   # (3*NH, S, DH)
        q = qkv[0:N_HEADS]                         # (NH, S, DH)  (scale folded into Wq)
        k = qkv[N_HEADS:2 * N_HEADS]
        v = qkv[2 * N_HEADS:3 * N_HEADS]

        # scores for all heads in one batched dot_general (contract last dims)
        s = jnp.einsum("hqe,hke->hqk",
                       q.astype(MATMUL_DTYPE), k.astype(MATMUL_DTYPE),
                       preferred_element_type=jnp.float32)              # (NH, S, S)
        # TODO(synk): no attention/padding mask (all tokens assumed real, as in reference run)
        s = s - jnp.max(s, axis=-1, keepdims=True)
        p = jnp.exp(s)
        p = p * pl.reciprocal(jnp.sum(p, axis=-1, keepdims=True), approx=True)

        ctx = jnp.einsum("hqk,hke->hqe",
                         p.astype(MATMUL_DTYPE), v.astype(MATMUL_DTYPE),
                         preferred_element_type=jnp.float32)            # (NH, S, DH)

        # output projection: one batched dot over heads + head-sum
        # (no per-head sequential accumulation, no unaligned Wo slices).
        attn = jnp.einsum("hqe,heo->hqo",
                          ctx.astype(MATMUL_DTYPE), wo_ref[l],
                          preferred_element_type=jnp.float32)           # (NH, S, H)
        attn = jnp.sum(attn, axis=0) + bo_ref[l]                        # (S, H)
        h = _ln(h + attn, ln1_g_ref[l], ln1_b_ref[l])

        # ---------------- feed-forward ----------------
        y = _mm(h, w1_ref[l]) + b1_ref[l]                               # (S, I)
        # TODO(synk): HF BERT uses erf-based gelu; tanh approximation used here (EUP-friendly).
        y = 0.5 * y * (1.0 + jnp.tanh(_GELU_C * (y + 0.044715 * y * y * y)))
        y = _mm(y, w2_ref[l]) + b2_ref[l]                               # (S, H)
        h = _ln(h + y, ln2_g_ref[l], ln2_b_ref[l])

    # ---------------- pooler + classifier on this element's [CLS] row ----------------
    pooled = jnp.tanh(_mm(h[0:1, :], wp_ref[...]) + bp_ref[...])        # (1, H)
    logits_ref[0] = _mm(pooled, wc_ref[...]) + bc_ref[...]              # (1, NUM_LABELS)


# ---------------- parameter init (deterministic, synthetic) ----------------

def init_params(key):
    keys = iter(jax.random.split(key, 6 * N_LAYERS + 5))

    def w(shape):
        return jax.random.normal(next(keys), shape, jnp.float32) * 0.02

    scale = 1.0 / float(HEAD_DIM) ** 0.5

    def heads(m):  # (H, H) -> (N_HEADS, H, HEAD_DIM), head-major leading axis
        return m.reshape(HIDDEN, N_HEADS, HEAD_DIM).transpose(1, 0, 2)

    wqkv_l, bqkv_l, wo_l, bo_l = [], [], [], []
    ln1_g_l, ln1_b_l, ln2_g_l, ln2_b_l = [], [], [], []
    w1_l, b1_l, w2_l, b2_l = [], [], [], []
    for _ in range(N_LAYERS):
        wq = w((HIDDEN, HIDDEN)) * scale        # attention scale folded into Q weights
        wk = w((HIDDEN, HIDDEN))
        wv = w((HIDDEN, HIDDEN))
        wqkv_l.append(jnp.concatenate([heads(wq), heads(wk), heads(wv)], axis=0))
        bqkv_l.append(jnp.zeros((3 * N_HEADS, 1, HEAD_DIM), jnp.float32))
        wo_l.append(w((HIDDEN, HIDDEN)).reshape(N_HEADS, HEAD_DIM, HIDDEN))
        bo_l.append(jnp.zeros((1, HIDDEN), jnp.float32))
        ln1_g_l.append(jnp.ones((1, HIDDEN), jnp.float32))
        ln1_b_l.append(jnp.zeros((1, HIDDEN), jnp.float32))
        w1_l.append(w((HIDDEN, INTERMEDIATE)))
        b1_l.append(jnp.zeros((1, INTERMEDIATE), jnp.float32))
        w2_l.append(w((INTERMEDIATE, HIDDEN)))
        b2_l.append(jnp.zeros((1, HIDDEN), jnp.float32))
        ln2_g_l.append(jnp.ones((1, HIDDEN), jnp.float32))
        ln2_b_l.append(jnp.zeros((1, HIDDEN), jnp.float32))

    params = {
        "word_emb": w((VOCAB, HIDDEN)),
        "pos_emb": w((MAX_POS, HIDDEN)),
        "type_emb": w((TYPE_VOCAB, HIDDEN)),
        "emb_ln_g": jnp.ones((1, HIDDEN), jnp.float32),
        "emb_ln_b": jnp.zeros((1, HIDDEN), jnp.float32),
        # layer weights stacked over L; matmul operands pre-cast to bf16
        # (halves weight DMA/VMEM, removes in-kernel f32->bf16 weight casts).
        "wqkv": jnp.stack(wqkv_l).astype(MATMUL_DTYPE),   # (L, 3*NH, H, DH)
        "bqkv": jnp.stack(bqkv_l),                        # (L, 3*NH, 1, DH)
        "wo": jnp.stack(wo_l).astype(MATMUL_DTYPE),       # (L, NH, DH, H)
        "bo": jnp.stack(bo_l),                            # (L, 1, H)
        "ln1_g": jnp.stack(ln1_g_l), "ln1_b": jnp.stack(ln1_b_l),
        "w1": jnp.stack(w1_l).astype(MATMUL_DTYPE), "b1": jnp.stack(b1_l),
        "w2": jnp.stack(w2_l).astype(MATMUL_DTYPE), "b2": jnp.stack(b2_l),
        "ln2_g": jnp.stack(ln2_g_l), "ln2_b": jnp.stack(ln2_b_l),
        "wp": w((HIDDEN, HIDDEN)).astype(MATMUL_DTYPE),
        "bp": jnp.zeros((1, HIDDEN), jnp.float32),
        "wc": w((HIDDEN, NUM_LABELS)).astype(MATMUL_DTYPE),
        "bc": jnp.zeros((1, NUM_LABELS), jnp.float32),
    }
    return params


# ---------------- forward pass (embedding gather + single fused kernel + CE) ----------------

def bert_forward(params, input_ids, labels):
    B, S = input_ids.shape

    # embeddings (word + position + token_type(=0)); gather left to XLA,
    # the embedding LayerNorm is done inside the fused kernel.
    tok = jnp.take(params["word_emb"], input_ids, axis=0)               # (B, S, H)
    pos = params["pos_emb"][:S][None, :, :]                             # (1, S, H)
    typ = params["type_emb"][0][None, None, :]                          # (1, 1, H)
    x = (tok + pos + typ).reshape(B * S, HIDDEN)                        # (B*S, H) f32

    H, I, NL, NH, DH = HIDDEN, INTERMEDIATE, NUM_LABELS, N_HEADS, HEAD_DIM

    logits3 = pl.pallas_call(
        _bert_fwd_kernel,
        out_shape=jax.ShapeDtypeStruct((B, 1, NL), jnp.float32),
        grid=(B,),                                                      # 2 parallel steps -> both TCs on v7x
        in_specs=[
            pl.BlockSpec((S, H), lambda b: (b, 0)),                     # this element's (S, H) slab
            _rep((1, H)), _rep((1, H)),                                 # emb LN
            _rep((N_LAYERS, 3 * NH, H, DH)), _rep((N_LAYERS, 3 * NH, 1, DH)),
            _rep((N_LAYERS, NH, DH, H)), _rep((N_LAYERS, 1, H)),
            _rep((N_LAYERS, 1, H)), _rep((N_LAYERS, 1, H)),             # ln1
            _rep((N_LAYERS, H, I)), _rep((N_LAYERS, 1, I)),             # w1, b1
            _rep((N_LAYERS, I, H)), _rep((N_LAYERS, 1, H)),             # w2, b2
            _rep((N_LAYERS, 1, H)), _rep((N_LAYERS, 1, H)),             # ln2
            _rep((H, H)), _rep((1, H)),                                 # pooler
            _rep((H, NL)), _rep((1, NL)),                               # classifier
        ],
        out_specs=pl.BlockSpec((1, 1, NL), lambda b: (b, 0, 0)),
        compiler_params=pltpu.CompilerParams(
            dimension_semantics=("parallel",)),
    )(x, params["emb_ln_g"], params["emb_ln_b"],
      params["wqkv"], params["bqkv"], params["wo"], params["bo"],
      params["ln1_g"], params["ln1_b"],
      params["w1"], params["b1"], params["w2"], params["b2"],
      params["ln2_g"], params["ln2_b"],
      params["wp"], params["bp"], params["wc"], params["bc"])

    logits = logits3[:, 0, :]                                           # (B, NUM_LABELS)

    # softmax cross-entropy over (B, NUM_LABELS) = 4 numbers: left to XLA
    # (cheaper than a padded scalar VMEM writeback, keeps the batch axis parallel).
    lse = jax.nn.logsumexp(logits, axis=-1)                             # (B,)
    picked = jnp.take_along_axis(logits, labels[:, None], axis=-1)[:, 0]
    loss = jnp.mean(lse - picked)
    return loss, logits


if __name__ == "__main__":
    key = jax.random.PRNGKey(0)
    pkey, ikey, lkey = jax.random.split(key, 3)

    params = init_params(pkey)
    B, S = 2, 8
    input_ids = jax.random.randint(ikey, (B, S), 0, VOCAB, dtype=jnp.int32)
    labels = jax.random.randint(lkey, (B,), 0, NUM_LABELS, dtype=jnp.int32)

    loss, logits = jax.jit(bert_forward)(params, input_ids, labels)
    jax.block_until_ready((loss, logits))
    assert logits.shape == (B, NUM_LABELS) and loss.shape == ()
    print("KERNEL_OK")
</pallas_src>

<mosaic_0001>
module attributes {stable_mosaic.version = 11 : i64} {
  func.func @_bert_fwd_kernel(%arg0: i32, %arg1: memref<8x32xf32, #tpu.memory_space<vmem>>, %arg2: memref<1x32xf32, #tpu.memory_space<vmem>>, %arg3: memref<1x32xf32, #tpu.memory_space<vmem>>, %arg4: memref<2x6x32x16xbf16, #tpu.memory_space<vmem>>, %arg5: memref<2x6x1x16xf32, #tpu.memory_space<vmem>>, %arg6: memref<2x2x16x32xbf16, #tpu.memory_space<vmem>>, %arg7: memref<2x1x32xf32, #tpu.memory_space<vmem>>, %arg8: memref<2x1x32xf32, #tpu.memory_space<vmem>>, %arg9: memref<2x1x32xf32, #tpu.memory_space<vmem>>, %arg10: memref<2x32x64xbf16, #tpu.memory_space<vmem>>, %arg11: memref<2x1x64xf32, #tpu.memory_space<vmem>>, %arg12: memref<2x64x32xbf16, #tpu.memory_space<vmem>>, %arg13: memref<2x1x32xf32, #tpu.memory_space<vmem>>, %arg14: memref<2x1x32xf32, #tpu.memory_space<vmem>>, %arg15: memref<2x1x32xf32, #tpu.memory_space<vmem>>, %arg16: memref<32x32xbf16, #tpu.memory_space<vmem>>, %arg17: memref<1x32xf32, #tpu.memory_space<vmem>>, %arg18: memref<32x2xbf16, #tpu.memory_space<vmem>>, %arg19: memref<1x2xf32, #tpu.memory_space<vmem>>, %arg20: memref<1x1x2xf32, #tpu.memory_space<vmem>>) attributes {dimension_semantics = [#tpu.dimension_semantics<parallel>], iteration_bounds = array<i64: 2>, scalar_prefetch = 0 : i64, scratch_operands = 0 : i64, tpu.core_type = #tpu.core_type<tc>, window_params = [{transform_indices = @transform_0, window_bounds = array<i64: 8, 32>}, {pipeline_mode = #tpu.pipeline_mode<synchronous>, transform_indices = @transform_1, window_bounds = array<i64: 1, 32>}, {pipeline_mode = #tpu.pipeline_mode<synchronous>, transform_indices = @transform_2, window_bounds = array<i64: 1, 32>}, {pipeline_mode = #tpu.pipeline_mode<synchronous>, transform_indices = @transform_3, window_bounds = array<i64: 2, 6, 32, 16>}, {pipeline_mode = #tpu.pipeline_mode<synchronous>, transform_indices = @transform_4, window_bounds = array<i64: 2, 6, 1, 16>}, {pipeline_mode = #tpu.pipeline_mode<synchronous>, transform_indices = @transform_5, window_bounds = array<i64: 2, 2, 16, 32>}, {pipeline_mode = #tpu.pipeline_mode<synchronous>, transform_indices = @transform_6, window_bounds = array<i64: 2, 1, 32>}, {pipeline_mode = #tpu.pipeline_mode<synchronous>, transform_indices = @transform_7, window_bounds = array<i64: 2, 1, 32>}, {pipeline_mode = #tpu.pipeline_mode<synchronous>, transform_indices = @transform_8, window_bounds = array<i64: 2, 1, 32>}, {pipeline_mode = #tpu.pipeline_mode<synchronous>, transform_indices = @transform_9, window_bounds = array<i64: 2, 32, 64>}, {pipeline_mode = #tpu.pipeline_mode<synchronous>, transform_indices = @transform_10, window_bounds = array<i64: 2, 1, 64>}, {pipeline_mode = #tpu.pipeline_mode<synchronous>, transform_indices = @transform_11, window_bounds = array<i64: 2, 64, 32>}, {pipeline_mode = #tpu.pipeline_mode<synchronous>, transform_indices = @transform_12, window_bounds = array<i64: 2, 1, 32>}, {pipeline_mode = #tpu.pipeline_mode<synchronous>, transform_indices = @transform_13, window_bounds = array<i64: 2, 1, 32>}, {pipeline_mode = #tpu.pipeline_mode<synchronous>, transform_indices = @transform_14, window_bounds = array<i64: 2, 1, 32>}, {pipeline_mode = #tpu.pipeline_mode<synchronous>, transform_indices = @transform_15, window_bounds = array<i64: 32, 32>}, {pipeline_mode = #tpu.pipeline_mode<synchronous>, transform_indices = @transform_16, window_bounds = array<i64: 1, 32>}, {pipeline_mode = #tpu.pipeline_mode<synchronous>, transform_indices = @transform_17, window_bounds = array<i64: 32, 2>}, {pipeline_mode = #tpu.pipeline_mode<synchronous>, transform_indices = @transform_18, window_bounds = array<i64: 1, 2>}, {transform_indices = @transform_19, window_bounds = array<i64: 1, 1, 2>}]} {
    %c0 = arith.constant 0 : index
    %c0_0 = arith.constant 0 : index
    %0 = vector.load %arg1[%c0, %c0_0] : memref<8x32xf32, #tpu.memory_space<vmem>>, vector<8x32xf32>
    %c0_1 = arith.constant 0 : index
    %c0_2 = arith.constant 0 : index
    %1 = vector.load %arg2[%c0_1, %c0_2] : memref<1x32xf32, #tpu.memory_space<vmem>>, vector<1x32xf32>
    %c0_3 = arith.constant 0 : index
    %c0_4 = arith.constant 0 : index
    %2 = vector.load %arg3[%c0_3, %c0_4] : memref<1x32xf32, #tpu.memory_space<vmem>>, vector<1x32xf32>
    %cst = arith.constant dense<0.000000e+00> : vector<8xf32>
    %3 = vector.multi_reduction <add>, %0, %cst [1] : vector<8x32xf32> to vector<8xf32>
    %4 = vector.shape_cast %3 : vector<8xf32> to vector<8x1xf32>
    %cst_5 = arith.constant 3.200000e+01 : f32
    %5 = vector.broadcast %cst_5 : f32 to vector<8x1xf32>
    %6 = arith.divf %4, %5 : vector<8x1xf32>
    %7 = vector.broadcast %6 : vector<8x1xf32> to vector<8x32xf32>
    %8 = arith.subf %0, %7 : vector<8x32xf32>
    %9 = vector.broadcast %6 : vector<8x1xf32> to vector<8x32xf32>
    %10 = arith.subf %0, %9 : vector<8x32xf32>
    %11 = arith.mulf %8, %10 : vector<8x32xf32>
    %cst_6 = arith.constant dense<0.000000e+00> : vector<8xf32>
    %12 = vector.multi_reduction <add>, %11, %cst_6 [1] : vector<8x32xf32> to vector<8xf32>
    %13 = vector.shape_cast %12 : vector<8xf32> to vector<8x1xf32>
    %cst_7 = arith.constant 3.200000e+01 : f32
    %14 = vector.broadcast %cst_7 : f32 to vector<8x1xf32>
    %15 = arith.divf %13, %14 : vector<8x1xf32>
    %cst_8 = arith.constant 9.99999996E-13 : f32
    %16 = vector.broadcast %cst_8 : f32 to vector<8x1xf32>
    %17 = arith.addf %15, %16 : vector<8x1xf32>
    %18 = math.rsqrt %17 : vector<8x1xf32>
    %19 = vector.broadcast %6 : vector<8x1xf32> to vector<8x32xf32>
    %20 = arith.subf %0, %19 : vector<8x32xf32>
    %21 = vector.broadcast %18 : vector<8x1xf32> to vector<8x32xf32>
    %22 = arith.mulf %20, %21 : vector<8x32xf32>
    %23 = vector.broadcast %1 : vector<1x32xf32> to vector<8x32xf32>
    %24 = arith.mulf %22, %23 : vector<8x32xf32>
    %25 = vector.broadcast %2 : vector<1x32xf32> to vector<8x32xf32>
    %26 = arith.addf %24, %25 : vector<8x32xf32>
    %27 = arith.truncf %26 : vector<8x32xf32> to vector<8x32xbf16>
    %28 = vector.shape_cast %27 : vector<8x32xbf16> to vector<1x8x32xbf16>
    %29 = vector.shape_cast %28 : vector<1x8x32xbf16> to vector<1x8x32xbf16>
    %30 = vector.broadcast %29 : vector<1x8x32xbf16> to vector<6x8x32xbf16>
    %c0_9 = arith.constant 0 : index
    %c0_10 = arith.constant 0 : index
    %c0_11 = arith.constant 0 : index
    %c0_12 = arith.constant 0 : index
    %31 = vector.load %arg4[%c0_9, %c0_10, %c0_11, %c0_12] : memref<2x6x32x16xbf16, #tpu.memory_space<vmem>>, vector<1x6x32x16xbf16>
    %32 = vector.shape_cast %31 : vector<1x6x32x16xbf16> to vector<6x32x16xbf16>
    "tpu.trace_start"() <{level = 10 : i32, message = "xsd,xde->xse"}> : () -> ()
    %cst_13 = arith.constant dense<0.000000e+00> : vector<6x8x16xf32>
    %33 = tpu.matmul %30, %32, %cst_13 {dimension_numbers = #tpu.dot_dimension_numbers<[2], [1], [1], [2], [0, 0, 0, 1, 1, 2], [0], [0]>} : vector<6x8x32xbf16>, vector<6x32x16xbf16>, vector<6x8x16xf32> -> vector<6x8x16xf32>
    "tpu.trace_stop"() : () -> ()
    %c0_14 = arith.constant 0 : index
    %c0_15 = arith.constant 0 : index
    %c0_16 = arith.constant 0 : index
    %c0_17 = arith.constant 0 : index
    %34 = vector.load %arg5[%c0_14, %c0_15, %c0_16, %c0_17] : memref<2x6x1x16xf32, #tpu.memory_space<vmem>>, vector<1x6x1x16xf32>
    %35 = vector.shape_cast %34 : vector<1x6x1x16xf32> to vector<6x1x16xf32>
    %36 = vector.broadcast %35 : vector<6x1x16xf32> to vector<6x8x16xf32>
    %37 = arith.addf %33, %36 : vector<6x8x16xf32>
    %38 = vector.extract_strided_slice %37 {offsets = [0, 0, 0], sizes = [2, 8, 16], strides = [1, 1, 1]} : vector<6x8x16xf32> to vector<2x8x16xf32>
    %39 = vector.extract_strided_slice %37 {offsets = [2, 0, 0], sizes = [2, 8, 16], strides = [1, 1, 1]} : vector<6x8x16xf32> to vector<2x8x16xf32>
    %40 = vector.extract_strided_slice %37 {offsets = [4, 0, 0], sizes = [2, 8, 16], strides = [1, 1, 1]} : vector<6x8x16xf32> to vector<2x8x16xf32>
    %41 = arith.truncf %38 : vector<2x8x16xf32> to vector<2x8x16xbf16>
    %42 = arith.truncf %39 : vector<2x8x16xf32> to vector<2x8x16xbf16>
    "tpu.trace_start"() <{level = 10 : i32, message = "hqe,hke->hqk"}> : () -> ()
    %cst_18 = arith.constant dense<0.000000e+00> : vector<2x8x8xf32>
    %43 = tpu.matmul %41, %42, %cst_18 {dimension_numbers = #tpu.dot_dimension_numbers<[2], [2], [1], [1], [0, 0, 0, 1, 1, 1], [0], [0]>} : vector<2x8x16xbf16>, vector<2x8x16xbf16>, vector<2x8x8xf32> -> vector<2x8x8xf32>
    "tpu.trace_stop"() : () -> ()
    %cst_19 = arith.constant dense<0xFF800000> : vector<2x8xf32>
    %44 = vector.multi_reduction <maximumf>, %43, %cst_19 [2] : vector<2x8x8xf32> to vector<2x8xf32>
    %45 = vector.shape_cast %44 : vector<2x8xf32> to vector<2x8x1xf32>
    %46 = vector.broadcast %45 : vector<2x8x1xf32> to vector<2x8x8xf32>
    %47 = arith.subf %43, %46 : vector<2x8x8xf32>
    %48 = math.exp %47 : vector<2x8x8xf32>
    %cst_20 = arith.constant dense<0.000000e+00> : vector<2x8xf32>
    %49 = vector.multi_reduction <add>, %48, %cst_20 [2] : vector<2x8x8xf32> to vector<2x8xf32>
    %50 = vector.shape_cast %49 : vector<2x8xf32> to vector<2x8x1xf32>
    %51 = tpu.reciprocal %50 {approx = true} : vector<2x8x1xf32> -> vector<2x8x1xf32>
    %52 = vector.broadcast %51 : vector<2x8x1xf32> to vector<2x8x8xf32>
    %53 = arith.mulf %48, %52 : vector<2x8x8xf32>
    %54 = arith.truncf %53 : vector<2x8x8xf32> to vector<2x8x8xbf16>
    %55 = arith.truncf %40 : vector<2x8x16xf32> to vector<2x8x16xbf16>
    "tpu.trace_start"() <{level = 10 : i32, message = "hqk,hke->hqe"}> : () -> ()
    %cst_21 = arith.constant dense<0.000000e+00> : vector<2x8x16xf32>
    %56 = tpu.matmul %54, %55, %cst_21 {dimension_numbers = #tpu.dot_dimension_numbers<[2], [1], [1], [2], [0, 0, 0, 1, 1, 2], [0], [0]>} : vector<2x8x8xbf16>, vector<2x8x16xbf16>, vector<2x8x16xf32> -> vector<2x8x16xf32>
    "tpu.trace_stop"() : () -> ()
    %57 = arith.truncf %56 : vector<2x8x16xf32> to vector<2x8x16xbf16>
    %c0_22 = arith.constant 0 : index
    %c0_23 = arith.constant 0 : index
    %c0_24 = arith.constant 0 : index
    %c0_25 = arith.constant 0 : index
    %58 = vector.load %arg6[%c0_22, %c0_23, %c0_24, %c0_25] : memref<2x2x16x32xbf16, #tpu.memory_space<vmem>>, vector<1x2x16x32xbf16>
    %59 = vector.shape_cast %58 : vector<1x2x16x32xbf16> to vector<2x16x32xbf16>
    "tpu.trace_start"() <{level = 10 : i32, message = "hqe,heo->hqo"}> : () -> ()
    %cst_26 = arith.constant dense<0.000000e+00> : vector<2x8x32xf32>
    %60 = tpu.matmul %57, %59, %cst_26 {dimension_numbers = #tpu.dot_dimension_numbers<[2], [1], [1], [2], [0, 0, 0, 1, 1, 2], [0], [0]>} : vector<2x8x16xbf16>, vector<2x16x32xbf16>, vector<2x8x32xf32> -> vector<2x8x32xf32>
    "tpu.trace_stop"() : () -> ()
    %cst_27 = arith.constant dense<0.000000e+00> : vector<8x32xf32>
    %61 = vector.multi_reduction <add>, %60, %cst_27 [0] : vector<2x8x32xf32> to vector<8x32xf32>
    %c0_28 = arith.constant 0 : index
    %c0_29 = arith.constant 0 : index
    %c0_30 = arith.constant 0 : index
    %62 = vector.load %arg7[%c0_28, %c0_29, %c0_30] : memref<2x1x32xf32, #tpu.memory_space<vmem>>, vector<1x1x32xf32>
    %63 = vector.shape_cast %62 : vector<1x1x32xf32> to vector<1x32xf32>
    %64 = vector.broadcast %63 : vector<1x32xf32> to vector<8x32xf32>
    %65 = arith.addf %61, %64 : vector<8x32xf32>
    %66 = arith.addf %26, %65 : vector<8x32xf32>
    %c0_31 = arith.constant 0 : index
    %c0_32 = arith.constant 0 : index
    %c0_33 = arith.constant 0 : index
    %67 = vector.load %arg8[%c0_31, %c0_32, %c0_33] : memref<2x1x32xf32, #tpu.memory_space<vmem>>, vector<1x1x32xf32>
    %68 = vector.shape_cast %67 : vector<1x1x32xf32> to vector<1x32xf32>
    %c0_34 = arith.constant 0 : index
    %c0_35 = arith.constant 0 : index
    %c0_36 = arith.constant 0 : index
    %69 = vector.load %arg9[%c0_34, %c0_35, %c0_36] : memref<2x1x32xf32, #tpu.memory_space<vmem>>, vector<1x1x32xf32>
    %70 = vector.shape_cast %69 : vector<1x1x32xf32> to vector<1x32xf32>
    %cst_37 = arith.constant dense<0.000000e+00> : vector<8xf32>
    %71 = vector.multi_reduction <add>, %66, %cst_37 [1] : vector<8x32xf32> to vector<8xf32>
    %72 = vector.shape_cast %71 : vector<8xf32> to vector<8x1xf32>
    %cst_38 = arith.constant 3.200000e+01 : f32
    %73 = vector.broadcast %cst_38 : f32 to vector<8x1xf32>
    %74 = arith.divf %72, %73 : vector<8x1xf32>
    %75 = vector.broadcast %74 : vector<8x1xf32> to vector<8x32xf32>
    %76 = arith.subf %66, %75 : vector<8x32xf32>
    %77 = vector.broadcast %74 : vector<8x1xf32> to vector<8x32xf32>
    %78 = arith.subf %66, %77 : vector<8x32xf32>
    %79 = arith.mulf %76, %78 : vector<8x32xf32>
    %cst_39 = arith.constant dense<0.000000e+00> : vector<8xf32>
    %80 = vector.multi_reduction <add>, %79, %cst_39 [1] : vector<8x32xf32> to vector<8xf32>
    %81 = vector.shape_cast %80 : vector<8xf32> to vector<8x1xf32>
    %cst_40 = arith.constant 3.200000e+01 : f32
    %82 = vector.broadcast %cst_40 : f32 to vector<8x1xf32>
    %83 = arith.divf %81, %82 : vector<8x1xf32>
    %cst_41 = arith.constant 9.99999996E-13 : f32
    %84 = vector.broadcast %cst_41 : f32 to vector<8x1xf32>
    %85 = arith.addf %83, %84 : vector<8x1xf32>
    %86 = math.rsqrt %85 : vector<8x1xf32>
    %87 = vector.broadcast %74 : vector<8x1xf32> to vector<8x32xf32>
    %88 = arith.subf %66, %87 : vector<8x32xf32>
    %89 = vector.broadcast %86 : vector<8x1xf32> to vector<8x32xf32>
    %90 = arith.mulf %88, %89 : vector<8x32xf32>
    %91 = vector.broadcast %68 : vector<1x32xf32> to vector<8x32xf32>
    %92 = arith.mulf %90, %91 : vector<8x32xf32>
    %93 = vector.broadcast %70 : vector<1x32xf32> to vector<8x32xf32>
    %94 = arith.addf %92, %93 : vector<8x32xf32>
    %c0_42 = arith.constant 0 : index
    %c0_43 = arith.constant 0 : index
    %c0_44 = arith.constant 0 : index
    %95 = vector.load %arg10[%c0_42, %c0_43, %c0_44] : memref<2x32x64xbf16, #tpu.memory_space<vmem>>, vector<1x32x64xbf16>
    %96 = vector.shape_cast %95 : vector<1x32x64xbf16> to vector<32x64xbf16>
    %97 = arith.truncf %94 : vector<8x32xf32> to vector<8x32xbf16>
    %cst_45 = arith.constant dense<0.000000e+00> : vector<8x64xf32>
    %98 = tpu.matmul %97, %96, %cst_45 {dimension_numbers = #tpu.dot_dimension_numbers<[1], [0], [0], [1], [0, 0, 1, 1], [], []>} : vector<8x32xbf16>, vector<32x64xbf16>, vector<8x64xf32> -> vector<8x64xf32>
    %c0_46 = arith.constant 0 : index
    %c0_47 = arith.constant 0 : index
    %c0_48 = arith.constant 0 : index
    %99 = vector.load %arg11[%c0_46, %c0_47, %c0_48] : memref<2x1x64xf32, #tpu.memory_space<vmem>>, vector<1x1x64xf32>
    %100 = vector.shape_cast %99 : vector<1x1x64xf32> to vector<1x64xf32>
    %101 = vector.broadcast %100 : vector<1x64xf32> to vector<8x64xf32>
    %102 = arith.addf %98, %101 : vector<8x64xf32>
    %cst_49 = arith.constant 5.000000e-01 : f32
    %103 = vector.broadcast %cst_49 : f32 to vector<8x64xf32>
    %104 = arith.mulf %103, %102 : vector<8x64xf32>
    %cst_50 = arith.constant 4.471500e-02 : f32
    %105 = vector.broadcast %cst_50 : f32 to vector<8x64xf32>
    %106 = arith.mulf %105, %102 : vector<8x64xf32>
    %107 = arith.mulf %106, %102 : vector<8x64xf32>
    %108 = arith.mulf %107, %102 : vector<8x64xf32>
    %109 = arith.addf %102, %108 : vector<8x64xf32>
    %cst_51 = arith.constant 0.797884583 : f32
    %110 = vector.broadcast %cst_51 : f32 to vector<8x64xf32>
    %111 = arith.mulf %110, %109 : vector<8x64xf32>
    %112 = math.tanh %111 : vector<8x64xf32>
    %cst_52 = arith.constant 1.000000e+00 : f32
    %113 = vector.broadcast %cst_52 : f32 to vector<8x64xf32>
    %114 = arith.addf %113, %112 : vector<8x64xf32>
    %115 = arith.mulf %104, %114 : vector<8x64xf32>
    %c0_53 = arith.constant 0 : index
    %c0_54 = arith.constant 0 : index
    %c0_55 = arith.constant 0 : index
    %116 = vector.load %arg12[%c0_53, %c0_54, %c0_55] : memref<2x64x32xbf16, #tpu.memory_space<vmem>>, vector<1x64x32xbf16>
    %117 = vector.shape_cast %116 : vector<1x64x32xbf16> to vector<64x32xbf16>
    %118 = arith.truncf %115 : vector<8x64xf32> to vector<8x64xbf16>
    %cst_56 = arith.constant dense<0.000000e+00> : vector<8x32xf32>
    %119 = tpu.matmul %118, %117, %cst_56 {dimension_numbers = #tpu.dot_dimension_numbers<[1], [0], [0], [1], [0, 0, 1, 1], [], []>} : vector<8x64xbf16>, vector<64x32xbf16>, vector<8x32xf32> -> vector<8x32xf32>
    %c0_57 = arith.constant 0 : index
    %c0_58 = arith.constant 0 : index
    %c0_59 = arith.constant 0 : index
    %120 = vector.load %arg13[%c0_57, %c0_58, %c0_59] : memref<2x1x32xf32, #tpu.memory_space<vmem>>, vector<1x1x32xf32>
    %121 = vector.shape_cast %120 : vector<1x1x32xf32> to vector<1x32xf32>
    %122 = vector.broadcast %121 : vector<1x32xf32> to vector<8x32xf32>
    %123 = arith.addf %119, %122 : vector<8x32xf32>
    %124 = arith.addf %94, %123 : vector<8x32xf32>
    %c0_60 = arith.constant 0 : index
    %c0_61 = arith.constant 0 : index
    %c0_62 = arith.constant 0 : index
    %125 = vector.load %arg14[%c0_60, %c0_61, %c0_62] : memref<2x1x32xf32, #tpu.memory_space<vmem>>, vector<1x1x32xf32>
    %126 = vector.shape_cast %125 : vector<1x1x32xf32> to vector<1x32xf32>
    %c0_63 = arith.constant 0 : index
    %c0_64 = arith.constant 0 : index
    %c0_65 = arith.constant 0 : index
    %127 = vector.load %arg15[%c0_63, %c0_64, %c0_65] : memref<2x1x32xf32, #tpu.memory_space<vmem>>, vector<1x1x32xf32>
    %128 = vector.shape_cast %127 : vector<1x1x32xf32> to vector<1x32xf32>
    %cst_66 = arith.constant dense<0.000000e+00> : vector<8xf32>
    %129 = vector.multi_reduction <add>, %124, %cst_66 [1] : vector<8x32xf32> to vector<8xf32>
    %130 = vector.shape_cast %129 : vector<8xf32> to vector<8x1xf32>
    %cst_67 = arith.constant 3.200000e+01 : f32
    %131 = vector.broadcast %cst_67 : f32 to vector<8x1xf32>
    %132 = arith.divf %130, %131 : vector<8x1xf32>
    %133 = vector.broadcast %132 : vector<8x1xf32> to vector<8x32xf32>
    %134 = arith.subf %124, %133 : vector<8x32xf32>
    %135 = vector.broadcast %132 : vector<8x1xf32> to vector<8x32xf32>
    %136 = arith.subf %124, %135 : vector<8x32xf32>
    %137 = arith.mulf %134, %136 : vector<8x32xf32>
    %cst_68 = arith.constant dense<0.000000e+00> : vector<8xf32>
    %138 = vector.multi_reduction <add>, %137, %cst_68 [1] : vector<8x32xf32> to vector<8xf32>
    %139 = vector.shape_cast %138 : vector<8xf32> to vector<8x1xf32>
    %cst_69 = arith.constant 3.200000e+01 : f32
    %140 = vector.broadcast %cst_69 : f32 to vector<8x1xf32>
    %141 = arith.divf %139, %140 : vector<8x1xf32>
    %cst_70 = arith.constant 9.99999996E-13 : f32
    %142 = vector.broadcast %cst_70 : f32 to vector<8x1xf32>
    %143 = arith.addf %141, %142 : vector<8x1xf32>
    %144 = math.rsqrt %143 : vector<8x1xf32>
    %145 = vector.broadcast %132 : vector<8x1xf32> to vector<8x32xf32>
    %146 = arith.subf %124, %145 : vector<8x32xf32>
    %147 = vector.broadcast %144 : vector<8x1xf32> to vector<8x32xf32>
    %148 = arith.mulf %146, %147 : vector<8x32xf32>
    %149 = vector.broadcast %126 : vector<1x32xf32> to vector<8x32xf32>
    %150 = arith.mulf %148, %149 : vector<8x32xf32>
    %151 = vector.broadcast %128 : vector<1x32xf32> to vector<8x32xf32>
    %152 = arith.addf %150, %151 : vector<8x32xf32>
    %153 = arith.truncf %152 : vector<8x32xf32> to vector<8x32xbf16>
    %154 = vector.shape_cast %153 : vector<8x32xbf16> to vector<1x8x32xbf16>
    %155 = vector.shape_cast %154 : vector<1x8x32xbf16> to vector<1x8x32xbf16>
    %156 = vector.broadcast %155 : vector<1x8x32xbf16> to vector<6x8x32xbf16>
    %c1 = arith.constant 1 : index
    %c0_71 = arith.constant 0 : index
    %c0_72 = arith.constant 0 : index
    %c0_73 = arith.constant 0 : index
    %157 = vector.load %arg4[%c1, %c0_71, %c0_72, %c0_73] : memref<2x6x32x16xbf16, #tpu.memory_space<vmem>>, vector<1x6x32x16xbf16>
    %158 = vector.shape_cast %157 : vector<1x6x32x16xbf16> to vector<6x32x16xbf16>
    "tpu.trace_start"() <{level = 10 : i32, message = "xsd,xde->xse"}> : () -> ()
    %cst_74 = arith.constant dense<0.000000e+00> : vector<6x8x16xf32>
    %159 = tpu.matmul %156, %158, %cst_74 {dimension_numbers = #tpu.dot_dimension_numbers<[2], [1], [1], [2], [0, 0, 0, 1, 1, 2], [0], [0]>} : vector<6x8x32xbf16>, vector<6x32x16xbf16>, vector<6x8x16xf32> -> vector<6x8x16xf32>
    "tpu.trace_stop"() : () -> ()
    %c1_75 = arith.constant 1 : index
    %c0_76 = arith.constant 0 : index
    %c0_77 = arith.constant 0 : index
    %c0_78 = arith.constant 0 : index
    %160 = vector.load %arg5[%c1_75, %c0_76, %c0_77, %c0_78] : memref<2x6x1x16xf32, #tpu.memory_space<vmem>>, vector<1x6x1x16xf32>
    %161 = vector.shape_cast %160 : vector<1x6x1x16xf32> to vector<6x1x16xf32>
    %162 = vector.broadcast %161 : vector<6x1x16xf32> to vector<6x8x16xf32>
    %163 = arith.addf %159, %162 : vector<6x8x16xf32>
    %164 = vector.extract_strided_slice %163 {offsets = [0, 0, 0], sizes = [2, 8, 16], strides = [1, 1, 1]} : vector<6x8x16xf32> to vector<2x8x16xf32>
    %165 = vector.extract_strided_slice %163 {offsets = [2, 0, 0], sizes = [2, 8, 16], strides = [1, 1, 1]} : vector<6x8x16xf32> to vector<2x8x16xf32>
    %166 = vector.extract_strided_slice %163 {offsets = [4, 0, 0], sizes = [2, 8, 16], strides = [1, 1, 1]} : vector<6x8x16xf32> to vector<2x8x16xf32>
    %167 = arith.truncf %164 : vector<2x8x16xf32> to vector<2x8x16xbf16>
    %168 = arith.truncf %165 : vector<2x8x16xf32> to vector<2x8x16xbf16>
    "tpu.trace_start"() <{level = 10 : i32, message = "hqe,hke->hqk"}> : () -> ()
    %cst_79 = arith.constant dense<0.000000e+00> : vector<2x8x8xf32>
    %169 = tpu.matmul %167, %168, %cst_79 {dimension_numbers = #tpu.dot_dimension_numbers<[2], [2], [1], [1], [0, 0, 0, 1, 1, 1], [0], [0]>} : vector<2x8x16xbf16>, vector<2x8x16xbf16>, vector<2x8x8xf32> -> vector<2x8x8xf32>
    "tpu.trace_stop"() : () -> ()
    %cst_80 = arith.constant dense<0xFF800000> : vector<2x8xf32>
    %170 = vector.multi_reduction <maximumf>, %169, %cst_80 [2] : vector<2x8x8xf32> to vector<2x8xf32>
    %171 = vector.shape_cast %170 : vector<2x8xf32> to vector<2x8x1xf32>
    %172 = vector.broadcast %171 : vector<2x8x1xf32> to vector<2x8x8xf32>
    %173 = arith.subf %169, %172 : vector<2x8x8xf32>
    %174 = math.exp %173 : vector<2x8x8xf32>
    %cst_81 = arith.constant dense<0.000000e+00> : vector<2x8xf32>
    %175 = vector.multi_reduction <add>, %174, %cst_81 [2] : vector<2x8x8xf32> to vector<2x8xf32>
    %176 = vector.shape_cast %175 : vector<2x8xf32> to vector<2x8x1xf32>
    %177 = tpu.reciprocal %176 {approx = true} : vector<2x8x1xf32> -> vector<2x8x1xf32>
    %178 = vector.broadcast %177 : vector<2x8x1xf32> to vector<2x8x8xf32>
    %179 = arith.mulf %174, %178 : vector<2x8x8xf32>
    %180 = arith.truncf %179 : vector<2x8x8xf32> to vector<2x8x8xbf16>
    %181 = arith.truncf %166 : vector<2x8x16xf32> to vector<2x8x16xbf16>
    "tpu.trace_start"() <{level = 10 : i32, message = "hqk,hke->hqe"}> : () -> ()
    %cst_82 = arith.constant dense<0.000000e+00> : vector<2x8x16xf32>
    %182 = tpu.matmul %180, %181, %cst_82 {dimension_numbers = #tpu.dot_dimension_numbers<[2], [1], [1], [2], [0, 0, 0, 1, 1, 2], [0], [0]>} : vector<2x8x8xbf16>, vector<2x8x16xbf16>, vector<2x8x16xf32> -> vector<2x8x16xf32>
    "tpu.trace_stop"() : () -> ()
    %183 = arith.truncf %182 : vector<2x8x16xf32> to vector<2x8x16xbf16>
    %c1_83 = arith.constant 1 : index
    %c0_84 = arith.constant 0 : index
    %c0_85 = arith.constant 0 : index
    %c0_86 = arith.constant 0 : index
    %184 = vector.load %arg6[%c1_83, %c0_84, %c0_85, %c0_86] : memref<2x2x16x32xbf16, #tpu.memory_space<vmem>>, vector<1x2x16x32xbf16>
    %185 = vector.shape_cast %184 : vector<1x2x16x32xbf16> to vector<2x16x32xbf16>
    "tpu.trace_start"() <{level = 10 : i32, message = "hqe,heo->hqo"}> : () -> ()
    %cst_87 = arith.constant dense<0.000000e+00> : vector<2x8x32xf32>
    %186 = tpu.matmul %183, %185, %cst_87 {dimension_numbers = #tpu.dot_dimension_numbers<[2], [1], [1], [2], [0, 0, 0, 1, 1, 2], [0], [0]>} : vector<2x8x16xbf16>, vector<2x16x32xbf16>, vector<2x8x32xf32> -> vector<2x8x32xf32>
    "tpu.trace_stop"() : () -> ()
    %cst_88 = arith.constant dense<0.000000e+00> : vector<8x32xf32>
    %187 = vector.multi_reduction <add>, %186, %cst_88 [0] : vector<2x8x32xf32> to vector<8x32xf32>
    %c1_89 = arith.constant 1 : index
    %c0_90 = arith.constant 0 : index
    %c0_91 = arith.constant 0 : index
    %188 = vector.load %arg7[%c1_89, %c0_90, %c0_91] : memref<2x1x32xf32, #tpu.memory_space<vmem>>, vector<1x1x32xf32>
    %189 = vector.shape_cast %188 : vector<1x1x32xf32> to vector<1x32xf32>
    %190 = vector.broadcast %189 : vector<1x32xf32> to vector<8x32xf32>
    %191 = arith.addf %187, %190 : vector<8x32xf32>
    %192 = arith.addf %152, %191 : vector<8x32xf32>
    %c1_92 = arith.constant 1 : index
    %c0_93 = arith.constant 0 : index
    %c0_94 = arith.constant 0 : index
    %193 = vector.load %arg8[%c1_92, %c0_93, %c0_94] : memref<2x1x32xf32, #tpu.memory_space<vmem>>, vector<1x1x32xf32>
    %194 = vector.shape_cast %193 : vector<1x1x32xf32> to vector<1x32xf32>
    %c1_95 = arith.constant 1 : index
    %c0_96 = arith.constant 0 : index
    %c0_97 = arith.constant 0 : index
    %195 = vector.load %arg9[%c1_95, %c0_96, %c0_97] : memref<2x1x32xf32, #tpu.memory_space<vmem>>, vector<1x1x32xf32>
    %196 = vector.shape_cast %195 : vector<1x1x32xf32> to vector<1x32xf32>
    %cst_98 = arith.constant dense<0.000000e+00> : vector<8xf32>
    %197 = vector.multi_reduction <add>, %192, %cst_98 [1] : vector<8x32xf32> to vector<8xf32>
    %198 = vector.shape_cast %197 : vector<8xf32> to vector<8x1xf32>
    %cst_99 = arith.constant 3.200000e+01 : f32
    %199 = vector.broadcast %cst_99 : f32 to vector<8x1xf32>
    %200 = arith.divf %198, %199 : vector<8x1xf32>
    %201 = vector.broadcast %200 : vector<8x1xf32> to vector<8x32xf32>
    %202 = arith.subf %192, %201 : vector<8x32xf32>
    %203 = vector.broadcast %200 : vector<8x1xf32> to vector<8x32xf32>
    %204 = arith.subf %192, %203 : vector<8x32xf32>
    %205 = arith.mulf %202, %204 : vector<8x32xf32>
    %cst_100 = arith.constant dense<0.000000e+00> : vector<8xf32>
    %206 = vector.multi_reduction <add>, %205, %cst_100 [1] : vector<8x32xf32> to vector<8xf32>
    %207 = vector.shape_cast %206 : vector<8xf32> to vector<8x1xf32>
    %cst_101 = arith.constant 3.200000e+01 : f32
    %208 = vector.broadcast %cst_101 : f32 to vector<8x1xf32>
    %209 = arith.divf %207, %208 : vector<8x1xf32>
    %cst_102 = arith.constant 9.99999996E-13 : f32
    %210 = vector.broadcast %cst_102 : f32 to vector<8x1xf32>
    %211 = arith.addf %209, %210 : vector<8x1xf32>
    %212 = math.rsqrt %211 : vector<8x1xf32>
    %213 = vector.broadcast %200 : vector<8x1xf32> to vector<8x32xf32>
    %214 = arith.subf %192, %213 : vector<8x32xf32>
    %215 = vector.broadcast %212 : vector<8x1xf32> to vector<8x32xf32>
    %216 = arith.mulf %214, %215 : vector<8x32xf32>
    %217 = vector.broadcast %194 : vector<1x32xf32> to vector<8x32xf32>
    %218 = arith.mulf %216, %217 : vector<8x32xf32>
    %219 = vector.broadcast %196 : vector<1x32xf32> to vector<8x32xf32>
    %220 = arith.addf %218, %219 : vector<8x32xf32>
    %c1_103 = arith.constant 1 : index
    %c0_104 = arith.constant 0 : index
    %c0_105 = arith.constant 0 : index
    %221 = vector.load %arg10[%c1_103, %c0_104, %c0_105] : memref<2x32x64xbf16, #tpu.memory_space<vmem>>, vector<1x32x64xbf16>
    %222 = vector.shape_cast %221 : vector<1x32x64xbf16> to vector<32x64xbf16>
    %223 = arith.truncf %220 : vector<8x32xf32> to vector<8x32xbf16>
    %cst_106 = arith.constant dense<0.000000e+00> : vector<8x64xf32>
    %224 = tpu.matmul %223, %222, %cst_106 {dimension_numbers = #tpu.dot_dimension_numbers<[1], [0], [0], [1], [0, 0, 1, 1], [], []>} : vector<8x32xbf16>, vector<32x64xbf16>, vector<8x64xf32> -> vector<8x64xf32>
    %c1_107 = arith.constant 1 : index
    %c0_108 = arith.constant 0 : index
    %c0_109 = arith.constant 0 : index
    %225 = vector.load %arg11[%c1_107, %c0_108, %c0_109] : memref<2x1x64xf32, #tpu.memory_space<vmem>>, vector<1x1x64xf32>
    %226 = vector.shape_cast %225 : vector<1x1x64xf32> to vector<1x64xf32>
    %227 = vector.broadcast %226 : vector<1x64xf32> to vector<8x64xf32>
    %228 = arith.addf %224, %227 : vector<8x64xf32>
    %cst_110 = arith.constant 5.000000e-01 : f32
    %229 = vector.broadcast %cst_110 : f32 to vector<8x64xf32>
    %230 = arith.mulf %229, %228 : vector<8x64xf32>
    %cst_111 = arith.constant 4.471500e-02 : f32
    %231 = vector.broadcast %cst_111 : f32 to vector<8x64xf32>
    %232 = arith.mulf %231, %228 : vector<8x64xf32>
    %233 = arith.mulf %232, %228 : vector<8x64xf32>
    %234 = arith.mulf %233, %228 : vector<8x64xf32>
    %235 = arith.addf %228, %234 : vector<8x64xf32>
    %cst_112 = arith.constant 0.797884583 : f32
    %236 = vector.broadcast %cst_112 : f32 to vector<8x64xf32>
    %237 = arith.mulf %236, %235 : vector<8x64xf32>
    %238 = math.tanh %237 : vector<8x64xf32>
    %cst_113 = arith.constant 1.000000e+00 : f32
    %239 = vector.broadcast %cst_113 : f32 to vector<8x64xf32>
    %240 = arith.addf %239, %238 : vector<8x64xf32>
    %241 = arith.mulf %230, %240 : vector<8x64xf32>
    %c1_114 = arith.constant 1 : index
    %c0_115 = arith.constant 0 : index
    %c0_116 = arith.constant 0 : index
    %242 = vector.load %arg12[%c1_114, %c0_115, %c0_116] : memref<2x64x32xbf16, #tpu.memory_space<vmem>>, vector<1x64x32xbf16>
    %243 = vector.shape_cast %242 : vector<1x64x32xbf16> to vector<64x32xbf16>
    %244 = arith.truncf %241 : vector<8x64xf32> to vector<8x64xbf16>
    %cst_117 = arith.constant dense<0.000000e+00> : vector<8x32xf32>
    %245 = tpu.matmul %244, %243, %cst_117 {dimension_numbers = #tpu.dot_dimension_numbers<[1], [0], [0], [1], [0, 0, 1, 1], [], []>} : vector<8x64xbf16>, vector<64x32xbf16>, vector<8x32xf32> -> vector<8x32xf32>
    %c1_118 = arith.constant 1 : index
    %c0_119 = arith.constant 0 : index
    %c0_120 = arith.constant 0 : index
    %246 = vector.load %arg13[%c1_118, %c0_119, %c0_120] : memref<2x1x32xf32, #tpu.memory_space<vmem>>, vector<1x1x32xf32>
    %247 = vector.shape_cast %246 : vector<1x1x32xf32> to vector<1x32xf32>
    %248 = vector.broadcast %247 : vector<1x32xf32> to vector<8x32xf32>
    %249 = arith.addf %245, %248 : vector<8x32xf32>
    %250 = arith.addf %220, %249 : vector<8x32xf32>
    %c1_121 = arith.constant 1 : index
    %c0_122 = arith.constant 0 : index
    %c0_123 = arith.constant 0 : index
    %251 = vector.load %arg14[%c1_121, %c0_122, %c0_123] : memref<2x1x32xf32, #tpu.memory_space<vmem>>, vector<1x1x32xf32>
    %252 = vector.shape_cast %251 : vector<1x1x32xf32> to vector<1x32xf32>
    %c1_124 = arith.constant 1 : index
    %c0_125 = arith.constant 0 : index
    %c0_126 = arith.constant 0 : index
    %253 = vector.load %arg15[%c1_124, %c0_125, %c0_126] : memref<2x1x32xf32, #tpu.memory_space<vmem>>, vector<1x1x32xf32>
    %254 = vector.shape_cast %253 : vector<1x1x32xf32> to vector<1x32xf32>
    %cst_127 = arith.constant dense<0.000000e+00> : vector<8xf32>
    %255 = vector.multi_reduction <add>, %250, %cst_127 [1] : vector<8x32xf32> to vector<8xf32>
    %256 = vector.shape_cast %255 : vector<8xf32> to vector<8x1xf32>
    %cst_128 = arith.constant 3.200000e+01 : f32
    %257 = vector.broadcast %cst_128 : f32 to vector<8x1xf32>
    %258 = arith.divf %256, %257 : vector<8x1xf32>
    %259 = vector.broadcast %258 : vector<8x1xf32> to vector<8x32xf32>
    %260 = arith.subf %250, %259 : vector<8x32xf32>
    %261 = vector.broadcast %258 : vector<8x1xf32> to vector<8x32xf32>
    %262 = arith.subf %250, %261 : vector<8x32xf32>
    %263 = arith.mulf %260, %262 : vector<8x32xf32>
    %cst_129 = arith.constant dense<0.000000e+00> : vector<8xf32>
    %264 = vector.multi_reduction <add>, %263, %cst_129 [1] : vector<8x32xf32> to vector<8xf32>
    %265 = vector.shape_cast %264 : vector<8xf32> to vector<8x1xf32>
    %cst_130 = arith.constant 3.200000e+01 : f32
    %266 = vector.broadcast %cst_130 : f32 to vector<8x1xf32>
    %267 = arith.divf %265, %266 : vector<8x1xf32>
    %cst_131 = arith.constant 9.99999996E-13 : f32
    %268 = vector.broadcast %cst_131 : f32 to vector<8x1xf32>
    %269 = arith.addf %267, %268 : vector<8x1xf32>
    %270 = math.rsqrt %269 : vector<8x1xf32>
    %271 = vector.broadcast %258 : vector<8x1xf32> to vector<8x32xf32>
    %272 = arith.subf %250, %271 : vector<8x32xf32>
    %273 = vector.broadcast %270 : vector<8x1xf32> to vector<8x32xf32>
    %274 = arith.mulf %272, %273 : vector<8x32xf32>
    %275 = vector.broadcast %252 : vector<1x32xf32> to vector<8x32xf32>
    %276 = arith.mulf %274, %275 : vector<8x32xf32>
    %277 = vector.broadcast %254 : vector<1x32xf32> to vector<8x32xf32>
    %278 = arith.addf %276, %277 : vector<8x32xf32>
    %279 = vector.extract_strided_slice %278 {offsets = [0, 0], sizes = [1, 32], strides = [1, 1]} : vector<8x32xf32> to vector<1x32xf32>
    %c0_132 = arith.constant 0 : index
    %c0_133 = arith.constant 0 : index
    %280 = vector.load %arg16[%c0_132, %c0_133] : memref<32x32xbf16, #tpu.memory_space<vmem>>, vector<32x32xbf16>
    %281 = arith.truncf %279 : vector<1x32xf32> to vector<1x32xbf16>
    %cst_134 = arith.constant dense<0.000000e+00> : vector<1x32xf32>
    %282 = tpu.matmul %281, %280, %cst_134 {dimension_numbers = #tpu.dot_dimension_numbers<[1], [0], [0], [1], [0, 0, 1, 1], [], []>} : vector<1x32xbf16>, vector<32x32xbf16>, vector<1x32xf32> -> vector<1x32xf32>
    %c0_135 = arith.constant 0 : index
    %c0_136 = arith.constant 0 : index
    %283 = vector.load %arg17[%c0_135, %c0_136] : memref<1x32xf32, #tpu.memory_space<vmem>>, vector<1x32xf32>
    %284 = arith.addf %282, %283 : vector<1x32xf32>
    %285 = math.tanh %284 : vector<1x32xf32>
    %c0_137 = arith.constant 0 : index
    %c0_138 = arith.constant 0 : index
    %286 = vector.load %arg18[%c0_137, %c0_138] : memref<32x2xbf16, #tpu.memory_space<vmem>>, vector<32x2xbf16>
    %287 = arith.truncf %285 : vector<1x32xf32> to vector<1x32xbf16>
    %cst_139 = arith.constant dense<0.000000e+00> : vector<1x2xf32>
    %288 = tpu.matmul %287, %286, %cst_139 {dimension_numbers = #tpu.dot_dimension_numbers<[1], [0], [0], [1], [0, 0, 1, 1], [], []>} : vector<1x32xbf16>, vector<32x2xbf16>, vector<1x2xf32> -> vector<1x2xf32>
    %c0_140 = arith.constant 0 : index
    %c0_141 = arith.constant 0 : index
    %289 = vector.load %arg19[%c0_140, %c0_141] : memref<1x2xf32, #tpu.memory_space<vmem>>, vector<1x2xf32>
    %290 = arith.addf %288, %289 : vector<1x2xf32>
    %c0_142 = arith.constant 0 : index
    %c0_143 = arith.constant 0 : index
    %c0_144 = arith.constant 0 : index
    %291 = vector.load %arg20[%c0_142, %c0_143, %c0_144] : memref<1x1x2xf32, #tpu.memory_space<vmem>>, vector<1x1x2xf32>
    %292 = vector.shape_cast %291 : vector<1x1x2xf32> to vector<1x2xf32>
    %293 = vector.shape_cast %290 : vector<1x2xf32> to vector<1x1x2xf32>
    tpu.vector_store %arg20[%c0_142, %c0_143, %c0_144], %293 {strides = array<i32>} : memref<1x1x2xf32, #tpu.memory_space<vmem>>, vector<1x1x2xf32>,
    return
  }
  func.func @transform_0(%arg0: i32) -> (i32, i32) {
    %c0_i32 = arith.constant 0 : i32
    %c0_i32_0 = arith.constant 0 : i32
    return %arg0, %c0_i32 : i32, i32
  }
  func.func @transform_1(%arg0: i32) -> (i32, i32) {
    %c0_i32 = arith.constant 0 : i32
    %c0_i32_0 = arith.constant 0 : i32
    %c0_i32_1 = arith.constant 0 : i32
    return %c0_i32, %c0_i32_0 : i32, i32
  }
  func.func @transform_2(%arg0: i32) -> (i32, i32) {
    %c0_i32 = arith.constant 0 : i32
    %c0_i32_0 = arith.constant 0 : i32
    %c0_i32_1 = arith.constant 0 : i32
    return %c0_i32, %c0_i32_0 : i32, i32
  }
  func.func @transform_3(%arg0: i32) -> (i32, i32, i32, i32) {
    %c0_i32 = arith.constant 0 : i32
    %c0_i32_0 = arith.constant 0 : i32
    %c0_i32_1 = arith.constant 0 : i32
    %c0_i32_2 = arith.constant 0 : i32
    %c0_i32_3 = arith.constant 0 : i32
    return %c0_i32, %c0_i32_0, %c0_i32_1, %c0_i32_2 : i32, i32, i32, i32
  }
  func.func @transform_4(%arg0: i32) -> (i32, i32, i32, i32) {
    %c0_i32 = arith.constant 0 : i32
    %c0_i32_0 = arith.constant 0 : i32
    %c0_i32_1 = arith.constant 0 : i32
    %c0_i32_2 = arith.constant 0 : i32
    %c0_i32_3 = arith.constant 0 : i32
    return %c0_i32, %c0_i32_0, %c0_i32_1, %c0_i32_2 : i32, i32, i32, i32
  }
  func.func @transform_5(%arg0: i32) -> (i32, i32, i32, i32) {
    %c0_i32 = arith.constant 0 : i32
    %c0_i32_0 = arith.constant 0 : i32
    %c0_i32_1 = arith.constant 0 : i32
    %c0_i32_2 = arith.constant 0 : i32
    %c0_i32_3 = arith.constant 0 : i32
    return %c0_i32, %c0_i32_0, %c0_i32_1, %c0_i32_2 : i32, i32, i32, i32
  }
  func.func @transform_6(%arg0: i32) -> (i32, i32, i32) {
    %c0_i32 = arith.constant 0 : i32
    %c0_i32_0 = arith.constant 0 : i32
    %c0_i32_1 = arith.constant 0 : i32
    %c0_i32_2 = arith.constant 0 : i32
    return %c0_i32, %c0_i32_0, %c0_i32_1 : i32, i32, i32
  }
  func.func @transform_7(%arg0: i32) -> (i32, i32, i32) {
    %c0_i32 = arith.constant 0 : i32
    %c0_i32_0 = arith.constant 0 : i32
    %c0_i32_1 = arith.constant 0 : i32
    %c0_i32_2 = arith.constant 0 : i32
    return %c0_i32, %c0_i32_0, %c0_i32_1 : i32, i32, i32
  }
  func.func @transform_8(%arg0: i32) -> (i32, i32, i32) {
    %c0_i32 = arith.constant 0 : i32
    %c0_i32_0 = arith.constant 0 : i32
    %c0_i32_1 = arith.constant 0 : i32
    %c0_i32_2 = arith.constant 0 : i32
    return %c0_i32, %c0_i32_0, %c0_i32_1 : i32, i32, i32
  }
  func.func @transform_9(%arg0: i32) -> (i32, i32, i32) {
    %c0_i32 = arith.constant 0 : i32
    %c0_i32_0 = arith.constant 0 : i32
    %c0_i32_1 = arith.constant 0 : i32
    %c0_i32_2 = arith.constant 0 : i32
    return %c0_i32, %c0_i32_0, %c0_i32_1 : i32, i32, i32
  }
  func.func @transform_10(%arg0: i32) -> (i32, i32, i32) {
    %c0_i32 = arith.constant 0 : i32
    %c0_i32_0 = arith.constant 0 : i32
    %c0_i32_1 = arith.constant 0 : i32
    %c0_i32_2 = arith.constant 0 : i32
    return %c0_i32, %c0_i32_0, %c0_i32_1 : i32, i32, i32
  }
  func.func @transform_11(%arg0: i32) -> (i32, i32, i32) {
    %c0_i32 = arith.constant 0 : i32
    %c0_i32_0 = arith.constant 0 : i32
    %c0_i32_1 = arith.constant 0 : i32
    %c0_i32_2 = arith.constant 0 : i32
    return %c0_i32, %c0_i32_0, %c0_i32_1 : i32, i32, i32
  }
  func.func @transform_12(%arg0: i32) -> (i32, i32, i32) {
    %c0_i32 = arith.constant 0 : i32
    %c0_i32_0 = arith.constant 0 : i32
    %c0_i32_1 = arith.constant 0 : i32
    %c0_i32_2 = arith.constant 0 : i32
    return %c0_i32, %c0_i32_0, %c0_i32_1 : i32, i32, i32
  }
  func.func @transform_13(%arg0: i32) -> (i32, i32, i32) {
    %c0_i32 = arith.constant 0 : i32
    %c0_i32_0 = arith.constant 0 : i32
    %c0_i32_1 = arith.constant 0 : i32
    %c0_i32_2 = arith.constant 0 : i32
    return %c0_i32, %c0_i32_0, %c0_i32_1 : i32, i32, i32
  }
  func.func @transform_14(%arg0: i32) -> (i32, i32, i32) {
    %c0_i32 = arith.constant 0 : i32
    %c0_i32_0 = arith.constant 0 : i32
    %c0_i32_1 = arith.constant 0 : i32
    %c0_i32_2 = arith.constant 0 : i32
    return %c0_i32, %c0_i32_0, %c0_i32_1 : i32, i32, i32
  }
  func.func @transform_15(%arg0: i32) -> (i32, i32) {
    %c0_i32 = arith.constant 0 : i32
    %c0_i32_0 = arith.constant 0 : i32
    %c0_i32_1 = arith.constant 0 : i32
    return %c0_i32, %c0_i32_0 : i32, i32
  }
  func.func @transform_16(%arg0: i32) -> (i32, i32) {
    %c0_i32 = arith.constant 0 : i32
    %c0_i32_0 = arith.constant 0 : i32
    %c0_i32_1 = arith.constant 0 : i32
    return %c0_i32, %c0_i32_0 : i32, i32
  }
  func.func @transform_17(%arg0: i32) -> (i32, i32) {
    %c0_i32 = arith.constant 0 : i32
    %c0_i32_0 = arith.constant 0 : i32
    %c0_i32_1 = arith.constant 0 : i32
    return %c0_i32, %c0_i32_0 : i32, i32
  }
  func.func @transform_18(%arg0: i32) -> (i32, i32) {
    %c0_i32 = arith.constant 0 : i32
    %c0_i32_0 = arith.constant 0 : i32
    %c0_i32_1 = arith.constant 0 : i32
    return %c0_i32, %c0_i32_0 : i32, i32
  }
  func.func @transform_19(%arg0: i32) -> (i32, i32, i32) {
    %c0_i32 = arith.constant 0 : i32
    %c0_i32_0 = arith.constant 0 : i32
    %c0_i32_1 = arith.constant 0 : i32
    return %arg0, %c0_i32, %c0_i32_0 : i32, i32, i32
  }
}

</mosaic_0001>

<llo_original>
// kernel: bert_forward.1
$region0: #{bert_forward.1}
  #allocation0 [shape = 'u32[]', space=smem, size = 0x4, offset = 0x4, fixed_abs, tag = 'smem constant byte address 0x4 - core index']
  #allocation1 [shape = 'u32[144,128]{1,0:T(1,128)}', space=vmem, size = 0x12000, scoped, tag = 'internal scratch']
  %s0 = inlined_call_operand.vmem [shape: f32[16,32], index: 0, kind: input, shape index: {}]
  %s1 = inlined_call_operand.vmem [shape: f32[1,32], index: 1, kind: input, shape index: {}]
  %s2 = inlined_call_operand.vmem [shape: f32[1,32], index: 2, kind: input, shape index: {}]
  %s3 = inlined_call_operand.vmem [shape: bf16[2,6,32,16], index: 3, kind: input, shape index: {}]
  %s4 = inlined_call_operand.vmem [shape: f32[2,6,1,16], index: 4, kind: input, shape index: {}]
  %s5 = inlined_call_operand.vmem [shape: bf16[2,2,16,32], index: 5, kind: input, shape index: {}]
  %s6 = inlined_call_operand.vmem [shape: f32[2,1,32], index: 6, kind: input, shape index: {}]
  %s7 = inlined_call_operand.vmem [shape: f32[2,1,32], index: 7, kind: input, shape index: {}]
  %s8 = inlined_call_operand.vmem [shape: f32[2,1,32], index: 8, kind: input, shape index: {}]
  %s9 = inlined_call_operand.vmem [shape: bf16[2,32,64], index: 9, kind: input, shape index: {}]
  %s10 = inlined_call_operand.vmem [shape: f32[2,1,64], index: 10, kind: input, shape index: {}]
  %s11 = inlined_call_operand.vmem [shape: bf16[2,64,32], index: 11, kind: input, shape index: {}]
  %s12 = inlined_call_operand.vmem [shape: f32[2,1,32], index: 12, kind: input, shape index: {}]
  %s13 = inlined_call_operand.vmem [shape: f32[2,1,32], index: 13, kind: input, shape index: {}]
  %s14 = inlined_call_operand.vmem [shape: f32[2,1,32], index: 14, kind: input, shape index: {}]
  %s15 = inlined_call_operand.vmem [shape: bf16[32,32], index: 15, kind: input, shape index: {}]
  %s16 = inlined_call_operand.vmem [shape: f32[1,32], index: 16, kind: input, shape index: {}]
  %s17 = inlined_call_operand.vmem [shape: bf16[32,2], index: 17, kind: input, shape index: {}]
  %s18 = inlined_call_operand.vmem [shape: f32[1,2], index: 18, kind: input, shape index: {}]
  %s19 = inlined_call_operand.vmem [shape: f32[2,1,2], index: 19, kind: output, shape index: {}]
  %s20 = sld [smem:[#allocation0]]
  $region109: #{bert_forward.1} parent=0
    _
  %s22 = ssub.s32 1, %s20
  %s23 = scalar_select 0, %s22, %s20
  loop: start=0, step=1, limit=4
  $region2: #{bert_forward.1} parent=0 // loop_pre_header
    _
  $region3: #{bert_forward.1} parent=0 // loop_header
    %s25 = sphi 0, %s29
    %p26 = scmp.ge.s32.totalorder %s25, 4
    %s35 = sphi 0, %s37
    %s38 = sphi 0, %s35
    %s39 = sphi 0, %s38
    %s55 = sphi 0, %s39
    %s59 = sphi 0, %s59
    %s61 = sphi 0, %s59
    %s62 = sphi 0, %s61
    %s76 = sphi 0, %s62
    %s80 = sphi 0, %s80
    %s82 = sphi 0, %s80
    %s83 = sphi 0, %s82
    %s97 = sphi 0, %s83
    %s101 = sphi 0, %s101
    %s103 = sphi 0, %s101
    %s104 = sphi 0, %s103
    %s118 = sphi 0, %s104
    %s122 = sphi 0, %s122
    %s124 = sphi 0, %s122
    %s125 = sphi 0, %s124
    %s139 = sphi 0, %s125
    %s143 = sphi 0, %s143
    %s145 = sphi 0, %s143
    %s146 = sphi 0, %s145
    %s160 = sphi 0, %s146
    %s164 = sphi 0, %s164
    %s166 = sphi 0, %s164
    %s167 = sphi 0, %s166
    %s181 = sphi 0, %s167
    %s185 = sphi 0, %s185
    %s187 = sphi 0, %s185
    %s188 = sphi 0, %s187
    %s202 = sphi 0, %s188
    %s206 = sphi 0, %s206
    %s208 = sphi 0, %s206
    %s209 = sphi 0, %s208
    %s223 = sphi 0, %s209
    %s227 = sphi 0, %s227
    %s229 = sphi 0, %s227
    %s230 = sphi 0, %s229
    %s244 = sphi 0, %s230
    %s248 = sphi 0, %s248
    %s250 = sphi 0, %s248
    %s251 = sphi 0, %s250
    %s265 = sphi 0, %s251
    %s269 = sphi 0, %s269
    %s271 = sphi 0, %s269
    %s272 = sphi 0, %s271
    %s286 = sphi 0, %s272
    %s290 = sphi 0, %s290
    %s292 = sphi 0, %s290
    %s293 = sphi 0, %s292
    %s307 = sphi 0, %s293
    %s311 = sphi 0, %s311
    %s313 = sphi 0, %s311
    %s314 = sphi 0, %s313
    %s328 = sphi 0, %s314
    %s332 = sphi 0, %s332
    %s334 = sphi 0, %s332
    %s335 = sphi 0, %s334
    %s349 = sphi 0, %s335
    %s353 = sphi 0, %s353
    %s355 = sphi 0, %s353
    %s356 = sphi 0, %s355
    %s370 = sphi 0, %s356
    %s374 = sphi 0, %s374
    %s376 = sphi 0, %s374
    %s377 = sphi 0, %s376
    %s391 = sphi 0, %s377
    %s395 = sphi 0, %s395
    %s397 = sphi 0, %s395
    %s398 = sphi 0, %s397
    %s412 = sphi 0, %s398
    %s416 = sphi 0, %s416
    %s418 = sphi 0, %s416
    %s419 = sphi 0, %s418
    %s433 = sphi 0, %s419
    %s439 = sphi 0, %s441
    %s442 = sphi 0, %s439
    %s443 = sphi 0, %s442
    %s459 = sphi 0, %s443
  $region4: #{bert_forward.1} parent=0 // loop_header_branch
    %28 = sbr.rel (%p26) target = $region8
  $region5: #{bert_forward.1} parent=0 // loop_body
    %s30 = ssub.s32 %s25, 1
    %s31 = ssub.s32 %s25, 2
    %s32 = sadd.s32 %s25, 1
    %s33 = ssub.s32 %s25, %s32
    %p34 = scmp.eq.s32.totalorder %s33, 0
    %s36 = sadd.s32 %s35, 1
    %s37 = scalar_select %p34, %s35, %s36
    %p40 = pneg %p34
    %p41 = scmp.eq.s32.totalorder %s25, 1
    %p42 = por %p40, %p41
    %p43 = scmp.ne.s32.totalorder %s35, %s38
    %p44 = scmp.eq.s32.totalorder %s25, 0
    %p45 = por %p43, %p44
    %p46 = scmp.ne.s32.totalorder %s35, %s38
    %p47 = scmp.eq.s32.totalorder %s30, 1
    %p48 = por %p46, %p47
    %p49 = scmp.ne.s32.totalorder %s38, %s39
    %p50 = scmp.eq.s32.totalorder %s30, 0
    %p51 = por %p49, %p50
    %p52 = scmp.ne.s32.totalorder %s38, %s39
    %p53 = scmp.eq.s32.totalorder %s31, 1
    %p54 = por %p52, %p53
    %p56 = scmp.ne.s32.totalorder %s39, %s55
    %p57 = scmp.eq.s32.totalorder %s31, 0
    %p58 = por %p56, %p57
    %s60 = sadd.s32 %s59, 1
    %p63 = scmp.eq.s32.totalorder %s25, 1
    %p64 = scmp.ne.s32.totalorder %s59, %s61
    %p65 = scmp.eq.s32.totalorder %s25, 0
    %p66 = por %p64, %p65
    %p67 = scmp.ne.s32.totalorder %s59, %s61
    %p68 = scmp.eq.s32.totalorder %s30, 1
    %p69 = por %p67, %p68
    %p70 = scmp.ne.s32.totalorder %s61, %s62
    %p71 = scmp.eq.s32.totalorder %s30, 0
    %p72 = por %p70, %p71
    %p73 = scmp.ne.s32.totalorder %s61, %s62
    %p74 = scmp.eq.s32.totalorder %s31, 1
    %p75 = por %p73, %p74
    %p77 = scmp.ne.s32.totalorder %s62, %s76
    %p78 = scmp.eq.s32.totalorder %s31, 0
    %p79 = por %p77, %p78
    %s81 = sadd.s32 %s80, 1
    %p84 = scmp.eq.s32.totalorder %s25, 1
    %p85 = scmp.ne.s32.totalorder %s80, %s82
    %p86 = scmp.eq.s32.totalorder %s25, 0
    %p87 = por %p85, %p86
    %p88 = scmp.ne.s32.totalorder %s80, %s82
    %p89 = scmp.eq.s32.totalorder %s30, 1
    %p90 = por %p88, %p89
    %p91 = scmp.ne.s32.totalorder %s82, %s83
    %p92 = scmp.eq.s32.totalorder %s30, 0
    %p93 = por %p91, %p92
    %p94 = scmp.ne.s32.totalorder %s82, %s83
    %p95 = scmp.eq.s32.totalorder %s31, 1
    %p96 = por %p94, %p95
    %p98 = scmp.ne.s32.totalorder %s83, %s97
    %p99 = scmp.eq.s32.totalorder %s31, 0
    %p100 = por %p98, %p99
    %s102 = sadd.s32 %s101, 1
    %p105 = scmp.eq.s32.totalorder %s25, 1
    %p106 = scmp.ne.s32.totalorder %s101, %s103
    %p107 = scmp.eq.s32.totalorder %s25, 0
    %p108 = por %p106, %p107
    %p109 = scmp.ne.s32.totalorder %s101, %s103
    %p110 = scmp.eq.s32.totalorder %s30, 1
    %p111 = por %p109, %p110
    %p112 = scmp.ne.s32.totalorder %s103, %s104
    %p113 = scmp.eq.s32.totalorder %s30, 0
    %p114 = por %p112, %p113
    %p115 = scmp.ne.s32.totalorder %s103, %s104
    %p116 = scmp.eq.s32.totalorder %s31, 1
    %p117 = por %p115, %p116
    %p119 = scmp.ne.s32.totalorder %s104, %s118
    %p120 = scmp.eq.s32.totalorder %s31, 0
    %p121 = por %p119, %p120
    %s123 = sadd.s32 %s122, 1
    %p126 = scmp.eq.s32.totalorder %s25, 1
    %p127 = scmp.ne.s32.totalorder %s122, %s124
    %p128 = scmp.eq.s32.totalorder %s25, 0
    %p129 = por %p127, %p128
    %p130 = scmp.ne.s32.totalorder %s122, %s124
    %p131 = scmp.eq.s32.totalorder %s30, 1
    %p132 = por %p130, %p131
    %p133 = scmp.ne.s32.totalorder %s124, %s125
    %p134 = scmp.eq.s32.totalorder %s30, 0
    %p135 = por %p133, %p134
    %p136 = scmp.ne.s32.totalorder %s124, %s125
    %p137 = scmp.eq.s32.totalorder %s31, 1
    %p138 = por %p136, %p137
    %p140 = scmp.ne.s32.totalorder %s125, %s139
    %p141 = scmp.eq.s32.totalorder %s31, 0
    %p142 = por %p140, %p141
    %s144 = sadd.s32 %s143, 1
    %p147 = scmp.eq.s32.totalorder %s25, 1
    %p148 = scmp.ne.s32.totalorder %s143, %s145
    %p149 = scmp.eq.s32.totalorder %s25, 0
    %p150 = por %p148, %p149
    %p151 = scmp.ne.s32.totalorder %s143, %s145
    %p152 = scmp.eq.s32.totalorder %s30, 1
    %p153 = por %p151, %p152
    %p154 = scmp.ne.s32.totalorder %s145, %s146
    %p155 = scmp.eq.s32.totalorder %s30, 0
    %p156 = por %p154, %p155
    %p157 = scmp.ne.s32.totalorder %s145, %s146
    %p158 = scmp.eq.s32.totalorder %s31, 1
    %p159 = por %p157, %p158
    %p161 = scmp.ne.s32.totalorder %s146, %s160
    %p162 = scmp.eq.s32.totalorder %s31, 0
    %p163 = por %p161, %p162
    %s165 = sadd.s32 %s164, 1
    %p168 = scmp.eq.s32.totalorder %s25, 1
    %p169 = scmp.ne.s32.totalorder %s164, %s166
    %p170 = scmp.eq.s32.totalorder %s25, 0
    %p171 = por %p169, %p170
    %p172 = scmp.ne.s32.totalorder %s164, %s166
    %p173 = scmp.eq.s32.totalorder %s30, 1
    %p174 = por %p172, %p173
    %p175 = scmp.ne.s32.totalorder %s166, %s167
    %p176 = scmp.eq.s32.totalorder %s30, 0
    %p177 = por %p175, %p176
    %p178 = scmp.ne.s32.totalorder %s166, %s167
    %p179 = scmp.eq.s32.totalorder %s31, 1
    %p180 = por %p178, %p179
    %p182 = scmp.ne.s32.totalorder %s167, %s181
    %p183 = scmp.eq.s32.totalorder %s31, 0
    %p184 = por %p182, %p183
    %s186 = sadd.s32 %s185, 1
    %p189 = scmp.eq.s32.totalorder %s25, 1
    %p190 = scmp.ne.s32.totalorder %s185, %s187
    %p191 = scmp.eq.s32.totalorder %s25, 0
    %p192 = por %p190, %p191
    %p193 = scmp.ne.s32.totalorder %s185, %s187
    %p194 = scmp.eq.s32.totalorder %s30, 1
    %p195 = por %p193, %p194
    %p196 = scmp.ne.s32.totalorder %s187, %s188
    %p197 = scmp.eq.s32.totalorder %s30, 0
    %p198 = por %p196, %p197
    %p199 = scmp.ne.s32.totalorder %s187, %s188
    %p200 = scmp.eq.s32.totalorder %s31, 1
    %p201 = por %p199, %p200
    %p203 = scmp.ne.s32.totalorder %s188, %s202
    %p204 = scmp.eq.s32.totalorder %s31, 0
    %p205 = por %p203, %p204
    %s207 = sadd.s32 %s206, 1
    %p210 = scmp.eq.s32.totalorder %s25, 1
    %p211 = scmp.ne.s32.totalorder %s206, %s208
    %p212 = scmp.eq.s32.totalorder %s25, 0
    %p213 = por %p211, %p212
    %p214 = scmp.ne.s32.totalorder %s206, %s208
    %p215 = scmp.eq.s32.totalorder %s30, 1
    %p216 = por %p214, %p215
    %p217 = scmp.ne.s32.totalorder %s208, %s209
    %p218 = scmp.eq.s32.totalorder %s30, 0
    %p219 = por %p217, %p218
    %p220 = scmp.ne.s32.totalorder %s208, %s209
    %p221 = scmp.eq.s32.totalorder %s31, 1
    %p222 = por %p220, %p221
    %p224 = scmp.ne.s32.totalorder %s209, %s223
    %p225 = scmp.eq.s32.totalorder %s31, 0
    %p226 = por %p224, %p225
    %s228 = sadd.s32 %s227, 1
    %p231 = scmp.eq.s32.totalorder %s25, 1
    %p232 = scmp.ne.s32.totalorder %s227, %s229
    %p233 = scmp.eq.s32.totalorder %s25, 0
    %p234 = por %p232, %p233
    %p235 = scmp.ne.s32.totalorder %s227, %s229
    %p236 = scmp.eq.s32.totalorder %s30, 1
    %p237 = por %p235, %p236
    %p238 = scmp.ne.s32.totalorder %s229, %s230
    %p239 = scmp.eq.s32.totalorder %s30, 0
    %p240 = por %p238, %p239
    %p241 = scmp.ne.s32.totalorder %s229, %s230
    %p242 = scmp.eq.s32.totalorder %s31, 1
    %p243 = por %p241, %p242
    %p245 = scmp.ne.s32.totalorder %s230, %s244
    %p246 = scmp.eq.s32.totalorder %s31, 0
    %p247 = por %p245, %p246
    %s249 = sadd.s32 %s248, 1
    %p252 = scmp.eq.s32.totalorder %s25, 1
    %p253 = scmp.ne.s32.totalorder %s248, %s250
    %p254 = scmp.eq.s32.totalorder %s25, 0
    %p255 = por %p253, %p254
    %p256 = scmp.ne.s32.totalorder %s248, %s250
    %p257 = scmp.eq.s32.totalorder %s30, 1
    %p258 = por %p256, %p257
    %p259 = scmp.ne.s32.totalorder %s250, %s251
    %p260 = scmp.eq.s32.totalorder %s30, 0
    %p261 = por %p259, %p260
    %p262 = scmp.ne.s32.totalorder %s250, %s251
    %p263 = scmp.eq.s32.totalorder %s31, 1
    %p264 = por %p262, %p263
    %p266 = scmp.ne.s32.totalorder %s251, %s265
    %p267 = scmp.eq.s32.totalorder %s31, 0
    %p268 = por %p266, %p267
    %s270 = sadd.s32 %s269, 1
    %p273 = scmp.eq.s32.totalorder %s25, 1
    %p274 = scmp.ne.s32.totalorder %s269, %s271
    %p275 = scmp.eq.s32.totalorder %s25, 0
    %p276 = por %p274, %p275
    %p277 = scmp.ne.s32.totalorder %s269, %s271
    %p278 = scmp.eq.s32.totalorder %s30, 1
    %p279 = por %p277, %p278
    %p280 = scmp.ne.s32.totalorder %s271, %s272
    %p281 = scmp.eq.s32.totalorder %s30, 0
    %p282 = por %p280, %p281
    %p283 = scmp.ne.s32.totalorder %s271, %s272
    %p284 = scmp.eq.s32.totalorder %s31, 1
    %p285 = por %p283, %p284
    %p287 = scmp.ne.s32.totalorder %s272, %s286
    %p288 = scmp.eq.s32.totalorder %s31, 0
    %p289 = por %p287, %p288
    %s291 = sadd.s32 %s290, 1
    %p294 = scmp.eq.s32.totalorder %s25, 1
    %p295 = scmp.ne.s32.totalorder %s290, %s292
    %p296 = scmp.eq.s32.totalorder %s25, 0
    %p297 = por %p295, %p296
    %p298 = scmp.ne.s32.totalorder %s290, %s292
    %p299 = scmp.eq.s32.totalorder %s30, 1
    %p300 = por %p298, %p299
    %p301 = scmp.ne.s32.totalorder %s292, %s293
    %p302 = scmp.eq.s32.totalorder %s30, 0
    %p303 = por %p301, %p302
    %p304 = scmp.ne.s32.totalorder %s292, %s293
    %p305 = scmp.eq.s32.totalorder %s31, 1
    %p306 = por %p304, %p305
    %p308 = scmp.ne.s32.totalorder %s293, %s307
    %p309 = scmp.eq.s32.totalorder %s31, 0
    %p310 = por %p308, %p309
    %s312 = sadd.s32 %s311, 1
    %p315 = scmp.eq.s32.totalorder %s25, 1
    %p316 = scmp.ne.s32.totalorder %s311, %s313
    %p317 = scmp.eq.s32.totalorder %s25, 0
    %p318 = por %p316, %p317
    %p319 = scmp.ne.s32.totalorder %s311, %s313
    %p320 = scmp.eq.s32.totalorder %s30, 1
    %p321 = por %p319, %p320
    %p322 = scmp.ne.s32.totalorder %s313, %s314
    %p323 = scmp.eq.s32.totalorder %s30, 0
    %p324 = por %p322, %p323
    %p325 = scmp.ne.s32.totalorder %s313, %s314
    %p326 = scmp.eq.s32.totalorder %s31, 1
    %p327 = por %p325, %p326
    %p329 = scmp.ne.s32.totalorder %s314, %s328
    %p330 = scmp.eq.s32.totalorder %s31, 0
    %p331 = por %p329, %p330
    %s333 = sadd.s32 %s332, 1
    %p336 = scmp.eq.s32.totalorder %s25, 1
    %p337 = scmp.ne.s32.totalorder %s332, %s334
    %p338 = scmp.eq.s32.totalorder %s25, 0
    %p339 = por %p337, %p338
    %p340 = scmp.ne.s32.totalorder %s332, %s334
    %p341 = scmp.eq.s32.totalorder %s30, 1
    %p342 = por %p340, %p341
    %p343 = scmp.ne.s32.totalorder %s334, %s335
    %p344 = scmp.eq.s32.totalorder %s30, 0
    %p345 = por %p343, %p344
    %p346 = scmp.ne.s32.totalorder %s334, %s335
    %p347 = scmp.eq.s32.totalorder %s31, 1
    %p348 = por %p346, %p347
    %p350 = scmp.ne.s32.totalorder %s335, %s349
    %p351 = scmp.eq.s32.totalorder %s31, 0
    %p352 = por %p350, %p351
    %s354 = sadd.s32 %s353, 1
    %p357 = scmp.eq.s32.totalorder %s25, 1
    %p358 = scmp.ne.s32.totalorder %s353, %s355
    %p359 = scmp.eq.s32.totalorder %s25, 0
    %p360 = por %p358, %p359
    %p361 = scmp.ne.s32.totalorder %s353, %s355
    %p362 = scmp.eq.s32.totalorder %s30, 1
    %p363 = por %p361, %p362
    %p364 = scmp.ne.s32.totalorder %s355, %s356
    %p365 = scmp.eq.s32.totalorder %s30, 0
    %p366 = por %p364, %p365
    %p367 = scmp.ne.s32.totalorder %s355, %s356
    %p368 = scmp.eq.s32.totalorder %s31, 1
    %p369 = por %p367, %p368
    %p371 = scmp.ne.s32.totalorder %s356, %s370
    %p372 = scmp.eq.s32.totalorder %s31, 0
    %p373 = por %p371, %p372
    %s375 = sadd.s32 %s374, 1
    %p378 = scmp.eq.s32.totalorder %s25, 1
    %p379 = scmp.ne.s32.totalorder %s374, %s376
    %p380 = scmp.eq.s32.totalorder %s25, 0
    %p381 = por %p379, %p380
    %p382 = scmp.ne.s32.totalorder %s374, %s376
    %p383 = scmp.eq.s32.totalorder %s30, 1
    %p384 = por %p382, %p383
    %p385 = scmp.ne.s32.totalorder %s376, %s377
    %p386 = scmp.eq.s32.totalorder %s30, 0
    %p387 = por %p385, %p386
    %p388 = scmp.ne.s32.totalorder %s376, %s377
    %p389 = scmp.eq.s32.totalorder %s31, 1
    %p390 = por %p388, %p389
    %p392 = scmp.ne.s32.totalorder %s377, %s391
    %p393 = scmp.eq.s32.totalorder %s31, 0
    %p394 = por %p392, %p393
    %s396 = sadd.s32 %s395, 1
    %p399 = scmp.eq.s32.totalorder %s25, 1
    %p400 = scmp.ne.s32.totalorder %s395, %s397
    %p401 = scmp.eq.s32.totalorder %s25, 0
    %p402 = por %p400, %p401
    %p403 = scmp.ne.s32.totalorder %s395, %s397
    %p404 = scmp.eq.s32.totalorder %s30, 1
    %p405 = por %p403, %p404
    %p406 = scmp.ne.s32.totalorder %s397, %s398
    %p407 = scmp.eq.s32.totalorder %s30, 0
    %p408 = por %p406, %p407
    %p409 = scmp.ne.s32.totalorder %s397, %s398
    %p410 = scmp.eq.s32.totalorder %s31, 1
    %p411 = por %p409, %p410
    %p413 = scmp.ne.s32.totalorder %s398, %s412
    %p414 = scmp.eq.s32.totalorder %s31, 0
    %p415 = por %p413, %p414
    %s417 = sadd.s32 %s416, 1
    %p420 = scmp.eq.s32.totalorder %s25, 1
    %p421 = scmp.ne.s32.totalorder %s416, %s418
    %p422 = scmp.eq.s32.totalorder %s25, 0
    %p423 = por %p421, %p422
    %p424 = scmp.ne.s32.totalorder %s416, %s418
    %p425 = scmp.eq.s32.totalorder %s30, 1
    %p426 = por %p424, %p425
    %p427 = scmp.ne.s32.totalorder %s418, %s419
    %p428 = scmp.eq.s32.totalorder %s30, 0
    %p429 = por %p427, %p428
    %p430 = scmp.ne.s32.totalorder %s418, %s419
    %p431 = scmp.eq.s32.totalorder %s31, 1
    %p432 = por %p430, %p431
    %p434 = scmp.ne.s32.totalorder %s419, %s433
    %p435 = scmp.eq.s32.totalorder %s31, 0
    %p436 = por %p434, %p435
    %s437 = ssub.s32 %s25, %s32
    %p438 = scmp.eq.s32.totalorder %s437, 0
    %s440 = sadd.s32 %s439, 1
    %s441 = scalar_select %p438, %s439, %s440
    %p444 = pneg %p438
    %p445 = scmp.eq.s32.totalorder %s25, 1
    %p446 = por %p444, %p445
    %p447 = scmp.ne.s32.totalorder %s439, %s442
    %p448 = scmp.eq.s32.totalorder %s25, 0
    %p449 = por %p447, %p448
    %p450 = scmp.ne.s32.totalorder %s439, %s442
    %p451 = scmp.eq.s32.totalorder %s30, 1
    %p452 = por %p450, %p451
    %p453 = scmp.ne.s32.totalorder %s442, %s443
    %p454 = scmp.eq.s32.totalorder %s30, 0
    %p455 = por %p453, %p454
    %p456 = scmp.ne.s32.totalorder %s442, %s443
    %p457 = scmp.eq.s32.totalorder %s31, 1
    %p458 = por %p456, %p457
    %p460 = scmp.ne.s32.totalorder %s443, %s459
    %p461 = scmp.eq.s32.totalorder %s31, 0
    %p462 = por %p460, %p461
    %p463 = scmp.le.s32.totalorder 1, %s25
    %p464 = scmp.lt.s32.totalorder %s25, 3
    %p465 = pnand %p463, %p464
    %p466 = pneg %p465
    // Predicated region
    $region9: #{bert_forward.1} parent=5 // pred_check
      _
    $region10: #{bert_forward.1} parent=5 // pred_check_branch
      %468 = sbr.rel (%p465) target = $region12
    $region11: #{bert_forward.1} parent=5 // pred_region
      %s469 = ssub.s32 %s25, 1
      // Predicated region
      $region13: #{bert_forward.1} parent=11 // pred_check
        %p470 = pneg %p72
      $region14: #{bert_forward.1} parent=11 // pred_check_branch
        %472 = sbr.rel (%p470) target = $region16
      $region15: #{bert_forward.1} parent=11 // pred_region
        _
      $region16: #{bert_forward.1} parent=11 // pred_fallthru
        _
      // Predicated region
      $region17: #{bert_forward.1} parent=11 // pred_check
        %p473 = pneg %p93
      $region18: #{bert_forward.1} parent=11 // pred_check_branch
        %475 = sbr.rel (%p473) target = $region20
      $region19: #{bert_forward.1} parent=11 // pred_region
        _
      $region20: #{bert_forward.1} parent=11 // pred_fallthru
        _
      // Predicated region
      $region21: #{bert_forward.1} parent=11 // pred_check
        %p476 = pneg %p114
      $region22: #{bert_forward.1} parent=11 // pred_check_branch
        %478 = sbr.rel (%p476) target = $region24
      $region23: #{bert_forward.1} parent=11 // pred_region
        _
      $region24: #{bert_forward.1} parent=11 // pred_fallthru
        _
      // Predicated region
      $region25: #{bert_forward.1} parent=11 // pred_check
        %p479 = pneg %p135
      $region26: #{bert_forward.1} parent=11 // pred_check_branch
        %481 = sbr.rel (%p479) target = $region28
      $region27: #{bert_forward.1} parent=11 // pred_region
        _
      $region28: #{bert_forward.1} parent=11 // pred_fallthru
        _
      // Predicated region
      $region29: #{bert_forward.1} parent=11 // pred_check
        %p482 = pneg %p156
      $region30: #{bert_forward.1} parent=11 // pred_check_branch
        %484 = sbr.rel (%p482) target = $region32
      $region31: #{bert_forward.1} parent=11 // pred_region
        _
      $region32: #{bert_forward.1} parent=11 // pred_fallthru
        _
      // Predicated region
      $region33: #{bert_forward.1} parent=11 // pred_check
        %p485 = pneg %p177
      $region34: #{bert_forward.1} parent=11 // pred_check_branch
        %487 = sbr.rel (%p485) target = $region36
      $region35: #{bert_forward.1} parent=11 // pred_region
        _
      $region36: #{bert_forward.1} parent=11 // pred_fallthru
        _
      // Predicated region
      $region37: #{bert_forward.1} parent=11 // pred_check
        %p488 = pneg %p198
      $region38: #{bert_forward.1} parent=11 // pred_check_branch
        %490 = sbr.rel (%p488) target = $region40
      $region39: #{bert_forward.1} parent=11 // pred_region
        _
      $region40: #{bert_forward.1} parent=11 // pred_fallthru
        _
      // Predicated region
      $region41: #{bert_forward.1} parent=11 // pred_check
        %p491 = pneg %p219
      $region42: #{bert_forward.1} parent=11 // pred_check_branch
        %493 = sbr.rel (%p491) target = $region44
      $region43: #{bert_forward.1} parent=11 // pred_region
        _
      $region44: #{bert_forward.1} parent=11 // pred_fallthru
        _
      // Predicated region
      $region45: #{bert_forward.1} parent=11 // pred_check
        %p494 = pneg %p240
      $region46: #{bert_forward.1} parent=11 // pred_check_branch
        %496 = sbr.rel (%p494) target = $region48
      $region47: #{bert_forward.1} parent=11 // pred_region
        _
      $region48: #{bert_forward.1} parent=11 // pred_fallthru
        _
      // Predicated region
      $region49: #{bert_forward.1} parent=11 // pred_check
        %p497 = pneg %p261
      $region50: #{bert_forward.1} parent=11 // pred_check_branch
        %499 = sbr.rel (%p497) target = $region52
      $region51: #{bert_forward.1} parent=11 // pred_region
        _
      $region52: #{bert_forward.1} parent=11 // pred_fallthru
        _
      // Predicated region
      $region53: #{bert_forward.1} parent=11 // pred_check
        %p500 = pneg %p282
      $region54: #{bert_forward.1} parent=11 // pred_check_branch
        %502 = sbr.rel (%p500) target = $region56
      $region55: #{bert_forward.1} parent=11 // pred_region
        _
      $region56: #{bert_forward.1} parent=11 // pred_fallthru
        _
      // Predicated region
      $region57: #{bert_forward.1} parent=11 // pred_check
        %p503 = pneg %p303
      $region58: #{bert_forward.1} parent=11 // pred_check_branch
        %505 = sbr.rel (%p503) target = $region60
      $region59: #{bert_forward.1} parent=11 // pred_region
        _
      $region60: #{bert_forward.1} parent=11 // pred_fallthru
        _
      // Predicated region
      $region61: #{bert_forward.1} parent=11 // pred_check
        %p506 = pneg %p324
      $region62: #{bert_forward.1} parent=11 // pred_check_branch
        %508 = sbr.rel (%p506) target = $region64
      $region63: #{bert_forward.1} parent=11 // pred_region
        _
      $region64: #{bert_forward.1} parent=11 // pred_fallthru
        _
      // Predicated region
      $region65: #{bert_forward.1} parent=11 // pred_check
        %p509 = pneg %p345
      $region66: #{bert_forward.1} parent=11 // pred_check_branch
        %511 = sbr.rel (%p509) target = $region68
      $region67: #{bert_forward.1} parent=11 // pred_region
        _
      $region68: #{bert_forward.1} parent=11 // pred_fallthru
        _
      // Predicated region
      $region69: #{bert_forward.1} parent=11 // pred_check
        %p512 = pneg %p366
      $region70: #{bert_forward.1} parent=11 // pred_check_branch
        %514 = sbr.rel (%p512) target = $region72
      $region71: #{bert_forward.1} parent=11 // pred_region
        _
      $region72: #{bert_forward.1} parent=11 // pred_fallthru
        _
      // Predicated region
      $region73: #{bert_forward.1} parent=11 // pred_check
        %p515 = pneg %p387
      $region74: #{bert_forward.1} parent=11 // pred_check_branch
        %517 = sbr.rel (%p515) target = $region76
      $region75: #{bert_forward.1} parent=11 // pred_region
        _
      $region76: #{bert_forward.1} parent=11 // pred_fallthru
        _
      // Predicated region
      $region77: #{bert_forward.1} parent=11 // pred_check
        %p518 = pneg %p408
      $region78: #{bert_forward.1} parent=11 // pred_check_branch
        %520 = sbr.rel (%p518) target = $region80
      $region79: #{bert_forward.1} parent=11 // pred_region
        _
      $region80: #{bert_forward.1} parent=11 // pred_fallthru
        _
      // Predicated region
      $region81: #{bert_forward.1} parent=11 // pred_check
        %p521 = pneg %p429
      $region82: #{bert_forward.1} parent=11 // pred_check_branch
        %523 = sbr.rel (%p521) target = $region84
      $region83: #{bert_forward.1} parent=11 // pred_region
        _
      $region84: #{bert_forward.1} parent=11 // pred_fallthru
        _
    $region12: #{bert_forward.1} parent=5 // pred_fallthru
      _
    %p524 = scmp.lt.s32.totalorder %s25, 2
    // Predicated region
    $region85: #{bert_forward.1} parent=5 // pred_check
      %p525 = pneg %p524
    $region86: #{bert_forward.1} parent=5 // pred_check_branch
      %527 = sbr.rel (%p525) target = $region88
    $region87: #{bert_forward.1} parent=5 // pred_region
      // Predicated region
      $region89: #{bert_forward.1} parent=87 // pred_check
        %p528 = pneg %p45
      $region90: #{bert_forward.1} parent=87 // pred_check_branch
        %530 = sbr.rel (%p528) target = $region92
      $region91: #{bert_forward.1} parent=87 // pred_region
        %p531 = scmp.lt.s32.totalorder %s25, 1
        %s532 = scalar_select %p531, %s25, 1
        %s533 = smul.addr %s532, 8
        %s534 = scalar_lea.vmem %s0, %s533
      $region92: #{bert_forward.1} parent=87 // pred_fallthru
        _
    $region88: #{bert_forward.1} parent=5 // pred_fallthru
      _
    %p535 = scmp.le.s32.totalorder 1, %s25
    %p536 = scmp.lt.s32.totalorder %s25, 3
    %p537 = pnand %p535, %p536
    %p538 = pneg %p537
    // Predicated region
    $region93: #{bert_forward.1} parent=5 // pred_check
      _
    $region94: #{bert_forward.1} parent=5 // pred_check_branch
      %540 = sbr.rel (%p537) target = $region96
    $region95: #{bert_forward.1} parent=5 // pred_region
      %s541 = ssub.s32 %s25, 1
      %p542 = scmp.lt.s32.totalorder %s30, 1
      %s543 = scalar_select %p542, %s30, 1
      %s544 = smul.addr %s543, 8
      %s545 = scalar_lea.vmem %s0, %s544
      %p546 = pneg %p51
      %p547 = pneg %p48
      %p548 = pneg %p72
      %p549 = pneg %p69
      %p550 = pneg %p93
      %p551 = pneg %p90
      %p552 = pneg %p114
      %p553 = pneg %p111
      %p554 = pneg %p135
      %p555 = pneg %p132
      %p556 = pneg %p156
      %p557 = pneg %p153
      %p558 = pneg %p177
      %p559 = pneg %p174
      %p560 = pneg %p198
      %p561 = pneg %p195
      %p562 = pneg %p219
      %p563 = pneg %p216
      %p564 = pneg %p240
      %p565 = pneg %p237
      %p566 = pneg %p261
      %p567 = pneg %p258
      %p568 = pneg %p282
      %p569 = pneg %p279
      %p570 = pneg %p303
      %p571 = pneg %p300
      %p572 = pneg %p324
      %p573 = pneg %p321
      %p574 = pneg %p345
      %p575 = pneg %p342
      %p576 = pneg %p366
      %p577 = pneg %p363
      %p578 = pneg %p387
      %p579 = pneg %p384
      %p580 = pneg %p408
      %p581 = pneg %p405
      %p582 = pneg %p429
      %p583 = pneg %p426
      %p584 = pneg %p455
      %p585 = pneg %p452
      %p586 = scmp.lt.s32.totalorder %s30, 1
      %s587 = scalar_select %p586, %s30, 1
      %s588 = scalar_lea.vmem %s19, %s587
      %p589 = scmp.lt.s32.totalorder %s30, 1
      %s590 = scalar_select %p589, %s30, 1
      %s591 = smul.addr %s590, 8
      %s592 = scalar_lea.vmem %s0, %s591
      %p593 = scmp.lt.s32.totalorder %s30, 1
      %s594 = scalar_select %p593, %s30, 1
      %s595 = scalar_lea.vmem %s19, %s594
      %v597 = vld [vmem:[%s592] sm:$0xff]
      %v598 = vld [vmem:[%s1] sm:$0x1]
      %v599 = vld [vmem:[%s2] sm:$0x1]
      %vm600 = vcmask 261120
      %v601 = vsel %vm600, %v597, 0.0
      %602 = vadd.xlane.f32.xlu0 %v601
      %v603 = vpop.xlane.xlu0 %602
      %v604 = vrcp.pop 32.0
      %v605 = vmul.f32 %v603, %v604
      %v606 = vsub.f32 %v597, %v605
      %v607 = vmul.f32 %v606, %v606
      %v608 = vsel %vm600, %v607, 0.0
      %609 = vadd.xlane.f32.xlu0 %v608
      %v610 = vpop.xlane.xlu0 %609
      %v611 = vmul.f32 %v610, %v604
      %v612 = vadd.f32 %v611, 1e-12
      %v613 = vrsqrt.pop %v612
      %v614 = vmul.f32 %v606, %v613
      %v616 = vlaneseq
      %v617 = vshrl.u32 %v616, 7
      %v618 = vsub.s32 0, %v617
      %v619 = vrot.slane %v598, %v618
      %v621 = vmul.f32 %v614, %v619
      %v623 = vlaneseq
      %v624 = vshrl.u32 %v623, 7
      %v625 = vsub.s32 0, %v624
      %v626 = vrot.slane %v599, %v625
      %v628 = vadd.f32 %v621, %v626
      %v629 = vpack.c.bf16 %v628, %v628
      %v630 = vld [vmem:[%s3] sm:$0xf]
      %v631 = vld [vmem:[%s3 + $0x4] sm:$0xf]
      %v632 = vld [vmem:[%s3 + $0x8] sm:$0xf]
      %v633 = vld [vmem:[%s3 + $0xc] sm:$0xf]
      %v634 = vld [vmem:[%s3 + $0x10] sm:$0xf]
      %v635 = vld [vmem:[%s3 + $0x14] sm:$0xf]
      %v636 = vld [vmem:[%s3 + $0x18] sm:$0xf]
      %v637 = vld [vmem:[%s3 + $0x1c] sm:$0xf]
      %v638 = vld [vmem:[%s3 + $0x20] sm:$0xf]
      %v639 = vld [vmem:[%s3 + $0x24] sm:$0xf]
      %v640 = vld [vmem:[%s3 + $0x28] sm:$0xf]
      %v641 = vld [vmem:[%s3 + $0x2c] sm:$0xf]
      %v642 = vld [vmem:[%s3 + $0x30] sm:$0xf]
      %v643 = vld [vmem:[%s3 + $0x34] sm:$0xf]
      %v644 = vld [vmem:[%s3 + $0x38] sm:$0xf]
      %v645 = vld [vmem:[%s3 + $0x3c] sm:$0xf]
      %v646 = vld [vmem:[%s3 + $0x40] sm:$0xf]
      %v647 = vld [vmem:[%s3 + $0x44] sm:$0xf]
      %v648 = vld [vmem:[%s3 + $0x48] sm:$0xf]
      %v649 = vld [vmem:[%s3 + $0x4c] sm:$0xf]
      %v650 = vld [vmem:[%s3 + $0x50] sm:$0xf]
      %v651 = vld [vmem:[%s3 + $0x54] sm:$0xf]
      %v652 = vld [vmem:[%s3 + $0x58] sm:$0xf]
      %v653 = vld [vmem:[%s3 + $0x5c] sm:$0xf]
      %v654 = vld [vmem:[%s4] sm:$0x1]
      %v655 = vld [vmem:[%s4 + $0x1] sm:$0x1]
      %v656 = vld [vmem:[%s4 + $0x2] sm:$0x1]
      %v657 = vld [vmem:[%s4 + $0x3] sm:$0x1]
      %v658 = vld [vmem:[%s4 + $0x4] sm:$0x1]
      %v659 = vld [vmem:[%s4 + $0x5] sm:$0x1]
      %v666 = vlaneseq
      %v667 = vshrl.u32 %v666, 7
      %v668 = vsub.s32 0, %v667
      %v669 = vrot.slane %v654, %v668
      %v670 = vlaneseq
      %v671 = vshrl.u32 %v670, 7
      %v672 = vsub.s32 0, %v671
      %v673 = vrot.slane %v655, %v672
      %v674 = vlaneseq
      %v675 = vshrl.u32 %v674, 7
      %v676 = vsub.s32 0, %v675
      %v677 = vrot.slane %v656, %v676
      %v678 = vlaneseq
      %v679 = vshrl.u32 %v678, 7
      %v680 = vsub.s32 0, %v679
      %v681 = vrot.slane %v657, %v680
      %v682 = vlaneseq
      %v683 = vshrl.u32 %v682, 7
      %v684 = vsub.s32 0, %v683
      %v685 = vrot.slane %v658, %v684
      %v686 = vlaneseq
      %v687 = vshrl.u32 %v686, 7
      %v688 = vsub.s32 0, %v687
      %v689 = vrot.slane %v659, %v688
      %v700 = vunpack.c.l.b16 %v630
      %v701 = vunpack.c.l.b16 %v631
      %v702 = vunpack.c.l.b16 %v632
      %v703 = vunpack.c.l.b16 %v633
      %v704 = vpack.c.b16 %v701, %v700
      %v705 = vpack.c.b16 %v703, %v702
      %v709 = vsel %vm600, %v629, 0
      %711 = vmatprep.subr.bf16.mxu0 0
      %712 = vmatpush1.bf16.msra.mxu0 %v704
      %713 = vmatprep.subr.bf16.mxu0 0
      %714 = vmatpush1.bf16.msra.mxu0 %v705
      %715 = vmatprep.subr.bf16.mxu0 0
      %716 = vmatpush1.bf16.msra.mxu0 0
      %717 = vmatprep.subr.bf16.mxu0 0
      %718 = vmatpush1.bf16.msra.mxu0 0
      %719 = vmatprep.subr.bf16.mxu0 0
      %720 = vmatpush1.bf16.msra.mxu0 0
      %721 = vmatprep.subr.bf16.mxu0 0
      %722 = vmatpush1.bf16.msra.mxu0 0
      %723 = vmatprep.subr.bf16.mxu0 0
      %724 = vmatpush1.bf16.msra.mxu0 0
      %725 = vmatprep.subr.bf16.mxu0 0
      %726 = vmatpush1.bf16.msra.mxu0 0
      %727 = vmatprep.subr.bf16.mxu0 0
      %728 = vmatpush1.bf16.msra.mxu0 0
      %729 = vmatprep.subr.bf16.mxu0 0
      %730 = vmatpush1.bf16.msra.mxu0 0
      %731 = vmatprep.subr.bf16.mxu0 0
      %732 = vmatpush1.bf16.msra.mxu0 0
      %733 = vmatprep.subr.bf16.mxu0 0
      %734 = vmatpush1.bf16.msra.mxu0 0
      %735 = vmatprep.subr.bf16.mxu0 0
      %736 = vmatpush1.bf16.msra.mxu0 0
      %737 = vmatprep.subr.bf16.mxu0 0
      %738 = vmatpush1.bf16.msra.mxu0 0
      %739 = vmatprep.subr.bf16.mxu0 0
      %740 = vmatpush1.bf16.msra.mxu0 0
      %741 = vmatprep.subr.bf16.mxu0 0
      %742 = vmatpush1.bf16.msra.mxu0 0
      %743 = vmatprep.mubr.bf16.mxu0 0
      %744 = vmatmul.mubr.bf16.gmra.mrb[0].mxu0 %v709
      %v745 = vpop.f32.mrb[0].mxu0
      %v746 = vadd.f32 %v669, %v745
      %v747 = vpop.f32.mrb[0].mxu0
      %v748 = vpop.f32.mrb[0].mxu0
      %v749 = vpop.f32.mrb[0].mxu0
      %750 = vdwg.mxu0
      %v755 = vunpack.c.l.b16 %v634
      %v756 = vunpack.c.l.b16 %v635
      %v757 = vunpack.c.l.b16 %v636
      %v758 = vunpack.c.l.b16 %v637
      %v759 = vpack.c.b16 %v756, %v755
      %v760 = vpack.c.b16 %v758, %v757
      %763 = vmatprep.subr.bf16.mxu0 0
      %764 = vmatpush1.bf16.msra.mxu0 %v759
      %765 = vmatprep.subr.bf16.mxu0 0
      %766 = vmatpush1.bf16.msra.mxu0 %v760
      %767 = vmatprep.subr.bf16.mxu0 0
      %768 = vmatpush1.bf16.msra.mxu0 0
      %769 = vmatprep.subr.bf16.mxu0 0
      %770 = vmatpush1.bf16.msra.mxu0 0
      %771 = vmatprep.subr.bf16.mxu0 0
      %772 = vmatpush1.bf16.msra.mxu0 0
      %773 = vmatprep.subr.bf16.mxu0 0
      %774 = vmatpush1.bf16.msra.mxu0 0
      %775 = vmatprep.subr.bf16.mxu0 0
      %776 = vmatpush1.bf16.msra.mxu0 0
      %777 = vmatprep.subr.bf16.mxu0 0
      %778 = vmatpush1.bf16.msra.mxu0 0
      %779 = vmatprep.subr.bf16.mxu0 0
      %780 = vmatpush1.bf16.msra.mxu0 0
      %781 = vmatprep.subr.bf16.mxu0 0
      %782 = vmatpush1.bf16.msra.mxu0 0
      %783 = vmatprep.subr.bf16.mxu0 0
      %784 = vmatpush1.bf16.msra.mxu0 0
      %785 = vmatprep.subr.bf16.mxu0 0
      %786 = vmatpush1.bf16.msra.mxu0 0
      %787 = vmatprep.subr.bf16.mxu0 0
      %788 = vmatpush1.bf16.msra.mxu0 0
      %789 = vmatprep.subr.bf16.mxu0 0
      %790 = vmatpush1.bf16.msra.mxu0 0
      %791 = vmatprep.subr.bf16.mxu0 0
      %792 = vmatpush1.bf16.msra.mxu0 0
      %793 = vmatprep.subr.bf16.mxu0 0
      %794 = vmatpush1.bf16.msra.mxu0 0
      %795 = vmatprep.mubr.bf16.mxu0 0
      %796 = vmatmul.mubr.bf16.gmra.mrb[0].mxu0 %v709
      %v797 = vpop.f32.mrb[0].mxu0
      %v798 = vadd.f32 %v673, %v797
      %v799 = vpop.f32.mrb[0].mxu0
      %v800 = vpop.f32.mrb[0].mxu0
      %v801 = vpop.f32.mrb[0].mxu0
      %802 = vdwg.mxu0
      %v807 = vunpack.c.l.b16 %v638
      %v808 = vunpack.c.l.b16 %v639
      %v809 = vunpack.c.l.b16 %v640
      %v810 = vunpack.c.l.b16 %v641
      %v811 = vpack.c.b16 %v808, %v807
      %v812 = vpack.c.b16 %v810, %v809
      %815 = vmatprep.subr.bf16.mxu0 0
      %816 = vmatpush1.bf16.msra.mxu0 %v811
      %817 = vmatprep.subr.bf16.mxu0 0
      %818 = vmatpush1.bf16.msra.mxu0 %v812
      %819 = vmatprep.subr.bf16.mxu0 0
      %820 = vmatpush1.bf16.msra.mxu0 0
      %821 = vmatprep.subr.bf16.mxu0 0
      %822 = vmatpush1.bf16.msra.mxu0 0
      %823 = vmatprep.subr.bf16.mxu0 0
      %824 = vmatpush1.bf16.msra.mxu0 0
      %825 = vmatprep.subr.bf16.mxu0 0
      %826 = vmatpush1.bf16.msra.mxu0 0
      %827 = vmatprep.subr.bf16.mxu0 0
      %828 = vmatpush1.bf16.msra.mxu0 0
      %829 = vmatprep.subr.bf16.mxu0 0
      %830 = vmatpush1.bf16.msra.mxu0 0
      %831 = vmatprep.subr.bf16.mxu0 0
      %832 = vmatpush1.bf16.msra.mxu0 0
      %833 = vmatprep.subr.bf16.mxu0 0
      %834 = vmatpush1.bf16.msra.mxu0 0
      %835 = vmatprep.subr.bf16.mxu0 0
      %836 = vmatpush1.bf16.msra.mxu0 0
      %837 = vmatprep.subr.bf16.mxu0 0
      %838 = vmatpush1.bf16.msra.mxu0 0
      %839 = vmatprep.subr.bf16.mxu0 0
      %840 = vmatpush1.bf16.msra.mxu0 0
      %841 = vmatprep.subr.bf16.mxu0 0
      %842 = vmatpush1.bf16.msra.mxu0 0
      %843 = vmatprep.subr.bf16.mxu0 0
      %844 = vmatpush1.bf16.msra.mxu0 0
      %845 = vmatprep.subr.bf16.mxu0 0
      %846 = vmatpush1.bf16.msra.mxu0 0
      %847 = vmatprep.mubr.bf16.mxu0 0
      %848 = vmatmul.mubr.bf16.gmra.mrb[0].mxu0 %v709
      %v849 = vpop.f32.mrb[0].mxu0
      %v850 = vadd.f32 %v677, %v849
      %v851 = vpop.f32.mrb[0].mxu0
      %v852 = vpop.f32.mrb[0].mxu0
      %v853 = vpop.f32.mrb[0].mxu0
      %854 = vdwg.mxu0
      %v859 = vunpack.c.l.b16 %v642
      %v860 = vunpack.c.l.b16 %v643
      %v861 = vunpack.c.l.b16 %v644
      %v862 = vunpack.c.l.b16 %v645
      %v863 = vpack.c.b16 %v860, %v859
      %v864 = vpack.c.b16 %v862, %v861
      %867 = vmatprep.subr.bf16.mxu0 0
      %868 = vmatpush1.bf16.msra.mxu0 %v863
      %869 = vmatprep.subr.bf16.mxu0 0
      %870 = vmatpush1.bf16.msra.mxu0 %v864
      %871 = vmatprep.subr.bf16.mxu0 0
      %872 = vmatpush1.bf16.msra.mxu0 0
      %873 = vmatprep.subr.bf16.mxu0 0
      %874 = vmatpush1.bf16.msra.mxu0 0
      %875 = vmatprep.subr.bf16.mxu0 0
      %876 = vmatpush1.bf16.msra.mxu0 0
      %877 = vmatprep.subr.bf16.mxu0 0
      %878 = vmatpush1.bf16.msra.mxu0 0
      %879 = vmatprep.subr.bf16.mxu0 0
      %880 = vmatpush1.bf16.msra.mxu0 0
      %881 = vmatprep.subr.bf16.mxu0 0
      %882 = vmatpush1.bf16.msra.mxu0 0
      %883 = vmatprep.subr.bf16.mxu0 0
      %884 = vmatpush1.bf16.msra.mxu0 0
      %885 = vmatprep.subr.bf16.mxu0 0
      %886 = vmatpush1.bf16.msra.mxu0 0
      %887 = vmatprep.subr.bf16.mxu0 0
      %888 = vmatpush1.bf16.msra.mxu0 0
      %889 = vmatprep.subr.bf16.mxu0 0
      %890 = vmatpush1.bf16.msra.mxu0 0
      %891 = vmatprep.subr.bf16.mxu0 0
      %892 = vmatpush1.bf16.msra.mxu0 0
      %893 = vmatprep.subr.bf16.mxu0 0
      %894 = vmatpush1.bf16.msra.mxu0 0
      %895 = vmatprep.subr.bf16.mxu0 0
      %896 = vmatpush1.bf16.msra.mxu0 0
      %897 = vmatprep.subr.bf16.mxu0 0
      %898 = vmatpush1.bf16.msra.mxu0 0
      %899 = vmatprep.mubr.bf16.mxu0 0
      %900 = vmatmul.mubr.bf16.gmra.mrb[0].mxu0 %v709
      %v901 = vpop.f32.mrb[0].mxu0
      %v902 = vadd.f32 %v681, %v901
      %v903 = vpop.f32.mrb[0].mxu0
      %v904 = vpop.f32.mrb[0].mxu0
      %v905 = vpop.f32.mrb[0].mxu0
      %906 = vdwg.mxu0
      %v911 = vunpack.c.l.b16 %v646
      %v912 = vunpack.c.l.b16 %v647
      %v913 = vunpack.c.l.b16 %v648
      %v914 = vunpack.c.l.b16 %v649
      %v915 = vpack.c.b16 %v912, %v911
      %v916 = vpack.c.b16 %v914, %v913
      %919 = vmatprep.subr.bf16.mxu0 0
      %920 = vmatpush1.bf16.msra.mxu0 %v915
      %921 = vmatprep.subr.bf16.mxu0 0
      %922 = vmatpush1.bf16.msra.mxu0 %v916
      %923 = vmatprep.subr.bf16.mxu0 0
      %924 = vmatpush1.bf16.msra.mxu0 0
      %925 = vmatprep.subr.bf16.mxu0 0
      %926 = vmatpush1.bf16.msra.mxu0 0
      %927 = vmatprep.subr.bf16.mxu0 0
      %928 = vmatpush1.bf16.msra.mxu0 0
      %929 = vmatprep.subr.bf16.mxu0 0
      %930 = vmatpush1.bf16.msra.mxu0 0
      %931 = vmatprep.subr.bf16.mxu0 0
      %932 = vmatpush1.bf16.msra.mxu0 0
      %933 = vmatprep.subr.bf16.mxu0 0
      %934 = vmatpush1.bf16.msra.mxu0 0
      %935 = vmatprep.subr.bf16.mxu0 0
      %936 = vmatpush1.bf16.msra.mxu0 0
      %937 = vmatprep.subr.bf16.mxu0 0
      %938 = vmatpush1.bf16.msra.mxu0 0
      %939 = vmatprep.subr.bf16.mxu0 0
      %940 = vmatpush1.bf16.msra.mxu0 0
      %941 = vmatprep.subr.bf16.mxu0 0
      %942 = vmatpush1.bf16.msra.mxu0 0
      %943 = vmatprep.subr.bf16.mxu0 0
      %944 = vmatpush1.bf16.msra.mxu0 0
      %945 = vmatprep.subr.bf16.mxu0 0
      %946 = vmatpush1.bf16.msra.mxu0 0
      %947 = vmatprep.subr.bf16.mxu0 0
      %948 = vmatpush1.bf16.msra.mxu0 0
      %949 = vmatprep.subr.bf16.mxu0 0
      %950 = vmatpush1.bf16.msra.mxu0 0
      %951 = vmatprep.mubr.bf16.mxu0 0
      %952 = vmatmul.mubr.bf16.gmra.mrb[0].mxu0 %v709
      %v953 = vpop.f32.mrb[0].mxu0
      %v954 = vadd.f32 %v685, %v953
      %v955 = vpop.f32.mrb[0].mxu0
      %v956 = vpop.f32.mrb[0].mxu0
      %v957 = vpop.f32.mrb[0].mxu0
      %958 = vdwg.mxu0
      %v963 = vunpack.c.l.b16 %v650
      %v964 = vunpack.c.l.b16 %v651
      %v965 = vunpack.c.l.b16 %v652
      %v966 = vunpack.c.l.b16 %v653
      %v967 = vpack.c.b16 %v964, %v963
      %v968 = vpack.c.b16 %v966, %v965
      %971 = vmatprep.subr.bf16.mxu0 0
      %972 = vmatpush1.bf16.msra.mxu0 %v967
      %973 = vmatprep.subr.bf16.mxu0 0
      %974 = vmatpush1.bf16.msra.mxu0 %v968
      %975 = vmatprep.subr.bf16.mxu0 0
      %976 = vmatpush1.bf16.msra.mxu0 0
      %977 = vmatprep.subr.bf16.mxu0 0
      %978 = vmatpush1.bf16.msra.mxu0 0
      %979 = vmatprep.subr.bf16.mxu0 0
      %980 = vmatpush1.bf16.msra.mxu0 0
      %981 = vmatprep.subr.bf16.mxu0 0
      %982 = vmatpush1.bf16.msra.mxu0 0
      %983 = vmatprep.subr.bf16.mxu0 0
      %984 = vmatpush1.bf16.msra.mxu0 0
      %985 = vmatprep.subr.bf16.mxu0 0
      %986 = vmatpush1.bf16.msra.mxu0 0
      %987 = vmatprep.subr.bf16.mxu0 0
      %988 = vmatpush1.bf16.msra.mxu0 0
      %989 = vmatprep.subr.bf16.mxu0 0
      %990 = vmatpush1.bf16.msra.mxu0 0
      %991 = vmatprep.subr.bf16.mxu0 0
      %992 = vmatpush1.bf16.msra.mxu0 0
      %993 = vmatprep.subr.bf16.mxu0 0
      %994 = vmatpush1.bf16.msra.mxu0 0
      %995 = vmatprep.subr.bf16.mxu0 0
      %996 = vmatpush1.bf16.msra.mxu0 0
      %997 = vmatprep.subr.bf16.mxu0 0
      %998 = vmatpush1.bf16.msra.mxu0 0
      %999 = vmatprep.subr.bf16.mxu0 0
      %1000 = vmatpush1.bf16.msra.mxu0 0
      %1001 = vmatprep.subr.bf16.mxu0 0
      %1002 = vmatpush1.bf16.msra.mxu0 0
      %1003 = vmatprep.mubr.bf16.mxu0 0
      %1004 = vmatmul.mubr.bf16.gmra.mrb[0].mxu0 %v709
      %v1005 = vpop.f32.mrb[0].mxu0
      %v1006 = vadd.f32 %v689, %v1005
      %v1007 = vpop.f32.mrb[0].mxu0
      %v1008 = vpop.f32.mrb[0].mxu0
      %v1009 = vpop.f32.mrb[0].mxu0
      %1010 = vdwg.mxu0
      %v1011 = vpack.c.bf16 %v746, %v746
      %v1012 = vpack.c.bf16 %v798, %v798
      %v1013 = vpack.c.bf16 %v850, %v850
      %v1014 = vpack.c.bf16 %v902, %v902
      %vm1015 = vcmask 130048
      %v1017 = vsel %vm1015, %v1011, 0
      %v1020 = vsel %vm1015, %v1013, 0
      %1022 = vmatprep.subr.bf16.mxu0 0
      %1023 = vmatpush1.bf16.xpose.msra.mxu0 %v1020
      %1024 = vmatprep.subr.bf16.mxu0 0
      %1025 = vmatpush1.bf16.xpose.msra.mxu0 0
      %1026 = vmatprep.subr.bf16.mxu0 0
      %1027 = vmatpush1.bf16.xpose.msra.mxu0 0
      %1028 = vmatprep.subr.bf16.mxu0 0
      %1029 = vmatpush1.bf16.xpose.msra.mxu0 0
      %1030 = vmatprep.subr.bf16.mxu0 0
      %1031 = vmatpush1.bf16.xpose.msra.mxu0 0
      %1032 = vmatprep.subr.bf16.mxu0 0
      %1033 = vmatpush1.bf16.xpose.msra.mxu0 0
      %1034 = vmatprep.subr.bf16.mxu0 0
      %1035 = vmatpush1.bf16.xpose.msra.mxu0 0
      %1036 = vmatprep.subr.bf16.mxu0 0
      %1037 = vmatpush1.bf16.xpose.msra.mxu0 0
      %1038 = vmatprep.subr.bf16.mxu0 0
      %1039 = vmatpush1.bf16.xpose.msra.mxu0 0
      %1040 = vmatprep.subr.bf16.mxu0 0
      %1041 = vmatpush1.bf16.xpose.msra.mxu0 0
      %1042 = vmatprep.subr.bf16.mxu0 0
      %1043 = vmatpush1.bf16.xpose.msra.mxu0 0
      %1044 = vmatprep.subr.bf16.mxu0 0
      %1045 = vmatpush1.bf16.xpose.msra.mxu0 0
      %1046 = vmatprep.subr.bf16.mxu0 0
      %1047 = vmatpush1.bf16.xpose.msra.mxu0 0
      %1048 = vmatprep.subr.bf16.mxu0 0
      %1049 = vmatpush1.bf16.xpose.msra.mxu0 0
      %1050 = vmatprep.subr.bf16.mxu0 0
      %1051 = vmatpush1.bf16.xpose.msra.mxu0 0
      %1052 = vmatprep.subr.bf16.mxu0 0
      %1053 = vmatpush1.bf16.xpose.msra.mxu0 0
      %1054 = vmatprep.mubr.bf16.mxu0 0
      %1055 = vmatmul.mubr.bf16.gmra.mrb[0].mxu0 %v1017
      %v1056 = vpop.f32.mrb[0].mxu0
      %v1057 = vadd.f32 0.0, %v1056
      %v1058 = vpop.f32.mrb[0].mxu0
      %v1059 = vpop.f32.mrb[0].mxu0
      %v1060 = vpop.f32.mrb[0].mxu0
      %1061 = vdwg.mxu0
      %v1063 = vsel %vm1015, %v1012, 0
      %v1066 = vsel %vm1015, %v1014, 0
      %1068 = vmatprep.subr.bf16.mxu0 0
      %1069 = vmatpush1.bf16.xpose.msra.mxu0 %v1066
      %1070 = vmatprep.subr.bf16.mxu0 0
      %1071 = vmatpush1.bf16.xpose.msra.mxu0 0
      %1072 = vmatprep.subr.bf16.mxu0 0
      %1073 = vmatpush1.bf16.xpose.msra.mxu0 0
      %1074 = vmatprep.subr.bf16.mxu0 0
      %1075 = vmatpush1.bf16.xpose.msra.mxu0 0
      %1076 = vmatprep.subr.bf16.mxu0 0
      %1077 = vmatpush1.bf16.xpose.msra.mxu0 0
      %1078 = vmatprep.subr.bf16.mxu0 0
      %1079 = vmatpush1.bf16.xpose.msra.mxu0 0
      %1080 = vmatprep.subr.bf16.mxu0 0
      %1081 = vmatpush1.bf16.xpose.msra.mxu0 0
      %1082 = vmatprep.subr.bf16.mxu0 0
      %1083 = vmatpush1.bf16.xpose.msra.mxu0 0
      %1084 = vmatprep.subr.bf16.mxu0 0
      %1085 = vmatpush1.bf16.xpose.msra.mxu0 0
      %1086 = vmatprep.subr.bf16.mxu0 0
      %1087 = vmatpush1.bf16.xpose.msra.mxu0 0
      %1088 = vmatprep.subr.bf16.mxu0 0
      %1089 = vmatpush1.bf16.xpose.msra.mxu0 0
      %1090 = vmatprep.subr.bf16.mxu0 0
      %1091 = vmatpush1.bf16.xpose.msra.mxu0 0
      %1092 = vmatprep.subr.bf16.mxu0 0
      %1093 = vmatpush1.bf16.xpose.msra.mxu0 0
      %1094 = vmatprep.subr.bf16.mxu0 0
      %1095 = vmatpush1.bf16.xpose.msra.mxu0 0
      %1096 = vmatprep.subr.bf16.mxu0 0
      %1097 = vmatpush1.bf16.xpose.msra.mxu0 0
      %1098 = vmatprep.subr.bf16.mxu0 0
      %1099 = vmatpush1.bf16.xpose.msra.mxu0 0
      %1100 = vmatprep.mubr.bf16.mxu0 0
      %1101 = vmatmul.mubr.bf16.gmra.mrb[0].mxu0 %v1063
      %v1102 = vpop.f32.mrb[0].mxu0
      %v1103 = vadd.f32 0.0, %v1102
      %v1104 = vpop.f32.mrb[0].mxu0
      %v1105 = vpop.f32.mrb[0].mxu0
      %v1106 = vpop.f32.mrb[0].mxu0
      %1107 = vdwg.mxu0
      %vm1108 = vcmask 64512
      %v1109 = vsel %vm1108, %v1057, -inf
      %1110 = vmax.xlane.f32.xlu0 %v1109
      %v1111 = vpop.xlane.xlu0 %1110
      %v1112 = vsel %vm1108, %v1103, -inf
      %1113 = vmax.xlane.f32.xlu0 %v1112
      %v1114 = vpop.xlane.xlu0 %1113
      %v1115 = vsub.f32 %v1057, %v1111
      %v1116 = vsub.f32 %v1103, %v1114
      %v1117 = vmul.f32 %v1115, 1.442695
      %v1118 = vpow.pop %v1117
      %v1119 = vmul.f32 %v1116, 1.442695
      %v1120 = vpow.pop %v1119
      %v1121 = vsel %vm1108, %v1118, 0.0
      %1122 = vadd.xlane.f32.xlu0 %v1121
      %v1123 = vpop.xlane.xlu0 %1122
      %v1124 = vsel %vm1108, %v1120, 0.0
      %1125 = vadd.xlane.f32.xlu0 %v1124
      %v1126 = vpop.xlane.xlu0 %1125
      %v1127 = vrcp.pop %v1123
      %v1128 = vrcp.pop %v1126
      %v1129 = vmul.f32 %v1118, %v1127
      %v1130 = vmul.f32 %v1120, %v1128
      %v1131 = vpack.c.bf16 %v1129, %v1129
      %v1132 = vpack.c.bf16 %v1130, %v1130
      %v1133 = vpack.c.bf16 %v954, %v954
      %v1134 = vpack.c.bf16 %v1006, %v1006
      %v1136 = vsel %vm1108, %v1131, 0
      %vm1138 = vcmask 1043456
      %v1140 = vsel %vm1138, %v1133, 0
      %1142 = vmatprep.subr.bf16.mxu0 0
      %1143 = vmatpush1.bf16.msra.mxu0 %v1140
      %1144 = vmatprep.subr.bf16.mxu0 0
      %1145 = vmatpush1.bf16.msra.mxu0 0
      %1146 = vmatprep.subr.bf16.mxu0 0
      %1147 = vmatpush1.bf16.msra.mxu0 0
      %1148 = vmatprep.subr.bf16.mxu0 0
      %1149 = vmatpush1.bf16.msra.mxu0 0
      %1150 = vmatprep.subr.bf16.mxu0 0
      %1151 = vmatpush1.bf16.msra.mxu0 0
      %1152 = vmatprep.subr.bf16.mxu0 0
      %1153 = vmatpush1.bf16.msra.mxu0 0
      %1154 = vmatprep.subr.bf16.mxu0 0
      %1155 = vmatpush1.bf16.msra.mxu0 0
      %1156 = vmatprep.subr.bf16.mxu0 0
      %1157 = vmatpush1.bf16.msra.mxu0 0
      %1158 = vmatprep.subr.bf16.mxu0 0
      %1159 = vmatpush1.bf16.msra.mxu0 0
      %1160 = vmatprep.subr.bf16.mxu0 0
      %1161 = vmatpush1.bf16.msra.mxu0 0
      %1162 = vmatprep.subr.bf16.mxu0 0
      %1163 = vmatpush1.bf16.msra.mxu0 0
      %1164 = vmatprep.subr.bf16.mxu0 0
      %1165 = vmatpush1.bf16.msra.mxu0 0
      %1166 = vmatprep.subr.bf16.mxu0 0
      %1167 = vmatpush1.bf16.msra.mxu0 0
      %1168 = vmatprep.subr.bf16.mxu0 0
      %1169 = vmatpush1.bf16.msra.mxu0 0
      %1170 = vmatprep.subr.bf16.mxu0 0
      %1171 = vmatpush1.bf16.msra.mxu0 0
      %1172 = vmatprep.subr.bf16.mxu0 0
      %1173 = vmatpush1.bf16.msra.mxu0 0
      %1174 = vmatprep.mubr.bf16.mxu0 0
      %1175 = vmatmul.mubr.bf16.gmra.mrb[0].mxu0 %v1136
      %v1176 = vpop.f32.mrb[0].mxu0
      %v1177 = vadd.f32 0.0, %v1176
      %v1178 = vpop.f32.mrb[0].mxu0
      %v1179 = vpop.f32.mrb[0].mxu0
      %v1180 = vpop.f32.mrb[0].mxu0
      %1181 = vdwg.mxu0
      %v1183 = vsel %vm1108, %v1132, 0
      %v1186 = vsel %vm1138, %v1134, 0
      %1188 = vmatprep.subr.bf16.mxu0 0
      %1189 = vmatpush1.bf16.msra.mxu0 %v1186
      %1190 = vmatprep.subr.bf16.mxu0 0
      %1191 = vmatpush1.bf16.msra.mxu0 0
      %1192 = vmatprep.subr.bf16.mxu0 0
      %1193 = vmatpush1.bf16.msra.mxu0 0
      %1194 = vmatprep.subr.bf16.mxu0 0
      %1195 = vmatpush1.bf16.msra.mxu0 0
      %1196 = vmatprep.subr.bf16.mxu0 0
      %1197 = vmatpush1.bf16.msra.mxu0 0
      %1198 = vmatprep.subr.bf16.mxu0 0
      %1199 = vmatpush1.bf16.msra.mxu0 0
      %1200 = vmatprep.subr.bf16.mxu0 0
      %1201 = vmatpush1.bf16.msra.mxu0 0
      %1202 = vmatprep.subr.bf16.mxu0 0
      %1203 = vmatpush1.bf16.msra.mxu0 0
      %1204 = vmatprep.subr.bf16.mxu0 0
      %1205 = vmatpush1.bf16.msra.mxu0 0
      %1206 = vmatprep.subr.bf16.mxu0 0
      %1207 = vmatpush1.bf16.msra.mxu0 0
      %1208 = vmatprep.subr.bf16.mxu0 0
      %1209 = vmatpush1.bf16.msra.mxu0 0
      %1210 = vmatprep.subr.bf16.mxu0 0
      %1211 = vmatpush1.bf16.msra.mxu0 0
      %1212 = vmatprep.subr.bf16.mxu0 0
      %1213 = vmatpush1.bf16.msra.mxu0 0
      %1214 = vmatprep.subr.bf16.mxu0 0
      %1215 = vmatpush1.bf16.msra.mxu0 0
      %1216 = vmatprep.subr.bf16.mxu0 0
      %1217 = vmatpush1.bf16.msra.mxu0 0
      %1218 = vmatprep.subr.bf16.mxu0 0
      %1219 = vmatpush1.bf16.msra.mxu0 0
      %1220 = vmatprep.mubr.bf16.mxu0 0
      %1221 = vmatmul.mubr.bf16.gmra.mrb[0].mxu0 %v1183
      %v1222 = vpop.f32.mrb[0].mxu0
      %v1223 = vadd.f32 0.0, %v1222
      %v1224 = vpop.f32.mrb[0].mxu0
      %v1225 = vpop.f32.mrb[0].mxu0
      %v1226 = vpop.f32.mrb[0].mxu0
      %1227 = vdwg.mxu0
      %v1228 = vpack.c.bf16 %v1177, %v1177
      %v1229 = vpack.c.bf16 %v1223, %v1223
      %v1230 = vld [vmem:[%s5] sm:$0xf]
      %v1231 = vld [vmem:[%s5 + $0x4] sm:$0xf]
      %v1232 = vld [vmem:[%s5 + $0x8] sm:$0xf]
      %v1233 = vld [vmem:[%s5 + $0xc] sm:$0xf]
      %v1236 = vunpack.c.l.b16 %v1230
      %v1237 = vunpack.c.l.b16 %v1231
      %v1238 = vpack.c.b16 %v1237, %v1236
      %v1241 = vsel %vm1015, %v1228, 0
      %1243 = vmatprep.subr.bf16.mxu0 0
      %1244 = vmatpush1.bf16.msra.mxu0 %v1238
      %1245 = vmatprep.subr.bf16.mxu0 0
      %1246 = vmatpush1.bf16.msra.mxu0 0
      %1247 = vmatprep.subr.bf16.mxu0 0
      %1248 = vmatpush1.bf16.msra.mxu0 0
      %1249 = vmatprep.subr.bf16.mxu0 0
      %1250 = vmatpush1.bf16.msra.mxu0 0
      %1251 = vmatprep.subr.bf16.mxu0 0
      %1252 = vmatpush1.bf16.msra.mxu0 0
      %1253 = vmatprep.subr.bf16.mxu0 0
      %1254 = vmatpush1.bf16.msra.mxu0 0
      %1255 = vmatprep.subr.bf16.mxu0 0
      %1256 = vmatpush1.bf16.msra.mxu0 0
      %1257 = vmatprep.subr.bf16.mxu0 0
      %1258 = vmatpush1.bf16.msra.mxu0 0
      %1259 = vmatprep.subr.bf16.mxu0 0
      %1260 = vmatpush1.bf16.msra.mxu0 0
      %1261 = vmatprep.subr.bf16.mxu0 0
      %1262 = vmatpush1.bf16.msra.mxu0 0
      %1263 = vmatprep.subr.bf16.mxu0 0
      %1264 = vmatpush1.bf16.msra.mxu0 0
      %1265 = vmatprep.subr.bf16.mxu0 0
      %1266 = vmatpush1.bf16.msra.mxu0 0
      %1267 = vmatprep.subr.bf16.mxu0 0
      %1268 = vmatpush1.bf16.msra.mxu0 0
      %1269 = vmatprep.subr.bf16.mxu0 0
      %1270 = vmatpush1.bf16.msra.mxu0 0
      %1271 = vmatprep.subr.bf16.mxu0 0
      %1272 = vmatpush1.bf16.msra.mxu0 0
      %1273 = vmatprep.subr.bf16.mxu0 0
      %1274 = vmatpush1.bf16.msra.mxu0 0
      %1275 = vmatprep.mubr.bf16.mxu0 0
      %1276 = vmatmul.mubr.bf16.gmra.mrb[0].mxu0 %v1241
      %v1277 = vpop.f32.mrb[0].mxu0
      %v1278 = vadd.f32 0.0, %v1277
      %v1279 = vpop.f32.mrb[0].mxu0
      %v1280 = vpop.f32.mrb[0].mxu0
      %v1281 = vpop.f32.mrb[0].mxu0
      %1282 = vdwg.mxu0
      %v1285 = vunpack.c.l.b16 %v1232
      %v1286 = vunpack.c.l.b16 %v1233
      %v1287 = vpack.c.b16 %v1286, %v1285
      %v1290 = vsel %vm1015, %v1229, 0
      %1292 = vmatprep.subr.bf16.mxu0 0
      %1293 = vmatpush1.bf16.msra.mxu0 %v1287
      %1294 = vmatprep.subr.bf16.mxu0 0
      %1295 = vmatpush1.bf16.msra.mxu0 0
      %1296 = vmatprep.subr.bf16.mxu0 0
      %1297 = vmatpush1.bf16.msra.mxu0 0
      %1298 = vmatprep.subr.bf16.mxu0 0
      %1299 = vmatpush1.bf16.msra.mxu0 0
      %1300 = vmatprep.subr.bf16.mxu0 0
      %1301 = vmatpush1.bf16.msra.mxu0 0
      %1302 = vmatprep.subr.bf16.mxu0 0
      %1303 = vmatpush1.bf16.msra.mxu0 0
      %1304 = vmatprep.subr.bf16.mxu0 0
      %1305 = vmatpush1.bf16.msra.mxu0 0
      %1306 = vmatprep.subr.bf16.mxu0 0
      %1307 = vmatpush1.bf16.msra.mxu0 0
      %1308 = vmatprep.subr.bf16.mxu0 0
      %1309 = vmatpush1.bf16.msra.mxu0 0
      %1310 = vmatprep.subr.bf16.mxu0 0
      %1311 = vmatpush1.bf16.msra.mxu0 0
      %1312 = vmatprep.subr.bf16.mxu0 0
      %1313 = vmatpush1.bf16.msra.mxu0 0
      %1314 = vmatprep.subr.bf16.mxu0 0
      %1315 = vmatpush1.bf16.msra.mxu0 0
      %1316 = vmatprep.subr.bf16.mxu0 0
      %1317 = vmatpush1.bf16.msra.mxu0 0
      %1318 = vmatprep.subr.bf16.mxu0 0
      %1319 = vmatpush1.bf16.msra.mxu0 0
      %1320 = vmatprep.subr.bf16.mxu0 0
      %1321 = vmatpush1.bf16.msra.mxu0 0
      %1322 = vmatprep.subr.bf16.mxu0 0
      %1323 = vmatpush1.bf16.msra.mxu0 0
      %1324 = vmatprep.mubr.bf16.mxu0 0
      %1325 = vmatmul.mubr.bf16.gmra.mrb[0].mxu0 %v1290
      %v1326 = vpop.f32.mrb[0].mxu0
      %v1327 = vadd.f32 0.0, %v1326
      %v1328 = vpop.f32.mrb[0].mxu0
      %v1329 = vpop.f32.mrb[0].mxu0
      %v1330 = vpop.f32.mrb[0].mxu0
      %1331 = vdwg.mxu0
      %v1332 = vsel %vm600, %v1278, 0.0
      %v1333 = vsel %vm600, %v1327, 0.0
      %v1334 = vadd.f32 %v1332, %v1333
      %v1335 = vld [vmem:[%s6] sm:$0x1]
      %v1337 = vlaneseq
      %v1338 = vshrl.u32 %v1337, 7
      %v1339 = vsub.s32 0, %v1338
      %v1340 = vrot.slane %v1335, %v1339
      %v1342 = vadd.f32 %v1334, %v1340
      %v1343 = vadd.f32 %v628, %v1342
      %v1344 = vld [vmem:[%s7] sm:$0x1]
      %v1345 = vld [vmem:[%s8] sm:$0x1]
      %v1346 = vsel %vm600, %v1343, 0.0
      %1347 = vadd.xlane.f32.xlu0 %v1346
      %v1348 = vpop.xlane.xlu0 %1347
      %v1349 = vmul.f32 %v1348, %v604
      %v1350 = vsub.f32 %v1343, %v1349
      %v1351 = vmul.f32 %v1350, %v1350
      %v1352 = vsel %vm600, %v1351, 0.0
      %1353 = vadd.xlane.f32.xlu0 %v1352
      %v1354 = vpop.xlane.xlu0 %1353
      %v1355 = vmul.f32 %v1354, %v604
      %v1356 = vadd.f32 %v1355, 1e-12
      %v1357 = vrsqrt.pop %v1356
      %v1358 = vmul.f32 %v1350, %v1357
      %v1360 = vlaneseq
      %v1361 = vshrl.u32 %v1360, 7
      %v1362 = vsub.s32 0, %v1361
      %v1363 = vrot.slane %v1344, %v1362
      %v1365 = vmul.f32 %v1358, %v1363
      %v1367 = vlaneseq
      %v1368 = vshrl.u32 %v1367, 7
      %v1369 = vsub.s32 0, %v1368
      %v1370 = vrot.slane %v1345, %v1369
      %v1372 = vadd.f32 %v1365, %v1370
      %v1373 = vld [vmem:[%s9] sm:$0xf]
      %v1374 = vld [vmem:[%s9 + $0x4] sm:$0xf]
      %v1375 = vld [vmem:[%s9 + $0x8] sm:$0xf]
      %v1376 = vld [vmem:[%s9 + $0xc] sm:$0xf]
      %v1377 = vpack.c.bf16 %v1372, %v1372
      %v1378 = vld [vmem:[%s10] sm:$0x1]
      %v1380 = vlaneseq
      %v1381 = vshrl.u32 %v1380, 7
      %v1382 = vsub.s32 0, %v1381
      %v1383 = vrot.slane %v1378, %v1382
      %v1389 = vunpack.c.l.b16 %v1373
      %v1390 = vunpack.c.l.b16 %v1374
      %v1391 = vunpack.c.l.b16 %v1375
      %v1392 = vunpack.c.l.b16 %v1376
      %v1393 = vpack.c.b16 %v1390, %v1389
      %v1394 = vpack.c.b16 %v1392, %v1391
      %v1398 = vsel %vm600, %v1377, 0
      %1400 = vmatprep.subr.bf16.mxu0 0
      %1401 = vmatpush1.bf16.msra.mxu0 %v1393
      %1402 = vmatprep.subr.bf16.mxu0 0
      %1403 = vmatpush1.bf16.msra.mxu0 %v1394
      %1404 = vmatprep.subr.bf16.mxu0 0
      %1405 = vmatpush1.bf16.msra.mxu0 0
      %1406 = vmatprep.subr.bf16.mxu0 0
      %1407 = vmatpush1.bf16.msra.mxu0 0
      %1408 = vmatprep.subr.bf16.mxu0 0
      %1409 = vmatpush1.bf16.msra.mxu0 0
      %1410 = vmatprep.subr.bf16.mxu0 0
      %1411 = vmatpush1.bf16.msra.mxu0 0
      %1412 = vmatprep.subr.bf16.mxu0 0
      %1413 = vmatpush1.bf16.msra.mxu0 0
      %1414 = vmatprep.subr.bf16.mxu0 0
      %1415 = vmatpush1.bf16.msra.mxu0 0
      %1416 = vmatprep.subr.bf16.mxu0 0
      %1417 = vmatpush1.bf16.msra.mxu0 0
      %1418 = vmatprep.subr.bf16.mxu0 0
      %1419 = vmatpush1.bf16.msra.mxu0 0
      %1420 = vmatprep.subr.bf16.mxu0 0
      %1421 = vmatpush1.bf16.msra.mxu0 0
      %1422 = vmatprep.subr.bf16.mxu0 0
      %1423 = vmatpush1.bf16.msra.mxu0 0
      %1424 = vmatprep.subr.bf16.mxu0 0
      %1425 = vmatpush1.bf16.msra.mxu0 0
      %1426 = vmatprep.subr.bf16.mxu0 0
      %1427 = vmatpush1.bf16.msra.mxu0 0
      %1428 = vmatprep.subr.bf16.mxu0 0
      %1429 = vmatpush1.bf16.msra.mxu0 0
      %1430 = vmatprep.subr.bf16.mxu0 0
      %1431 = vmatpush1.bf16.msra.mxu0 0
      %1432 = vmatprep.mubr.bf16.mxu0 0
      %1433 = vmatmul.mubr.bf16.gmra.mrb[0].mxu0 %v1398
      %v1434 = vpop.f32.mrb[0].mxu0
      %v1435 = vadd.f32 %v1383, %v1434
      %v1436 = vpop.f32.mrb[0].mxu0
      %v1437 = vpop.f32.mrb[0].mxu0
      %v1438 = vpop.f32.mrb[0].mxu0
      %1439 = vdwg.mxu0
      %v1440 = vmul.f32 %v1435, 0.5
      %v1441 = vmul.f32 %v1435, 0.044715
      %v1442 = vmul.f32 %v1441, %v1435
      %v1443 = vmul.f32 %v1442, %v1435
      %v1444 = vadd.f32 %v1435, %v1443
      %v1445 = vmul.f32 %v1444, 0.7978846
      %v1446 = vtanh.pop %v1445
      %v1447 = vadd.f32 %v1446, 1.0
      %v1448 = vmul.f32 %v1440, %v1447
      %v1449 = vld [vmem:[%s11] sm:$0xf]
      %v1450 = vld [vmem:[%s11 + $0x4] sm:$0xf]
      %v1451 = vld [vmem:[%s11 + $0x8] sm:$0xf]
      %v1452 = vld [vmem:[%s11 + $0xc] sm:$0xf]
      %v1453 = vld [vmem:[%s11 + $0x10] sm:$0xf]
      %v1454 = vld [vmem:[%s11 + $0x14] sm:$0xf]
      %v1455 = vld [vmem:[%s11 + $0x18] sm:$0xf]
      %v1456 = vld [vmem:[%s11 + $0x1c] sm:$0xf]
      %v1457 = vpack.c.bf16 %v1448, %v1448
      %v1458 = vld [vmem:[%s12] sm:$0x1]
      %v1460 = vlaneseq
      %v1461 = vshrl.u32 %v1460, 7
      %v1462 = vsub.s32 0, %v1461
      %v1463 = vrot.slane %v1458, %v1462
      %v1473 = vunpack.c.l.b16 %v1449
      %v1474 = vunpack.c.l.b16 %v1450
      %v1475 = vunpack.c.l.b16 %v1451
      %v1476 = vunpack.c.l.b16 %v1452
      %v1477 = vunpack.c.l.b16 %v1453
      %v1478 = vunpack.c.l.b16 %v1454
      %v1479 = vunpack.c.l.b16 %v1455
      %v1480 = vunpack.c.l.b16 %v1456
      %v1481 = vpack.c.b16 %v1474, %v1473
      %v1482 = vpack.c.b16 %v1476, %v1475
      %v1483 = vpack.c.b16 %v1478, %v1477
      %v1484 = vpack.c.b16 %v1480, %v1479
      %vm1489 = vcmask 523264
      %v1491 = vsel %vm1489, %v1457, 0
      %1493 = vmatprep.subr.bf16.mxu0 0
      %1494 = vmatpush1.bf16.msra.mxu0 %v1481
      %1495 = vmatprep.subr.bf16.mxu0 0
      %1496 = vmatpush1.bf16.msra.mxu0 %v1482
      %1497 = vmatprep.subr.bf16.mxu0 0
      %1498 = vmatpush1.bf16.msra.mxu0 %v1483
      %1499 = vmatprep.subr.bf16.mxu0 0
      %1500 = vmatpush1.bf16.msra.mxu0 %v1484
      %1501 = vmatprep.subr.bf16.mxu0 0
      %1502 = vmatpush1.bf16.msra.mxu0 0
      %1503 = vmatprep.subr.bf16.mxu0 0
      %1504 = vmatpush1.bf16.msra.mxu0 0
      %1505 = vmatprep.subr.bf16.mxu0 0
      %1506 = vmatpush1.bf16.msra.mxu0 0
      %1507 = vmatprep.subr.bf16.mxu0 0
      %1508 = vmatpush1.bf16.msra.mxu0 0
      %1509 = vmatprep.subr.bf16.mxu0 0
      %1510 = vmatpush1.bf16.msra.mxu0 0
      %1511 = vmatprep.subr.bf16.mxu0 0
      %1512 = vmatpush1.bf16.msra.mxu0 0
      %1513 = vmatprep.subr.bf16.mxu0 0
      %1514 = vmatpush1.bf16.msra.mxu0 0
      %1515 = vmatprep.subr.bf16.mxu0 0
      %1516 = vmatpush1.bf16.msra.mxu0 0
      %1517 = vmatprep.subr.bf16.mxu0 0
      %1518 = vmatpush1.bf16.msra.mxu0 0
      %1519 = vmatprep.subr.bf16.mxu0 0
      %1520 = vmatpush1.bf16.msra.mxu0 0
      %1521 = vmatprep.subr.bf16.mxu0 0
      %1522 = vmatpush1.bf16.msra.mxu0 0
      %1523 = vmatprep.subr.bf16.mxu0 0
      %1524 = vmatpush1.bf16.msra.mxu0 0
      %1525 = vmatprep.mubr.bf16.mxu0 0
      %1526 = vmatmul.mubr.bf16.gmra.mrb[0].mxu0 %v1491
      %v1527 = vpop.f32.mrb[0].mxu0
      %v1528 = vadd.f32 %v1463, %v1527
      %v1529 = vpop.f32.mrb[0].mxu0
      %v1530 = vpop.f32.mrb[0].mxu0
      %v1531 = vpop.f32.mrb[0].mxu0
      %1532 = vdwg.mxu0
      %v1533 = vadd.f32 %v1372, %v1528
      %v1534 = vld [vmem:[%s13] sm:$0x1]
      %v1535 = vld [vmem:[%s14] sm:$0x1]
      %v1536 = vsel %vm600, %v1533, 0.0
      %1537 = vadd.xlane.f32.xlu0 %v1536
      %v1538 = vpop.xlane.xlu0 %1537
      %v1539 = vmul.f32 %v1538, %v604
      %v1540 = vsub.f32 %v1533, %v1539
      %v1541 = vmul.f32 %v1540, %v1540
      %v1542 = vsel %vm600, %v1541, 0.0
      %1543 = vadd.xlane.f32.xlu0 %v1542
      %v1544 = vpop.xlane.xlu0 %1543
      %v1545 = vmul.f32 %v1544, %v604
      %v1546 = vadd.f32 %v1545, 1e-12
      %v1547 = vrsqrt.pop %v1546
      %v1548 = vmul.f32 %v1540, %v1547
      %v1550 = vlaneseq
      %v1551 = vshrl.u32 %v1550, 7
      %v1552 = vsub.s32 0, %v1551
      %v1553 = vrot.slane %v1534, %v1552
      %v1555 = vmul.f32 %v1548, %v1553
      %v1557 = vlaneseq
      %v1558 = vshrl.u32 %v1557, 7
      %v1559 = vsub.s32 0, %v1558
      %v1560 = vrot.slane %v1535, %v1559
      %v1562 = vadd.f32 %v1555, %v1560
      %v1563 = vpack.c.bf16 %v1562, %v1562
      %s1564 = scalar_lea.vmem %s3, 96
      %v1565 = vld [vmem:[%s1564] sm:$0xf]
      %v1566 = vld [vmem:[%s1564 + $0x4] sm:$0xf]
      %v1567 = vld [vmem:[%s1564 + $0x8] sm:$0xf]
      %v1568 = vld [vmem:[%s1564 + $0xc] sm:$0xf]
      %v1569 = vld [vmem:[%s1564 + $0x10] sm:$0xf]
      %v1570 = vld [vmem:[%s1564 + $0x14] sm:$0xf]
      %v1571 = vld [vmem:[%s1564 + $0x18] sm:$0xf]
      %v1572 = vld [vmem:[%s1564 + $0x1c] sm:$0xf]
      %v1573 = vld [vmem:[%s1564 + $0x20] sm:$0xf]
      %v1574 = vld [vmem:[%s1564 + $0x24] sm:$0xf]
      %v1575 = vld [vmem:[%s1564 + $0x28] sm:$0xf]
      %v1576 = vld [vmem:[%s1564 + $0x2c] sm:$0xf]
      %v1577 = vld [vmem:[%s1564 + $0x30] sm:$0xf]
      %v1578 = vld [vmem:[%s1564 + $0x34] sm:$0xf]
      %v1579 = vld [vmem:[%s1564 + $0x38] sm:$0xf]
      %v1580 = vld [vmem:[%s1564 + $0x3c] sm:$0xf]
      %v1581 = vld [vmem:[%s1564 + $0x40] sm:$0xf]
      %v1582 = vld [vmem:[%s1564 + $0x44] sm:$0xf]
      %v1583 = vld [vmem:[%s1564 + $0x48] sm:$0xf]
      %v1584 = vld [vmem:[%s1564 + $0x4c] sm:$0xf]
      %v1585 = vld [vmem:[%s1564 + $0x50] sm:$0xf]
      %v1586 = vld [vmem:[%s1564 + $0x54] sm:$0xf]
      %v1587 = vld [vmem:[%s1564 + $0x58] sm:$0xf]
      %v1588 = vld [vmem:[%s1564 + $0x5c] sm:$0xf]
      %s1589 = scalar_lea.vmem %s4, 6
      %v1590 = vld [vmem:[%s1589] sm:$0x1]
      %v1591 = vld [vmem:[%s1589 + $0x1] sm:$0x1]
      %v1592 = vld [vmem:[%s1589 + $0x2] sm:$0x1]
      %v1593 = vld [vmem:[%s1589 + $0x3] sm:$0x1]
      %v1594 = vld [vmem:[%s1589 + $0x4] sm:$0x1]
      %v1595 = vld [vmem:[%s1589 + $0x5] sm:$0x1]
      %v1602 = vlaneseq
      %v1603 = vshrl.u32 %v1602, 7
      %v1604 = vsub.s32 0, %v1603
      %v1605 = vrot.slane %v1590, %v1604
      %v1606 = vlaneseq
      %v1607 = vshrl.u32 %v1606, 7
      %v1608 = vsub.s32 0, %v1607
      %v1609 = vrot.slane %v1591, %v1608
      %v1610 = vlaneseq
      %v1611 = vshrl.u32 %v1610, 7
      %v1612 = vsub.s32 0, %v1611
      %v1613 = vrot.slane %v1592, %v1612
      %v1614 = vlaneseq
      %v1615 = vshrl.u32 %v1614, 7
      %v1616 = vsub.s32 0, %v1615
      %v1617 = vrot.slane %v1593, %v1616
      %v1618 = vlaneseq
      %v1619 = vshrl.u32 %v1618, 7
      %v1620 = vsub.s32 0, %v1619
      %v1621 = vrot.slane %v1594, %v1620
      %v1622 = vlaneseq
      %v1623 = vshrl.u32 %v1622, 7
      %v1624 = vsub.s32 0, %v1623
      %v1625 = vrot.slane %v1595, %v1624
      %v1636 = vunpack.c.l.b16 %v1565
      %v1637 = vunpack.c.l.b16 %v1566
      %v1638 = vunpack.c.l.b16 %v1567
      %v1639 = vunpack.c.l.b16 %v1568
      %v1640 = vpack.c.b16 %v1637, %v1636
      %v1641 = vpack.c.b16 %v1639, %v1638
      %v1645 = vsel %vm600, %v1563, 0
      %1647 = vmatprep.subr.bf16.mxu0 0
      %1648 = vmatpush1.bf16.msra.mxu0 %v1640
      %1649 = vmatprep.subr.bf16.mxu0 0
      %1650 = vmatpush1.bf16.msra.mxu0 %v1641
      %1651 = vmatprep.subr.bf16.mxu0 0
      %1652 = vmatpush1.bf16.msra.mxu0 0
      %1653 = vmatprep.subr.bf16.mxu0 0
      %1654 = vmatpush1.bf16.msra.mxu0 0
      %1655 = vmatprep.subr.bf16.mxu0 0
      %1656 = vmatpush1.bf16.msra.mxu0 0
      %1657 = vmatprep.subr.bf16.mxu0 0
      %1658 = vmatpush1.bf16.msra.mxu0 0
      %1659 = vmatprep.subr.bf16.mxu0 0
      %1660 = vmatpush1.bf16.msra.mxu0 0
      %1661 = vmatprep.subr.bf16.mxu0 0
      %1662 = vmatpush1.bf16.msra.mxu0 0
      %1663 = vmatprep.subr.bf16.mxu0 0
      %1664 = vmatpush1.bf16.msra.mxu0 0
      %1665 = vmatprep.subr.bf16.mxu0 0
      %1666 = vmatpush1.bf16.msra.mxu0 0
      %1667 = vmatprep.subr.bf16.mxu0 0
      %1668 = vmatpush1.bf16.msra.mxu0 0
      %1669 = vmatprep.subr.bf16.mxu0 0
      %1670 = vmatpush1.bf16.msra.mxu0 0
      %1671 = vmatprep.subr.bf16.mxu0 0
      %1672 = vmatpush1.bf16.msra.mxu0 0
      %1673 = vmatprep.subr.bf16.mxu0 0
      %1674 = vmatpush1.bf16.msra.mxu0 0
      %1675 = vmatprep.subr.bf16.mxu0 0
      %1676 = vmatpush1.bf16.msra.mxu0 0
      %1677 = vmatprep.subr.bf16.mxu0 0
      %1678 = vmatpush1.bf16.msra.mxu0 0
      %1679 = vmatprep.mubr.bf16.mxu0 0
      %1680 = vmatmul.mubr.bf16.gmra.mrb[0].mxu0 %v1645
      %v1681 = vpop.f32.mrb[0].mxu0
      %v1682 = vadd.f32 %v1605, %v1681
      %v1683 = vpop.f32.mrb[0].mxu0
      %v1684 = vpop.f32.mrb[0].mxu0
      %v1685 = vpop.f32.mrb[0].mxu0
      %1686 = vdwg.mxu0
      %v1691 = vunpack.c.l.b16 %v1569
      %v1692 = vunpack.c.l.b16 %v1570
      %v1693 = vunpack.c.l.b16 %v1571
      %v1694 = vunpack.c.l.b16 %v1572
      %v1695 = vpack.c.b16 %v1692, %v1691
      %v1696 = vpack.c.b16 %v1694, %v1693
      %1699 = vmatprep.subr.bf16.mxu0 0
      %1700 = vmatpush1.bf16.msra.mxu0 %v1695
      %1701 = vmatprep.subr.bf16.mxu0 0
      %1702 = vmatpush1.bf16.msra.mxu0 %v1696
      %1703 = vmatprep.subr.bf16.mxu0 0
      %1704 = vmatpush1.bf16.msra.mxu0 0
      %1705 = vmatprep.subr.bf16.mxu0 0
      %1706 = vmatpush1.bf16.msra.mxu0 0
      %1707 = vmatprep.subr.bf16.mxu0 0
      %1708 = vmatpush1.bf16.msra.mxu0 0
      %1709 = vmatprep.subr.bf16.mxu0 0
      %1710 = vmatpush1.bf16.msra.mxu0 0
      %1711 = vmatprep.subr.bf16.mxu0 0
      %1712 = vmatpush1.bf16.msra.mxu0 0
      %1713 = vmatprep.subr.bf16.mxu0 0
      %1714 = vmatpush1.bf16.msra.mxu0 0
      %1715 = vmatprep.subr.bf16.mxu0 0
      %1716 = vmatpush1.bf16.msra.mxu0 0
      %1717 = vmatprep.subr.bf16.mxu0 0
      %1718 = vmatpush1.bf16.msra.mxu0 0
      %1719 = vmatprep.subr.bf16.mxu0 0
      %1720 = vmatpush1.bf16.msra.mxu0 0
      %1721 = vmatprep.subr.bf16.mxu0 0
      %1722 = vmatpush1.bf16.msra.mxu0 0
      %1723 = vmatprep.subr.bf16.mxu0 0
      %1724 = vmatpush1.bf16.msra.mxu0 0
      %1725 = vmatprep.subr.bf16.mxu0 0
      %1726 = vmatpush1.bf16.msra.mxu0 0
      %1727 = vmatprep.subr.bf16.mxu0 0
      %1728 = vmatpush1.bf16.msra.mxu0 0
      %1729 = vmatprep.subr.bf16.mxu0 0
      %1730 = vmatpush1.bf16.msra.mxu0 0
      %1731 = vmatprep.mubr.bf16.mxu0 0
      %1732 = vmatmul.mubr.bf16.gmra.mrb[0].mxu0 %v1645
      %v1733 = vpop.f32.mrb[0].mxu0
      %v1734 = vadd.f32 %v1609, %v1733
      %v1735 = vpop.f32.mrb[0].mxu0
      %v1736 = vpop.f32.mrb[0].mxu0
      %v1737 = vpop.f32.mrb[0].mxu0
      %1738 = vdwg.mxu0
      %v1743 = vunpack.c.l.b16 %v1573
      %v1744 = vunpack.c.l.b16 %v1574
      %v1745 = vunpack.c.l.b16 %v1575
      %v1746 = vunpack.c.l.b16 %v1576
      %v1747 = vpack.c.b16 %v1744, %v1743
      %v1748 = vpack.c.b16 %v1746, %v1745
      %1751 = vmatprep.subr.bf16.mxu0 0
      %1752 = vmatpush1.bf16.msra.mxu0 %v1747
      %1753 = vmatprep.subr.bf16.mxu0 0
      %1754 = vmatpush1.bf16.msra.mxu0 %v1748
      %1755 = vmatprep.subr.bf16.mxu0 0
      %1756 = vmatpush1.bf16.msra.mxu0 0
      %1757 = vmatprep.subr.bf16.mxu0 0
      %1758 = vmatpush1.bf16.msra.mxu0 0
      %1759 = vmatprep.subr.bf16.mxu0 0
      %1760 = vmatpush1.bf16.msra.mxu0 0
      %1761 = vmatprep.subr.bf16.mxu0 0
      %1762 = vmatpush1.bf16.msra.mxu0 0
      %1763 = vmatprep.subr.bf16.mxu0 0
      %1764 = vmatpush1.bf16.msra.mxu0 0
      %1765 = vmatprep.subr.bf16.mxu0 0
      %1766 = vmatpush1.bf16.msra.mxu0 0
      %1767 = vmatprep.subr.bf16.mxu0 0
      %1768 = vmatpush1.bf16.msra.mxu0 0
      %1769 = vmatprep.subr.bf16.mxu0 0
      %1770 = vmatpush1.bf16.msra.mxu0 0
      %1771 = vmatprep.subr.bf16.mxu0 0
      %1772 = vmatpush1.bf16.msra.mxu0 0
      %1773 = vmatprep.subr.bf16.mxu0 0
      %1774 = vmatpush1.bf16.msra.mxu0 0
      %1775 = vmatprep.subr.bf16.mxu0 0
      %1776 = vmatpush1.bf16.msra.mxu0 0
      %1777 = vmatprep.subr.bf16.mxu0 0
      %1778 = vmatpush1.bf16.msra.mxu0 0
      %1779 = vmatprep.subr.bf16.mxu0 0
      %1780 = vmatpush1.bf16.msra.mxu0 0
      %1781 = vmatprep.subr.bf16.mxu0 0
      %1782 = vmatpush1.bf16.msra.mxu0 0
      %1783 = vmatprep.mubr.bf16.mxu0 0
      %1784 = vmatmul.mubr.bf16.gmra.mrb[0].mxu0 %v1645
      %v1785 = vpop.f32.mrb[0].mxu0
      %v1786 = vadd.f32 %v1613, %v1785
      %v1787 = vpop.f32.mrb[0].mxu0
      %v1788 = vpop.f32.mrb[0].mxu0
      %v1789 = vpop.f32.mrb[0].mxu0
      %1790 = vdwg.mxu0
      %v1795 = vunpack.c.l.b16 %v1577
      %v1796 = vunpack.c.l.b16 %v1578
      %v1797 = vunpack.c.l.b16 %v1579
      %v1798 = vunpack.c.l.b16 %v1580
      %v1799 = vpack.c.b16 %v1796, %v1795
      %v1800 = vpack.c.b16 %v1798, %v1797
      %1803 = vmatprep.subr.bf16.mxu0 0
      %1804 = vmatpush1.bf16.msra.mxu0 %v1799
      %1805 = vmatprep.subr.bf16.mxu0 0
      %1806 = vmatpush1.bf16.msra.mxu0 %v1800
      %1807 = vmatprep.subr.bf16.mxu0 0
      %1808 = vmatpush1.bf16.msra.mxu0 0
      %1809 = vmatprep.subr.bf16.mxu0 0
      %1810 = vmatpush1.bf16.msra.mxu0 0
      %1811 = vmatprep.subr.bf16.mxu0 0
      %1812 = vmatpush1.bf16.msra.mxu0 0
      %1813 = vmatprep.subr.bf16.mxu0 0
      %1814 = vmatpush1.bf16.msra.mxu0 0
      %1815 = vmatprep.subr.bf16.mxu0 0
      %1816 = vmatpush1.bf16.msra.mxu0 0
      %1817 = vmatprep.subr.bf16.mxu0 0
      %1818 = vmatpush1.bf16.msra.mxu0 0
      %1819 = vmatprep.subr.bf16.mxu0 0
      %1820 = vmatpush1.bf16.msra.mxu0 0
      %1821 = vmatprep.subr.bf16.mxu0 0
      %1822 = vmatpush1.bf16.msra.mxu0 0
      %1823 = vmatprep.subr.bf16.mxu0 0
      %1824 = vmatpush1.bf16.msra.mxu0 0
      %1825 = vmatprep.subr.bf16.mxu0 0
      %1826 = vmatpush1.bf16.msra.mxu0 0
      %1827 = vmatprep.subr.bf16.mxu0 0
      %1828 = vmatpush1.bf16.msra.mxu0 0
      %1829 = vmatprep.subr.bf16.mxu0 0
      %1830 = vmatpush1.bf16.msra.mxu0 0
      %1831 = vmatprep.subr.bf16.mxu0 0
      %1832 = vmatpush1.bf16.msra.mxu0 0
      %1833 = vmatprep.subr.bf16.mxu0 0
      %1834 = vmatpush1.bf16.msra.mxu0 0
      %1835 = vmatprep.mubr.bf16.mxu0 0
      %1836 = vmatmul.mubr.bf16.gmra.mrb[0].mxu0 %v1645
      %v1837 = vpop.f32.mrb[0].mxu0
      %v1838 = vadd.f32 %v1617, %v1837
      %v1839 = vpop.f32.mrb[0].mxu0
      %v1840 = vpop.f32.mrb[0].mxu0
      %v1841 = vpop.f32.mrb[0].mxu0
      %1842 = vdwg.mxu0
      %v1847 = vunpack.c.l.b16 %v1581
      %v1848 = vunpack.c.l.b16 %v1582
      %v1849 = vunpack.c.l.b16 %v1583
      %v1850 = vunpack.c.l.b16 %v1584
      %v1851 = vpack.c.b16 %v1848, %v1847
      %v1852 = vpack.c.b16 %v1850, %v1849
      %1855 = vmatprep.subr.bf16.mxu0 0
      %1856 = vmatpush1.bf16.msra.mxu0 %v1851
      %1857 = vmatprep.subr.bf16.mxu0 0
      %1858 = vmatpush1.bf16.msra.mxu0 %v1852
      %1859 = vmatprep.subr.bf16.mxu0 0
      %1860 = vmatpush1.bf16.msra.mxu0 0
      %1861 = vmatprep.subr.bf16.mxu0 0
      %1862 = vmatpush1.bf16.msra.mxu0 0
      %1863 = vmatprep.subr.bf16.mxu0 0
      %1864 = vmatpush1.bf16.msra.mxu0 0
      %1865 = vmatprep.subr.bf16.mxu0 0
      %1866 = vmatpush1.bf16.msra.mxu0 0
      %1867 = vmatprep.subr.bf16.mxu0 0
      %1868 = vmatpush1.bf16.msra.mxu0 0
      %1869 = vmatprep.subr.bf16.mxu0 0
      %1870 = vmatpush1.bf16.msra.mxu0 0
      %1871 = vmatprep.subr.bf16.mxu0 0
      %1872 = vmatpush1.bf16.msra.mxu0 0
      %1873 = vmatprep.subr.bf16.mxu0 0
      %1874 = vmatpush1.bf16.msra.mxu0 0
      %1875 = vmatprep.subr.bf16.mxu0 0
      %1876 = vmatpush1.bf16.msra.mxu0 0
      %1877 = vmatprep.subr.bf16.mxu0 0
      %1878 = vmatpush1.bf16.msra.mxu0 0
      %1879 = vmatprep.subr.bf16.mxu0 0
      %1880 = vmatpush1.bf16.msra.mxu0 0
      %1881 = vmatprep.subr.bf16.mxu0 0
      %1882 = vmatpush1.bf16.msra.mxu0 0
      %1883 = vmatprep.subr.bf16.mxu0 0
      %1884 = vmatpush1.bf16.msra.mxu0 0
      %1885 = vmatprep.subr.bf16.mxu0 0
      %1886 = vmatpush1.bf16.msra.mxu0 0
      %1887 = vmatprep.mubr.bf16.mxu0 0
      %1888 = vmatmul.mubr.bf16.gmra.mrb[0].mxu0 %v1645
      %v1889 = vpop.f32.mrb[0].mxu0
      %v1890 = vadd.f32 %v1621, %v1889
      %v1891 = vpop.f32.mrb[0].mxu0
      %v1892 = vpop.f32.mrb[0].mxu0
      %v1893 = vpop.f32.mrb[0].mxu0
      %1894 = vdwg.mxu0
      %v1899 = vunpack.c.l.b16 %v1585
      %v1900 = vunpack.c.l.b16 %v1586
      %v1901 = vunpack.c.l.b16 %v1587
      %v1902 = vunpack.c.l.b16 %v1588
      %v1903 = vpack.c.b16 %v1900, %v1899
      %v1904 = vpack.c.b16 %v1902, %v1901
      %1907 = vmatprep.subr.bf16.mxu0 0
      %1908 = vmatpush1.bf16.msra.mxu0 %v1903
      %1909 = vmatprep.subr.bf16.mxu0 0
      %1910 = vmatpush1.bf16.msra.mxu0 %v1904
      %1911 = vmatprep.subr.bf16.mxu0 0
      %1912 = vmatpush1.bf16.msra.mxu0 0
      %1913 = vmatprep.subr.bf16.mxu0 0
      %1914 = vmatpush1.bf16.msra.mxu0 0
      %1915 = vmatprep.subr.bf16.mxu0 0
      %1916 = vmatpush1.bf16.msra.mxu0 0
      %1917 = vmatprep.subr.bf16.mxu0 0
      %1918 = vmatpush1.bf16.msra.mxu0 0
      %1919 = vmatprep.subr.bf16.mxu0 0
      %1920 = vmatpush1.bf16.msra.mxu0 0
      %1921 = vmatprep.subr.bf16.mxu0 0
      %1922 = vmatpush1.bf16.msra.mxu0 0
      %1923 = vmatprep.subr.bf16.mxu0 0
      %1924 = vmatpush1.bf16.msra.mxu0 0
      %1925 = vmatprep.subr.bf16.mxu0 0
      %1926 = vmatpush1.bf16.msra.mxu0 0
      %1927 = vmatprep.subr.bf16.mxu0 0
      %1928 = vmatpush1.bf16.msra.mxu0 0
      %1929 = vmatprep.subr.bf16.mxu0 0
      %1930 = vmatpush1.bf16.msra.mxu0 0
      %1931 = vmatprep.subr.bf16.mxu0 0
      %1932 = vmatpush1.bf16.msra.mxu0 0
      %1933 = vmatprep.subr.bf16.mxu0 0
      %1934 = vmatpush1.bf16.msra.mxu0 0
      %1935 = vmatprep.subr.bf16.mxu0 0
      %1936 = vmatpush1.bf16.msra.mxu0 0
      %1937 = vmatprep.subr.bf16.mxu0 0
      %1938 = vmatpush1.bf16.msra.mxu0 0
      %1939 = vmatprep.mubr.bf16.mxu0 0
      %1940 = vmatmul.mubr.bf16.gmra.mrb[0].mxu0 %v1645
      %v1941 = vpop.f32.mrb[0].mxu0
      %v1942 = vadd.f32 %v1625, %v1941
      %v1943 = vpop.f32.mrb[0].mxu0
      %v1944 = vpop.f32.mrb[0].mxu0
      %v1945 = vpop.f32.mrb[0].mxu0
      %1946 = vdwg.mxu0
      %v1947 = vpack.c.bf16 %v1682, %v1682
      %v1948 = vpack.c.bf16 %v1734, %v1734
      %v1949 = vpack.c.bf16 %v1786, %v1786
      %v1950 = vpack.c.bf16 %v1838, %v1838
      %v1952 = vsel %vm1015, %v1947, 0
      %v1955 = vsel %vm1015, %v1949, 0
      %1957 = vmatprep.subr.bf16.mxu0 0
      %1958 = vmatpush1.bf16.xpose.msra.mxu0 %v1955
      %1959 = vmatprep.subr.bf16.mxu0 0
      %1960 = vmatpush1.bf16.xpose.msra.mxu0 0
      %1961 = vmatprep.subr.bf16.mxu0 0
      %1962 = vmatpush1.bf16.xpose.msra.mxu0 0
      %1963 = vmatprep.subr.bf16.mxu0 0
      %1964 = vmatpush1.bf16.xpose.msra.mxu0 0
      %1965 = vmatprep.subr.bf16.mxu0 0
      %1966 = vmatpush1.bf16.xpose.msra.mxu0 0
      %1967 = vmatprep.subr.bf16.mxu0 0
      %1968 = vmatpush1.bf16.xpose.msra.mxu0 0
      %1969 = vmatprep.subr.bf16.mxu0 0
      %1970 = vmatpush1.bf16.xpose.msra.mxu0 0
      %1971 = vmatprep.subr.bf16.mxu0 0
      %1972 = vmatpush1.bf16.xpose.msra.mxu0 0
      %1973 = vmatprep.subr.bf16.mxu0 0
      %1974 = vmatpush1.bf16.xpose.msra.mxu0 0
      %1975 = vmatprep.subr.bf16.mxu0 0
      %1976 = vmatpush1.bf16.xpose.msra.mxu0 0
      %1977 = vmatprep.subr.bf16.mxu0 0
      %1978 = vmatpush1.bf16.xpose.msra.mxu0 0
      %1979 = vmatprep.subr.bf16.mxu0 0
      %1980 = vmatpush1.bf16.xpose.msra.mxu0 0
      %1981 = vmatprep.subr.bf16.mxu0 0
      %1982 = vmatpush1.bf16.xpose.msra.mxu0 0
      %1983 = vmatprep.subr.bf16.mxu0 0
      %1984 = vmatpush1.bf16.xpose.msra.mxu0 0
      %1985 = vmatprep.subr.bf16.mxu0 0
      %1986 = vmatpush1.bf16.xpose.msra.mxu0 0
      %1987 = vmatprep.subr.bf16.mxu0 0
      %1988 = vmatpush1.bf16.xpose.msra.mxu0 0
      %1989 = vmatprep.mubr.bf16.mxu0 0
      %1990 = vmatmul.mubr.bf16.gmra.mrb[0].mxu0 %v1952
      %v1991 = vpop.f32.mrb[0].mxu0
      %v1992 = vadd.f32 0.0, %v1991
      %v1993 = vpop.f32.mrb[0].mxu0
      %v1994 = vpop.f32.mrb[0].mxu0
      %v1995 = vpop.f32.mrb[0].mxu0
      %1996 = vdwg.mxu0
      %v1998 = vsel %vm1015, %v1948, 0
      %v2001 = vsel %vm1015, %v1950, 0
      %2003 = vmatprep.subr.bf16.mxu0 0
      %2004 = vmatpush1.bf16.xpose.msra.mxu0 %v2001
      %2005 = vmatprep.subr.bf16.mxu0 0
      %2006 = vmatpush1.bf16.xpose.msra.mxu0 0
      %2007 = vmatprep.subr.bf16.mxu0 0
      %2008 = vmatpush1.bf16.xpose.msra.mxu0 0
      %2009 = vmatprep.subr.bf16.mxu0 0
      %2010 = vmatpush1.bf16.xpose.msra.mxu0 0
      %2011 = vmatprep.subr.bf16.mxu0 0
      %2012 = vmatpush1.bf16.xpose.msra.mxu0 0
      %2013 = vmatprep.subr.bf16.mxu0 0
      %2014 = vmatpush1.bf16.xpose.msra.mxu0 0
      %2015 = vmatprep.subr.bf16.mxu0 0
      %2016 = vmatpush1.bf16.xpose.msra.mxu0 0
      %2017 = vmatprep.subr.bf16.mxu0 0
      %2018 = vmatpush1.bf16.xpose.msra.mxu0 0
      %2019 = vmatprep.subr.bf16.mxu0 0
      %2020 = vmatpush1.bf16.xpose.msra.mxu0 0
      %2021 = vmatprep.subr.bf16.mxu0 0
      %2022 = vmatpush1.bf16.xpose.msra.mxu0 0
      %2023 = vmatprep.subr.bf16.mxu0 0
      %2024 = vmatpush1.bf16.xpose.msra.mxu0 0
      %2025 = vmatprep.subr.bf16.mxu0 0
      %2026 = vmatpush1.bf16.xpose.msra.mxu0 0
      %2027 = vmatprep.subr.bf16.mxu0 0
      %2028 = vmatpush1.bf16.xpose.msra.mxu0 0
      %2029 = vmatprep.subr.bf16.mxu0 0
      %2030 = vmatpush1.bf16.xpose.msra.mxu0 0
      %2031 = vmatprep.subr.bf16.mxu0 0
      %2032 = vmatpush1.bf16.xpose.msra.mxu0 0
      %2033 = vmatprep.subr.bf16.mxu0 0
      %2034 = vmatpush1.bf16.xpose.msra.mxu0 0
      %2035 = vmatprep.mubr.bf16.mxu0 0
      %2036 = vmatmul.mubr.bf16.gmra.mrb[0].mxu0 %v1998
      %v2037 = vpop.f32.mrb[0].mxu0
      %v2038 = vadd.f32 0.0, %v2037
      %v2039 = vpop.f32.mrb[0].mxu0
      %v2040 = vpop.f32.mrb[0].mxu0
      %v2041 = vpop.f32.mrb[0].mxu0
      %2042 = vdwg.mxu0
      %v2043 = vsel %vm1108, %v1992, -inf
      %2044 = vmax.xlane.f32.xlu0 %v2043
      %v2045 = vpop.xlane.xlu0 %2044
      %v2046 = vsel %vm1108, %v2038, -inf
      %2047 = vmax.xlane.f32.xlu0 %v2046
      %v2048 = vpop.xlane.xlu0 %2047
      %v2049 = vsub.f32 %v1992, %v2045
      %v2050 = vsub.f32 %v2038, %v2048
      %v2051 = vmul.f32 %v2049, 1.442695
      %v2052 = vpow.pop %v2051
      %v2053 = vmul.f32 %v2050, 1.442695
      %v2054 = vpow.pop %v2053
      %v2055 = vsel %vm1108, %v2052, 0.0
      %2056 = vadd.xlane.f32.xlu0 %v2055
      %v2057 = vpop.xlane.xlu0 %2056
      %v2058 = vsel %vm1108, %v2054, 0.0
      %2059 = vadd.xlane.f32.xlu0 %v2058
      %v2060 = vpop.xlane.xlu0 %2059
      %v2061 = vrcp.pop %v2057
      %v2062 = vrcp.pop %v2060
      %v2063 = vmul.f32 %v2052, %v2061
      %v2064 = vmul.f32 %v2054, %v2062
      %v2065 = vpack.c.bf16 %v2063, %v2063
      %v2066 = vpack.c.bf16 %v2064, %v2064
      %v2067 = vpack.c.bf16 %v1890, %v1890
      %v2068 = vpack.c.bf16 %v1942, %v1942
      %v2070 = vsel %vm1108, %v2065, 0
      %v2073 = vsel %vm1138, %v2067, 0
      %2075 = vmatprep.subr.bf16.mxu0 0
      %2076 = vmatpush1.bf16.msra.mxu0 %v2073
      %2077 = vmatprep.subr.bf16.mxu0 0
      %2078 = vmatpush1.bf16.msra.mxu0 0
      %2079 = vmatprep.subr.bf16.mxu0 0
      %2080 = vmatpush1.bf16.msra.mxu0 0
      %2081 = vmatprep.subr.bf16.mxu0 0
      %2082 = vmatpush1.bf16.msra.mxu0 0
      %2083 = vmatprep.subr.bf16.mxu0 0
      %2084 = vmatpush1.bf16.msra.mxu0 0
      %2085 = vmatprep.subr.bf16.mxu0 0
      %2086 = vmatpush1.bf16.msra.mxu0 0
      %2087 = vmatprep.subr.bf16.mxu0 0
      %2088 = vmatpush1.bf16.msra.mxu0 0
      %2089 = vmatprep.subr.bf16.mxu0 0
      %2090 = vmatpush1.bf16.msra.mxu0 0
      %2091 = vmatprep.subr.bf16.mxu0 0
      %2092 = vmatpush1.bf16.msra.mxu0 0
      %2093 = vmatprep.subr.bf16.mxu0 0
      %2094 = vmatpush1.bf16.msra.mxu0 0
      %2095 = vmatprep.subr.bf16.mxu0 0
      %2096 = vmatpush1.bf16.msra.mxu0 0
      %2097 = vmatprep.subr.bf16.mxu0 0
      %2098 = vmatpush1.bf16.msra.mxu0 0
      %2099 = vmatprep.subr.bf16.mxu0 0
      %2100 = vmatpush1.bf16.msra.mxu0 0
      %2101 = vmatprep.subr.bf16.mxu0 0
      %2102 = vmatpush1.bf16.msra.mxu0 0
      %2103 = vmatprep.subr.bf16.mxu0 0
      %2104 = vmatpush1.bf16.msra.mxu0 0
      %2105 = vmatprep.subr.bf16.mxu0 0
      %2106 = vmatpush1.bf16.msra.mxu0 0
      %2107 = vmatprep.mubr.bf16.mxu0 0
      %2108 = vmatmul.mubr.bf16.gmra.mrb[0].mxu0 %v2070
      %v2109 = vpop.f32.mrb[0].mxu0
      %v2110 = vadd.f32 0.0, %v2109
      %v2111 = vpop.f32.mrb[0].mxu0
      %v2112 = vpop.f32.mrb[0].mxu0
      %v2113 = vpop.f32.mrb[0].mxu0
      %2114 = vdwg.mxu0
      %v2116 = vsel %vm1108, %v2066, 0
      %v2119 = vsel %vm1138, %v2068, 0
      %2121 = vmatprep.subr.bf16.mxu0 0
      %2122 = vmatpush1.bf16.msra.mxu0 %v2119
      %2123 = vmatprep.subr.bf16.mxu0 0
      %2124 = vmatpush1.bf16.msra.mxu0 0
      %2125 = vmatprep.subr.bf16.mxu0 0
      %2126 = vmatpush1.bf16.msra.mxu0 0
      %2127 = vmatprep.subr.bf16.mxu0 0
      %2128 = vmatpush1.bf16.msra.mxu0 0
      %2129 = vmatprep.subr.bf16.mxu0 0
      %2130 = vmatpush1.bf16.msra.mxu0 0
      %2131 = vmatprep.subr.bf16.mxu0 0
      %2132 = vmatpush1.bf16.msra.mxu0 0
      %2133 = vmatprep.subr.bf16.mxu0 0
      %2134 = vmatpush1.bf16.msra.mxu0 0
      %2135 = vmatprep.subr.bf16.mxu0 0
      %2136 = vmatpush1.bf16.msra.mxu0 0
      %2137 = vmatprep.subr.bf16.mxu0 0
      %2138 = vmatpush1.bf16.msra.mxu0 0
      %2139 = vmatprep.subr.bf16.mxu0 0
      %2140 = vmatpush1.bf16.msra.mxu0 0
      %2141 = vmatprep.subr.bf16.mxu0 0
      %2142 = vmatpush1.bf16.msra.mxu0 0
      %2143 = vmatprep.subr.bf16.mxu0 0
      %2144 = vmatpush1.bf16.msra.mxu0 0
      %2145 = vmatprep.subr.bf16.mxu0 0
      %2146 = vmatpush1.bf16.msra.mxu0 0
      %2147 = vmatprep.subr.bf16.mxu0 0
      %2148 = vmatpush1.bf16.msra.mxu0 0
      %2149 = vmatprep.subr.bf16.mxu0 0
      %2150 = vmatpush1.bf16.msra.mxu0 0
      %2151 = vmatprep.subr.bf16.mxu0 0
      %2152 = vmatpush1.bf16.msra.mxu0 0
      %2153 = vmatprep.mubr.bf16.mxu0 0
      %2154 = vmatmul.mubr.bf16.gmra.mrb[0].mxu0 %v2116
      %v2155 = vpop.f32.mrb[0].mxu0
      %v2156 = vadd.f32 0.0, %v2155
      %v2157 = vpop.f32.mrb[0].mxu0
      %v2158 = vpop.f32.mrb[0].mxu0
      %v2159 = vpop.f32.mrb[0].mxu0
      %2160 = vdwg.mxu0
      %v2161 = vpack.c.bf16 %v2110, %v2110
      %v2162 = vpack.c.bf16 %v2156, %v2156
      %s2163 = scalar_lea.vmem %s5, 16
      %v2164 = vld [vmem:[%s2163] sm:$0xf]
      %v2165 = vld [vmem:[%s2163 + $0x4] sm:$0xf]
      %v2166 = vld [vmem:[%s2163 + $0x8] sm:$0xf]
      %v2167 = vld [vmem:[%s2163 + $0xc] sm:$0xf]
      %v2170 = vunpack.c.l.b16 %v2164
      %v2171 = vunpack.c.l.b16 %v2165
      %v2172 = vpack.c.b16 %v2171, %v2170
      %v2175 = vsel %vm1015, %v2161, 0
      %2177 = vmatprep.subr.bf16.mxu0 0
      %2178 = vmatpush1.bf16.msra.mxu0 %v2172
      %2179 = vmatprep.subr.bf16.mxu0 0
      %2180 = vmatpush1.bf16.msra.mxu0 0
      %2181 = vmatprep.subr.bf16.mxu0 0
      %2182 = vmatpush1.bf16.msra.mxu0 0
      %2183 = vmatprep.subr.bf16.mxu0 0
      %2184 = vmatpush1.bf16.msra.mxu0 0
      %2185 = vmatprep.subr.bf16.mxu0 0
      %2186 = vmatpush1.bf16.msra.mxu0 0
      %2187 = vmatprep.subr.bf16.mxu0 0
      %2188 = vmatpush1.bf16.msra.mxu0 0
      %2189 = vmatprep.subr.bf16.mxu0 0
      %2190 = vmatpush1.bf16.msra.mxu0 0
      %2191 = vmatprep.subr.bf16.mxu0 0
      %2192 = vmatpush1.bf16.msra.mxu0 0
      %2193 = vmatprep.subr.bf16.mxu0 0
      %2194 = vmatpush1.bf16.msra.mxu0 0
      %2195 = vmatprep.subr.bf16.mxu0 0
      %2196 = vmatpush1.bf16.msra.mxu0 0
      %2197 = vmatprep.subr.bf16.mxu0 0
      %2198 = vmatpush1.bf16.msra.mxu0 0
      %2199 = vmatprep.subr.bf16.mxu0 0
      %2200 = vmatpush1.bf16.msra.mxu0 0
      %2201 = vmatprep.subr.bf16.mxu0 0
      %2202 = vmatpush1.bf16.msra.mxu0 0
      %2203 = vmatprep.subr.bf16.mxu0 0
      %2204 = vmatpush1.bf16.msra.mxu0 0
      %2205 = vmatprep.subr.bf16.mxu0 0
      %2206 = vmatpush1.bf16.msra.mxu0 0
      %2207 = vmatprep.subr.bf16.mxu0 0
      %2208 = vmatpush1.bf16.msra.mxu0 0
      %2209 = vmatprep.mubr.bf16.mxu0 0
      %2210 = vmatmul.mubr.bf16.gmra.mrb[0].mxu0 %v2175
      %v2211 = vpop.f32.mrb[0].mxu0
      %v2212 = vadd.f32 0.0, %v2211
      %v2213 = vpop.f32.mrb[0].mxu0
      %v2214 = vpop.f32.mrb[0].mxu0
      %v2215 = vpop.f32.mrb[0].mxu0
      %2216 = vdwg.mxu0
      %v2219 = vunpack.c.l.b16 %v2166
      %v2220 = vunpack.c.l.b16 %v2167
      %v2221 = vpack.c.b16 %v2220, %v2219
      %v2224 = vsel %vm1015, %v2162, 0
      %2226 = vmatprep.subr.bf16.mxu0 0
      %2227 = vmatpush1.bf16.msra.mxu0 %v2221
      %2228 = vmatprep.subr.bf16.mxu0 0
      %2229 = vmatpush1.bf16.msra.mxu0 0
      %2230 = vmatprep.subr.bf16.mxu0 0
      %2231 = vmatpush1.bf16.msra.mxu0 0
      %2232 = vmatprep.subr.bf16.mxu0 0
      %2233 = vmatpush1.bf16.msra.mxu0 0
      %2234 = vmatprep.subr.bf16.mxu0 0
      %2235 = vmatpush1.bf16.msra.mxu0 0
      %2236 = vmatprep.subr.bf16.mxu0 0
      %2237 = vmatpush1.bf16.msra.mxu0 0
      %2238 = vmatprep.subr.bf16.mxu0 0
      %2239 = vmatpush1.bf16.msra.mxu0 0
      %2240 = vmatprep.subr.bf16.mxu0 0
      %2241 = vmatpush1.bf16.msra.mxu0 0
      %2242 = vmatprep.subr.bf16.mxu0 0
      %2243 = vmatpush1.bf16.msra.mxu0 0
      %2244 = vmatprep.subr.bf16.mxu0 0
      %2245 = vmatpush1.bf16.msra.mxu0 0
      %2246 = vmatprep.subr.bf16.mxu0 0
      %2247 = vmatpush1.bf16.msra.mxu0 0
      %2248 = vmatprep.subr.bf16.mxu0 0
      %2249 = vmatpush1.bf16.msra.mxu0 0
      %2250 = vmatprep.subr.bf16.mxu0 0
      %2251 = vmatpush1.bf16.msra.mxu0 0
      %2252 = vmatprep.subr.bf16.mxu0 0
      %2253 = vmatpush1.bf16.msra.mxu0 0
      %2254 = vmatprep.subr.bf16.mxu0 0
      %2255 = vmatpush1.bf16.msra.mxu0 0
      %2256 = vmatprep.subr.bf16.mxu0 0
      %2257 = vmatpush1.bf16.msra.mxu0 0
      %2258 = vmatprep.mubr.bf16.mxu0 0
      %2259 = vmatmul.mubr.bf16.gmra.mrb[0].mxu0 %v2224
      %v2260 = vpop.f32.mrb[0].mxu0
      %v2261 = vadd.f32 0.0, %v2260
      %v2262 = vpop.f32.mrb[0].mxu0
      %v2263 = vpop.f32.mrb[0].mxu0
      %v2264 = vpop.f32.mrb[0].mxu0
      %2265 = vdwg.mxu0
      %v2266 = vsel %vm600, %v2212, 0.0
      %v2267 = vsel %vm600, %v2261, 0.0
      %v2268 = vadd.f32 %v2266, %v2267
      %s2269 = scalar_lea.vmem %s6, 1
      %v2270 = vld [vmem:[%s2269] sm:$0x1]
      %v2272 = vlaneseq
      %v2273 = vshrl.u32 %v2272, 7
      %v2274 = vsub.s32 0, %v2273
      %v2275 = vrot.slane %v2270, %v2274
      %v2277 = vadd.f32 %v2268, %v2275
      %v2278 = vadd.f32 %v1562, %v2277
      %s2279 = scalar_lea.vmem %s7, 1
      %v2280 = vld [vmem:[%s2279] sm:$0x1]
      %s2281 = scalar_lea.vmem %s8, 1
      %v2282 = vld [vmem:[%s2281] sm:$0x1]
      %v2283 = vsel %vm600, %v2278, 0.0
      %2284 = vadd.xlane.f32.xlu0 %v2283
      %v2285 = vpop.xlane.xlu0 %2284
      %v2286 = vmul.f32 %v2285, %v604
      %v2287 = vsub.f32 %v2278, %v2286
      %v2288 = vmul.f32 %v2287, %v2287
      %v2289 = vsel %vm600, %v2288, 0.0
      %2290 = vadd.xlane.f32.xlu0 %v2289
      %v2291 = vpop.xlane.xlu0 %2290
      %v2292 = vmul.f32 %v2291, %v604
      %v2293 = vadd.f32 %v2292, 1e-12
      %v2294 = vrsqrt.pop %v2293
      %v2295 = vmul.f32 %v2287, %v2294
      %v2297 = vlaneseq
      %v2298 = vshrl.u32 %v2297, 7
      %v2299 = vsub.s32 0, %v2298
      %v2300 = vrot.slane %v2280, %v2299
      %v2302 = vmul.f32 %v2295, %v2300
      %v2304 = vlaneseq
      %v2305 = vshrl.u32 %v2304, 7
      %v2306 = vsub.s32 0, %v2305
      %v2307 = vrot.slane %v2282, %v2306
      %v2309 = vadd.f32 %v2302, %v2307
      %s2310 = scalar_lea.vmem %s9, 16
      %v2311 = vld [vmem:[%s2310] sm:$0xf]
      %v2312 = vld [vmem:[%s2310 + $0x4] sm:$0xf]
      %v2313 = vld [vmem:[%s2310 + $0x8] sm:$0xf]
      %v2314 = vld [vmem:[%s2310 + $0xc] sm:$0xf]
      %v2315 = vpack.c.bf16 %v2309, %v2309
      %s2316 = scalar_lea.vmem %s10, 1
      %v2317 = vld [vmem:[%s2316] sm:$0x1]
      %v2319 = vlaneseq
      %v2320 = vshrl.u32 %v2319, 7
      %v2321 = vsub.s32 0, %v2320
      %v2322 = vrot.slane %v2317, %v2321
      %v2328 = vunpack.c.l.b16 %v2311
      %v2329 = vunpack.c.l.b16 %v2312
      %v2330 = vunpack.c.l.b16 %v2313
      %v2331 = vunpack.c.l.b16 %v2314
      %v2332 = vpack.c.b16 %v2329, %v2328
      %v2333 = vpack.c.b16 %v2331, %v2330
      %v2337 = vsel %vm600, %v2315, 0
      %2339 = vmatprep.subr.bf16.mxu0 0
      %2340 = vmatpush1.bf16.msra.mxu0 %v2332
      %2341 = vmatprep.subr.bf16.mxu0 0
      %2342 = vmatpush1.bf16.msra.mxu0 %v2333
      %2343 = vmatprep.subr.bf16.mxu0 0
      %2344 = vmatpush1.bf16.msra.mxu0 0
      %2345 = vmatprep.subr.bf16.mxu0 0
      %2346 = vmatpush1.bf16.msra.mxu0 0
      %2347 = vmatprep.subr.bf16.mxu0 0
      %2348 = vmatpush1.bf16.msra.mxu0 0
      %2349 = vmatprep.subr.bf16.mxu0 0
      %2350 = vmatpush1.bf16.msra.mxu0 0
      %2351 = vmatprep.subr.bf16.mxu0 0
      %2352 = vmatpush1.bf16.msra.mxu0 0
      %2353 = vmatprep.subr.bf16.mxu0 0
      %2354 = vmatpush1.bf16.msra.mxu0 0
      %2355 = vmatprep.subr.bf16.mxu0 0
      %2356 = vmatpush1.bf16.msra.mxu0 0
      %2357 = vmatprep.subr.bf16.mxu0 0
      %2358 = vmatpush1.bf16.msra.mxu0 0
      %2359 = vmatprep.subr.bf16.mxu0 0
      %2360 = vmatpush1.bf16.msra.mxu0 0
      %2361 = vmatprep.subr.bf16.mxu0 0
      %2362 = vmatpush1.bf16.msra.mxu0 0
      %2363 = vmatprep.subr.bf16.mxu0 0
      %2364 = vmatpush1.bf16.msra.mxu0 0
      %2365 = vmatprep.subr.bf16.mxu0 0
      %2366 = vmatpush1.bf16.msra.mxu0 0
      %2367 = vmatprep.subr.bf16.mxu0 0
      %2368 = vmatpush1.bf16.msra.mxu0 0
      %2369 = vmatprep.subr.bf16.mxu0 0
      %2370 = vmatpush1.bf16.msra.mxu0 0
      %2371 = vmatprep.mubr.bf16.mxu0 0
      %2372 = vmatmul.mubr.bf16.gmra.mrb[0].mxu0 %v2337
      %v2373 = vpop.f32.mrb[0].mxu0
      %v2374 = vadd.f32 %v2322, %v2373
      %v2375 = vpop.f32.mrb[0].mxu0
      %v2376 = vpop.f32.mrb[0].mxu0
      %v2377 = vpop.f32.mrb[0].mxu0
      %2378 = vdwg.mxu0
      %v2379 = vmul.f32 %v2374, 0.5
      %v2380 = vmul.f32 %v2374, 0.044715
      %v2381 = vmul.f32 %v2380, %v2374
      %v2382 = vmul.f32 %v2381, %v2374
      %v2383 = vadd.f32 %v2374, %v2382
      %v2384 = vmul.f32 %v2383, 0.7978846
      %v2385 = vtanh.pop %v2384
      %v2386 = vadd.f32 %v2385, 1.0
      %v2387 = vmul.f32 %v2379, %v2386
      %s2388 = scalar_lea.vmem %s11, 32
      %v2389 = vld [vmem:[%s2388] sm:$0xf]
      %v2390 = vld [vmem:[%s2388 + $0x4] sm:$0xf]
      %v2391 = vld [vmem:[%s2388 + $0x8] sm:$0xf]
      %v2392 = vld [vmem:[%s2388 + $0xc] sm:$0xf]
      %v2393 = vld [vmem:[%s2388 + $0x10] sm:$0xf]
      %v2394 = vld [vmem:[%s2388 + $0x14] sm:$0xf]
      %v2395 = vld [vmem:[%s2388 + $0x18] sm:$0xf]
      %v2396 = vld [vmem:[%s2388 + $0x1c] sm:$0xf]
      %v2397 = vpack.c.bf16 %v2387, %v2387
      %s2398 = scalar_lea.vmem %s12, 1
      %v2399 = vld [vmem:[%s2398] sm:$0x1]
      %v2401 = vlaneseq
      %v2402 = vshrl.u32 %v2401, 7
      %v2403 = vsub.s32 0, %v2402
      %v2404 = vrot.slane %v2399, %v2403
      %v2414 = vunpack.c.l.b16 %v2389
      %v2415 = vunpack.c.l.b16 %v2390
      %v2416 = vunpack.c.l.b16 %v2391
      %v2417 = vunpack.c.l.b16 %v2392
      %v2418 = vunpack.c.l.b16 %v2393
      %v2419 = vunpack.c.l.b16 %v2394
      %v2420 = vunpack.c.l.b16 %v2395
      %v2421 = vunpack.c.l.b16 %v2396
      %v2422 = vpack.c.b16 %v2415, %v2414
      %v2423 = vpack.c.b16 %v2417, %v2416
      %v2424 = vpack.c.b16 %v2419, %v2418
      %v2425 = vpack.c.b16 %v2421, %v2420
      %v2431 = vsel %vm1489, %v2397, 0
      %2433 = vmatprep.subr.bf16.mxu0 0
      %2434 = vmatpush1.bf16.msra.mxu0 %v2422
      %2435 = vmatprep.subr.bf16.mxu0 0
      %2436 = vmatpush1.bf16.msra.mxu0 %v2423
      %2437 = vmatprep.subr.bf16.mxu0 0
      %2438 = vmatpush1.bf16.msra.mxu0 %v2424
      %2439 = vmatprep.subr.bf16.mxu0 0
      %2440 = vmatpush1.bf16.msra.mxu0 %v2425
      %2441 = vmatprep.subr.bf16.mxu0 0
      %2442 = vmatpush1.bf16.msra.mxu0 0
      %2443 = vmatprep.subr.bf16.mxu0 0
      %2444 = vmatpush1.bf16.msra.mxu0 0
      %2445 = vmatprep.subr.bf16.mxu0 0
      %2446 = vmatpush1.bf16.msra.mxu0 0
      %2447 = vmatprep.subr.bf16.mxu0 0
      %2448 = vmatpush1.bf16.msra.mxu0 0
      %2449 = vmatprep.subr.bf16.mxu0 0
      %2450 = vmatpush1.bf16.msra.mxu0 0
      %2451 = vmatprep.subr.bf16.mxu0 0
      %2452 = vmatpush1.bf16.msra.mxu0 0
      %2453 = vmatprep.subr.bf16.mxu0 0
      %2454 = vmatpush1.bf16.msra.mxu0 0
      %2455 = vmatprep.subr.bf16.mxu0 0
      %2456 = vmatpush1.bf16.msra.mxu0 0
      %2457 = vmatprep.subr.bf16.mxu0 0
      %2458 = vmatpush1.bf16.msra.mxu0 0
      %2459 = vmatprep.subr.bf16.mxu0 0
      %2460 = vmatpush1.bf16.msra.mxu0 0
      %2461 = vmatprep.subr.bf16.mxu0 0
      %2462 = vmatpush1.bf16.msra.mxu0 0
      %2463 = vmatprep.subr.bf16.mxu0 0
      %2464 = vmatpush1.bf16.msra.mxu0 0
      %2465 = vmatprep.mubr.bf16.mxu0 0
      %2466 = vmatmul.mubr.bf16.gmra.mrb[0].mxu0 %v2431
      %v2467 = vpop.f32.mrb[0].mxu0
      %v2468 = vadd.f32 %v2404, %v2467
      %v2469 = vpop.f32.mrb[0].mxu0
      %v2470 = vpop.f32.mrb[0].mxu0
      %v2471 = vpop.f32.mrb[0].mxu0
      %2472 = vdwg.mxu0
      %v2473 = vadd.f32 %v2309, %v2468
      %s2474 = scalar_lea.vmem %s13, 1
      %v2475 = vld [vmem:[%s2474] sm:$0x1]
      %s2476 = scalar_lea.vmem %s14, 1
      %v2477 = vld [vmem:[%s2476] sm:$0x1]
      %v2478 = vsel %vm600, %v2473, 0.0
      %2479 = vadd.xlane.f32.xlu0 %v2478
      %v2480 = vpop.xlane.xlu0 %2479
      %v2481 = vmul.f32 %v2480, %v604
      %v2482 = vsub.f32 %v2473, %v2481
      %v2483 = vmul.f32 %v2482, %v2482
      %v2484 = vsel %vm600, %v2483, 0.0
      %2485 = vadd.xlane.f32.xlu0 %v2484
      %v2486 = vpop.xlane.xlu0 %2485
      %v2487 = vmul.f32 %v2486, %v604
      %v2488 = vadd.f32 %v2487, 1e-12
      %v2489 = vrsqrt.pop %v2488
      %v2490 = vmul.f32 %v2482, %v2489
      %v2492 = vlaneseq
      %v2493 = vshrl.u32 %v2492, 7
      %v2494 = vsub.s32 0, %v2493
      %v2495 = vrot.slane %v2475, %v2494
      %v2497 = vmul.f32 %v2490, %v2495
      %v2499 = vlaneseq
      %v2500 = vshrl.u32 %v2499, 7
      %v2501 = vsub.s32 0, %v2500
      %v2502 = vrot.slane %v2477, %v2501
      %v2504 = vadd.f32 %v2497, %v2502
      %v2505 = vld [vmem:[%s15] sm:$0xf]
      %v2506 = vld [vmem:[%s15 + $0x4] sm:$0xf]
      %v2507 = vld [vmem:[%s15 + $0x8] sm:$0xf]
      %v2508 = vld [vmem:[%s15 + $0xc] sm:$0xf]
      %v2509 = vpack.c.bf16 %v2504, %v2504
      %v2510 = vld [vmem:[%s16] sm:$0x1]
      %v2515 = vunpack.c.l.b16 %v2505
      %v2516 = vunpack.c.l.b16 %v2506
      %v2517 = vunpack.c.l.b16 %v2507
      %v2518 = vunpack.c.l.b16 %v2508
      %v2519 = vpack.c.b16 %v2516, %v2515
      %v2520 = vpack.c.b16 %v2518, %v2517
      %v2524 = vsel %vm600, %v2509, 0
      %2526 = vmatprep.subr.bf16.mxu0 0
      %2527 = vmatpush1.bf16.msra.mxu0 %v2519
      %2528 = vmatprep.subr.bf16.mxu0 0
      %2529 = vmatpush1.bf16.msra.mxu0 %v2520
      %2530 = vmatprep.subr.bf16.mxu0 0
      %2531 = vmatpush1.bf16.msra.mxu0 0
      %2532 = vmatprep.subr.bf16.mxu0 0
      %2533 = vmatpush1.bf16.msra.mxu0 0
      %2534 = vmatprep.subr.bf16.mxu0 0
      %2535 = vmatpush1.bf16.msra.mxu0 0
      %2536 = vmatprep.subr.bf16.mxu0 0
      %2537 = vmatpush1.bf16.msra.mxu0 0
      %2538 = vmatprep.subr.bf16.mxu0 0
      %2539 = vmatpush1.bf16.msra.mxu0 0
      %2540 = vmatprep.subr.bf16.mxu0 0
      %2541 = vmatpush1.bf16.msra.mxu0 0
      %2542 = vmatprep.subr.bf16.mxu0 0
      %2543 = vmatpush1.bf16.msra.mxu0 0
      %2544 = vmatprep.subr.bf16.mxu0 0
      %2545 = vmatpush1.bf16.msra.mxu0 0
      %2546 = vmatprep.subr.bf16.mxu0 0
      %2547 = vmatpush1.bf16.msra.mxu0 0
      %2548 = vmatprep.subr.bf16.mxu0 0
      %2549 = vmatpush1.bf16.msra.mxu0 0
      %2550 = vmatprep.subr.bf16.mxu0 0
      %2551 = vmatpush1.bf16.msra.mxu0 0
      %2552 = vmatprep.subr.bf16.mxu0 0
      %2553 = vmatpush1.bf16.msra.mxu0 0
      %2554 = vmatprep.subr.bf16.mxu0 0
      %2555 = vmatpush1.bf16.msra.mxu0 0
      %2556 = vmatprep.subr.bf16.mxu0 0
      %2557 = vmatpush1.bf16.msra.mxu0 0
      %2558 = vmatprep.mubr.bf16.mxu0 0
      %2559 = vmatmul.mubr.bf16.gmra.mrb[0].mxu0 %v2524
      %v2560 = vpop.f32.mrb[0].mxu0
      %v2561 = vadd.f32 %v2510, %v2560
      %v2562 = vpop.f32.mrb[0].mxu0
      %v2563 = vpop.f32.mrb[0].mxu0
      %v2564 = vpop.f32.mrb[0].mxu0
      %2565 = vdwg.mxu0
      %v2566 = vtanh.pop %v2561
      %v2567 = vld [vmem:[%s17] sm:$0xf]
      %v2568 = vld [vmem:[%s17 + $0x4] sm:$0xf]
      %v2569 = vld [vmem:[%s17 + $0x8] sm:$0xf]
      %v2570 = vld [vmem:[%s17 + $0xc] sm:$0xf]
      %v2571 = vpack.c.bf16 %v2566, %v2566
      %v2572 = vld [vmem:[%s18] sm:$0x1]
      %v2577 = vunpack.c.l.b16 %v2567
      %v2578 = vunpack.c.l.b16 %v2568
      %v2579 = vunpack.c.l.b16 %v2569
      %v2580 = vunpack.c.l.b16 %v2570
      %v2581 = vpack.c.b16 %v2578, %v2577
      %v2582 = vpack.c.b16 %v2580, %v2579
      %v2586 = vsel %vm600, %v2571, 0
      %2588 = vmatprep.subr.bf16.mxu0 0
      %2589 = vmatpush1.bf16.msra.mxu0 %v2581
      %2590 = vmatprep.subr.bf16.mxu0 0
      %2591 = vmatpush1.bf16.msra.mxu0 %v2582
      %2592 = vmatprep.subr.bf16.mxu0 0
      %2593 = vmatpush1.bf16.msra.mxu0 0
      %2594 = vmatprep.subr.bf16.mxu0 0
      %2595 = vmatpush1.bf16.msra.mxu0 0
      %2596 = vmatprep.subr.bf16.mxu0 0
      %2597 = vmatpush1.bf16.msra.mxu0 0
      %2598 = vmatprep.subr.bf16.mxu0 0
      %2599 = vmatpush1.bf16.msra.mxu0 0
      %2600 = vmatprep.subr.bf16.mxu0 0
      %2601 = vmatpush1.bf16.msra.mxu0 0
      %2602 = vmatprep.subr.bf16.mxu0 0
      %2603 = vmatpush1.bf16.msra.mxu0 0
      %2604 = vmatprep.subr.bf16.mxu0 0
      %2605 = vmatpush1.bf16.msra.mxu0 0
      %2606 = vmatprep.subr.bf16.mxu0 0
      %2607 = vmatpush1.bf16.msra.mxu0 0
      %2608 = vmatprep.subr.bf16.mxu0 0
      %2609 = vmatpush1.bf16.msra.mxu0 0
      %2610 = vmatprep.subr.bf16.mxu0 0
      %2611 = vmatpush1.bf16.msra.mxu0 0
      %2612 = vmatprep.subr.bf16.mxu0 0
      %2613 = vmatpush1.bf16.msra.mxu0 0
      %2614 = vmatprep.subr.bf16.mxu0 0
      %2615 = vmatpush1.bf16.msra.mxu0 0
      %2616 = vmatprep.subr.bf16.mxu0 0
      %2617 = vmatpush1.bf16.msra.mxu0 0
      %2618 = vmatprep.subr.bf16.mxu0 0
      %2619 = vmatpush1.bf16.msra.mxu0 0
      %2620 = vmatprep.mubr.bf16.mxu0 0
      %2621 = vmatmul.mubr.bf16.gmra.mrb[0].mxu0 %v2586
      %v2622 = vpop.f32.mrb[0].mxu0
      %v2623 = vadd.f32 %v2572, %v2622
      %v2624 = vpop.f32.mrb[0].mxu0
      %v2625 = vpop.f32.mrb[0].mxu0
      %v2626 = vpop.f32.mrb[0].mxu0
      %2627 = vdwg.mxu0
      %vm2628 = vcmask 8192
      %2629 = vst.msk [vmem:[%s595] sm:$0x1] %vm2628, %v2623
      %p2630 = scmp.lt.s32.totalorder %s30, 1
      %s2631 = scalar_select %p2630, %s30, 1
      %s2632 = scalar_lea.vmem %s19, %s2631
      // Predicated region
      $region97: #{bert_forward.1} parent=95 // pred_check
        %p2633 = pneg %p452
      $region98: #{bert_forward.1} parent=95 // pred_check_branch
        %2635 = sbr.rel (%p2633) target = $region100
      $region99: #{bert_forward.1} parent=95 // pred_region
        _
      $region100: #{bert_forward.1} parent=95 // pred_fallthru
        _
    $region96: #{bert_forward.1} parent=5 // pred_fallthru
      _
    %p2636 = scmp.le.s32.totalorder 2, %s25
    // Predicated region
    $region101: #{bert_forward.1} parent=5 // pred_check
      %p2637 = pneg %p2636
    $region102: #{bert_forward.1} parent=5 // pred_check_branch
      %2639 = sbr.rel (%p2637) target = $region104
    $region103: #{bert_forward.1} parent=5 // pred_region
      %s2640 = ssub.s32 %s25, 2
      // Predicated region
      $region105: #{bert_forward.1} parent=103 // pred_check
        %p2641 = pneg %p458
      $region106: #{bert_forward.1} parent=103 // pred_check_branch
        %2643 = sbr.rel (%p2641) target = $region108
      $region107: #{bert_forward.1} parent=103 // pred_region
        %p2644 = scmp.lt.s32.totalorder %s31, 1
        %s2645 = scalar_select %p2644, %s31, 1
        %s2646 = scalar_lea.vmem %s19, %s2645
      $region108: #{bert_forward.1} parent=103 // pred_fallthru
        _
    $region104: #{bert_forward.1} parent=5 // pred_fallthru
      _
  $region6: #{bert_forward.1} parent=0 // loop_footer
    %s29 = sadd.s32 1, %s25
  $region7: #{bert_forward.1} parent=0 // loop_footer_branch
    %24 = sbr.rel target = $region3
  $region8: #{bert_forward.1} parent=0 // loop_exit
    _

</llo_original>
